<compile_context>
chip_gen: v7x
topology: tpu7x:2x2x1
jax: 0.10.0
libtpu: 0.0.40
codegen_flags: <defaults>
</compile_context>

<pallas_src>
import functools
import math

import jax
import jax.numpy as jnp
from jax.experimental import pallas as pl
from jax.experimental.pallas import tpu as pltpu


# ----------------------------------------------------------------------------
# Tiling helper
# ----------------------------------------------------------------------------
def _pick_tile(dim, preferred):
    """Largest preferred tile that evenly divides `dim`, else the full dim."""
    for t in preferred:
        if dim % t == 0:
            return t
    return dim


# ----------------------------------------------------------------------------
# Pallas kernels
# ----------------------------------------------------------------------------
def _linear_kernel(x_ref, w_ref, b_ref, o_ref, acc_ref, *, relu):
    # blocks: x (tm, tk), w (tk, tn), b (1, tn), o (tm, tn); acc: f32 scratch
    @pl.when(pl.program_id(2) == 0)
    def _():
        acc_ref[...] = jnp.zeros_like(acc_ref)

    acc_ref[...] += jnp.dot(x_ref[...], w_ref[...],
                            preferred_element_type=jnp.float32)

    @pl.when(pl.program_id(2) == pl.num_programs(2) - 1)
    def _():
        y = acc_ref[...] + b_ref[...].astype(jnp.float32)
        if relu:
            y = jnp.maximum(y, 0.0)
        o_ref[...] = y.astype(o_ref.dtype)


def _ffn_kernel(x_ref, w1_ref, b1_ref, w2_ref, b2_ref, o_ref):
    # fused lin1 + ReLU + lin2; hidden (tm, F) stays in VMEM/vregs
    h = jnp.dot(x_ref[...], w1_ref[...], preferred_element_type=jnp.float32)
    h = jnp.maximum(h + b1_ref[...].astype(jnp.float32), 0.0)
    y = jnp.dot(h.astype(w2_ref.dtype), w2_ref[...],
                preferred_element_type=jnp.float32)
    o_ref[...] = (y + b2_ref[...].astype(jnp.float32)).astype(o_ref.dtype)


def _attn_core(q, k, v, mask_add, scale):
    # q: (H, T, hd), k/v: (H, S, hd), mask_add: (T, S) additive or None
    qf = q.astype(jnp.float32) * scale
    kf = k.astype(jnp.float32)
    s = jnp.einsum("htd,hsd->hts", qf, kf,
                   preferred_element_type=jnp.float32)          # (H, T, S)
    if mask_add is not None:
        s = s + mask_add[None, :, :]
    mx = jnp.max(s, axis=-1, keepdims=True)
    e = jnp.exp(s - mx)
    p = e / jnp.sum(e, axis=-1, keepdims=True)                   # softmax
    ctx = jnp.einsum("hts,hsd->htd", p, v.astype(jnp.float32),
                     preferred_element_type=jnp.float32)         # (H, T, hd)
    return ctx, jnp.mean(p, axis=0)                              # (T, S) avg


def _attn_kernel_mask(q_ref, k_ref, v_ref, m_ref, o_ref, w_ref, *, scale):
    ctx, avg_w = _attn_core(q_ref[0], k_ref[0], v_ref[0], m_ref[...], scale)
    o_ref[0] = ctx.astype(o_ref.dtype)
    w_ref[0] = avg_w


def _attn_kernel_nomask(q_ref, k_ref, v_ref, o_ref, w_ref, *, scale):
    ctx, avg_w = _attn_core(q_ref[0], k_ref[0], v_ref[0], None, scale)
    o_ref[0] = ctx.astype(o_ref.dtype)
    w_ref[0] = avg_w


def _add_ln_kernel(x_ref, r_ref, g_ref, b_ref, o_ref, *, eps):
    x = x_ref[...].astype(jnp.float32) + r_ref[...].astype(jnp.float32)
    mu = jnp.mean(x, axis=-1, keepdims=True)
    var = jnp.mean((x - mu) * (x - mu), axis=-1, keepdims=True)
    y = (x - mu) * jax.lax.rsqrt(var + eps)
    o_ref[...] = (y * g_ref[...] + b_ref[...]).astype(o_ref.dtype)


def _ln_kernel(x_ref, g_ref, b_ref, o_ref, *, eps):
    x = x_ref[...].astype(jnp.float32)
    mu = jnp.mean(x, axis=-1, keepdims=True)
    var = jnp.mean((x - mu) * (x - mu), axis=-1, keepdims=True)
    y = (x - mu) * jax.lax.rsqrt(var + eps)
    o_ref[...] = (y * g_ref[...] + b_ref[...]).astype(o_ref.dtype)


# ----------------------------------------------------------------------------
# Pallas wrappers
# ----------------------------------------------------------------------------
_M_TILES = (512, 256, 128, 64, 32, 16, 8)
# MXU-friendly (256-multiples first for v6e/v7x, then 128 for v5e)
_NK_TILES = (512, 256, 128)


def pallas_linear(x, w_t, b, relu=False):
    """x: (M, K); w_t: (K, N) pre-transposed; b: (N,).  Returns (M, N)."""
    M, K = x.shape
    N = w_t.shape[1]
    tm = _pick_tile(M, _M_TILES)
    tn = _pick_tile(N, _NK_TILES)
    tk = _pick_tile(K, _NK_TILES)
    kern = functools.partial(_linear_kernel, relu=relu)
    return pl.pallas_call(
        kern,
        grid=(M // tm, N // tn, K // tk),
        in_specs=[
            pl.BlockSpec((tm, tk), lambda i, j, k: (i, k)),
            pl.BlockSpec((tk, tn), lambda i, j, k: (k, j)),
            pl.BlockSpec((1, tn), lambda i, j, k: (0, j)),
        ],
        out_specs=pl.BlockSpec((tm, tn), lambda i, j, k: (i, j)),
        out_shape=jax.ShapeDtypeStruct((M, N), x.dtype),
        scratch_shapes=[pltpu.VMEM((tm, tn), jnp.float32)],
        compiler_params=pltpu.CompilerParams(
            dimension_semantics=("parallel", "parallel", "arbitrary")),
    )(x, w_t, b.reshape(1, N))


def pallas_ffn(x, w1_t, b1, w2_t, b2):
    """Fused Linear(E->F) + ReLU + Linear(F->E).  x: (M, E)."""
    M, E = x.shape
    F = w1_t.shape[1]
    tm = _pick_tile(M, (256, 128, 64, 32, 16, 8))
    return pl.pallas_call(
        _ffn_kernel,
        grid=(M // tm,),
        in_specs=[
            pl.BlockSpec((tm, E), lambda i: (i, 0)),
            pl.BlockSpec((E, F), lambda i: (0, 0)),
            pl.BlockSpec((1, F), lambda i: (0, 0)),
            pl.BlockSpec((F, E), lambda i: (0, 0)),
            pl.BlockSpec((1, E), lambda i: (0, 0)),
        ],
        out_specs=pl.BlockSpec((tm, E), lambda i: (i, 0)),
        out_shape=jax.ShapeDtypeStruct((M, E), x.dtype),
        compiler_params=pltpu.CompilerParams(
            dimension_semantics=("parallel",)),
    )(x, w1_t, b1.reshape(1, F), w2_t, b2.reshape(1, E))


def pallas_attention(q, k, v, mask, scale):
    """q: (B, H, T, hd), k/v: (B, H, S, hd), mask: (T, S) additive or None.
    Returns (context (B, H, T, hd), head-averaged weights (B, T, S))."""
    B, H, T, hd = q.shape
    S = k.shape[2]
    qkv_spec = lambda L: pl.BlockSpec((1, H, L, hd), lambda b: (b, 0, 0, 0))
    out_specs = (
        pl.BlockSpec((1, H, T, hd), lambda b: (b, 0, 0, 0)),
        pl.BlockSpec((1, T, S), lambda b: (b, 0, 0)),
    )
    out_shape = (
        jax.ShapeDtypeStruct((B, H, T, hd), q.dtype),
        jax.ShapeDtypeStruct((B, T, S), jnp.float32),
    )
    cparams = pltpu.CompilerParams(dimension_semantics=("parallel",))

    if mask is None:
        kern = functools.partial(_attn_kernel_nomask, scale=scale)
        return pl.pallas_call(
            kern, grid=(B,),
            in_specs=[qkv_spec(T), qkv_spec(S), qkv_spec(S)],
            out_specs=out_specs, out_shape=out_shape,
            compiler_params=cparams,
        )(q, k, v)

    kern = functools.partial(_attn_kernel_mask, scale=scale)
    return pl.pallas_call(
        kern, grid=(B,),
        in_specs=[qkv_spec(T), qkv_spec(S), qkv_spec(S),
                  pl.BlockSpec((T, S), lambda b: (0, 0))],  # mask not broadcast
        out_specs=out_specs, out_shape=out_shape,
        compiler_params=cparams,
    )(q, k, v, mask.astype(jnp.float32))


def pallas_add_layernorm(x, r, gamma, beta, eps=1e-5):
    """y = LayerNorm(x + r) if r is not None else LayerNorm(x).  x: (M, E)."""
    M, E = x.shape
    tm = _pick_tile(M, (1024,) + _M_TILES)
    row_spec = pl.BlockSpec((tm, E), lambda i: (i, 0))
    vec_spec = pl.BlockSpec((1, E), lambda i: (0, 0))
    cparams = pltpu.CompilerParams(dimension_semantics=("parallel",))
    if r is None:
        kern = functools.partial(_ln_kernel, eps=eps)
        in_specs = [row_spec, vec_spec, vec_spec]
        args = (x, gamma.reshape(1, E), beta.reshape(1, E))
    else:
        kern = functools.partial(_add_ln_kernel, eps=eps)
        in_specs = [row_spec, row_spec, vec_spec, vec_spec]
        args = (x, r, gamma.reshape(1, E), beta.reshape(1, E))
    return pl.pallas_call(
        kern,
        grid=(M // tm,),
        in_specs=in_specs,
        out_specs=row_spec,
        out_shape=jax.ShapeDtypeStruct((M, E), x.dtype),
        compiler_params=cparams,
    )(*args)


# ----------------------------------------------------------------------------
# Transformer decoder (glue mirroring PyTorch semantics)
# ----------------------------------------------------------------------------
def multi_head_attention(p, query, key, value, attn_mask, nhead):
    """PyTorch nn.MultiheadAttention forward (eval).  query: (T,B,E),
    key/value: (S,B,E).  Returns (attn_out (T,B,E), avg_weights (B,T,S))."""
    T, B, E = query.shape
    S = key.shape[0]
    hd = E // nhead

    if (query is key) and (key is value):
        # self-attention: fused QKV projection, one HBM pass over the input
        qkv = pallas_linear(query.reshape(T * B, E), p["in_w_t"], p["in_b"])
        q, k, v = qkv[:, :E], qkv[:, E:2 * E], qkv[:, 2 * E:]
    else:
        # cross-attention: Q from query, fused KV from key(==value)
        q = pallas_linear(query.reshape(T * B, E),
                          p["in_w_t"][:, :E], p["in_b"][:E])
        kv = pallas_linear(key.reshape(S * B, E),
                           p["in_w_t"][:, E:], p["in_b"][E:])
        k, v = kv[:, :E], kv[:, E:]

    # (L*B, E) -> (L, B, H, hd) -> (B, H, L, hd)  (same head split as PyTorch)
    q = q.reshape(T, B, nhead, hd).transpose(1, 2, 0, 3)
    k = k.reshape(S, B, nhead, hd).transpose(1, 2, 0, 3)
    v = v.reshape(S, B, nhead, hd).transpose(1, 2, 0, 3)

    ctx, avg_w = pallas_attention(q, k, v, attn_mask, scale=1.0 / math.sqrt(hd))

    ctx = ctx.transpose(2, 0, 1, 3).reshape(T * B, E)
    out = pallas_linear(ctx, p["out_w_t"], p["out_b"]).reshape(T, B, E)
    return out, avg_w


def decoder_layer_forward(p, tgt, memory, tgt_mask, memory_mask, nhead):
    T, B, E = tgt.shape

    sa, sa_w = multi_head_attention(p["self_attn"], tgt, tgt, tgt,
                                    tgt_mask, nhead)
    x = pallas_add_layernorm(tgt.reshape(T * B, E), sa.reshape(T * B, E),
                             p["ln1_g"], p["ln1_b"]).reshape(T, B, E)

    ca, ca_w = multi_head_attention(p["cross_attn"], x, memory, memory,
                                    memory_mask, nhead)
    x2 = pallas_add_layernorm(x.reshape(T * B, E), ca.reshape(T * B, E),
                              p["ln2_g"], p["ln2_b"]).reshape(T, B, E)

    ff = pallas_ffn(x2.reshape(T * B, E),
                    p["lin1_w_t"], p["lin1_b"], p["lin2_w_t"], p["lin2_b"])
    out = pallas_add_layernorm(x2.reshape(T * B, E), ff,
                               p["ln3_g"], p["ln3_b"]).reshape(T, B, E)
    return out, sa_w, ca_w


def transformer_decoder_forward(params, tgt, memory, nhead,
                                tgt_mask=None, memory_mask=None):
    """Mirrors TransformerDecoder.forward; returns (output, self-attn weights
    of the last layer, cross-attn weights of the last layer)."""
    output = tgt
    out_w = mem_w = None
    for layer_p in params["layers"]:
        output, out_w, mem_w = decoder_layer_forward(
            layer_p, output, memory, tgt_mask, memory_mask, nhead)
    if params.get("norm") is not None:
        T, B, E = output.shape
        output = pallas_add_layernorm(output.reshape(T * B, E), None,
                                      params["norm"]["g"],
                                      params["norm"]["b"]).reshape(T, B, E)
    return output, out_w, mem_w


# ----------------------------------------------------------------------------
# Deterministic parameter init (weights stored pre-transposed: (in, out))
# ----------------------------------------------------------------------------
def _init_mha(key, E):
    k1, k2 = jax.random.split(key)
    return {
        "in_w_t": 0.02 * jax.random.normal(k1, (E, 3 * E), jnp.float32),
        "in_b": jnp.zeros((3 * E,), jnp.float32),
        "out_w_t": 0.02 * jax.random.normal(k2, (E, E), jnp.float32),
        "out_b": jnp.zeros((E,), jnp.float32),
    }


def _init_layer(key, E, F):
    ks = jax.random.split(key, 4)
    return {
        "self_attn": _init_mha(ks[0], E),
        "cross_attn": _init_mha(ks[1], E),
        "lin1_w_t": 0.02 * jax.random.normal(ks[2], (E, F), jnp.float32),
        "lin1_b": jnp.zeros((F,), jnp.float32),
        "lin2_w_t": 0.02 * jax.random.normal(ks[3], (F, E), jnp.float32),
        "lin2_b": jnp.zeros((E,), jnp.float32),
        "ln1_g": jnp.ones((E,), jnp.float32), "ln1_b": jnp.zeros((E,), jnp.float32),
        "ln2_g": jnp.ones((E,), jnp.float32), "ln2_b": jnp.zeros((E,), jnp.float32),
        "ln3_g": jnp.ones((E,), jnp.float32), "ln3_b": jnp.zeros((E,), jnp.float32),
    }


def init_params(key, E, F, num_layers, with_final_norm=True):
    keys = jax.random.split(key, num_layers)
    params = {"layers": [_init_layer(k, E, F) for k in keys]}
    params["norm"] = ({"g": jnp.ones((E,), jnp.float32),
                       "b": jnp.zeros((E,), jnp.float32)}
                      if with_final_norm else None)
    return params


# ----------------------------------------------------------------------------
if __name__ == "__main__":
    # Small shapes: d_model=32, nhead=4, dim_feedforward=64, 2 layers,
    # tgt seq T=8, memory seq S=10, batch B=2.
    E, H, F, NUM_LAYERS = 32, 4, 64, 2
    T, S, B = 8, 10, 2

    root = jax.random.PRNGKey(0)
    k_p, k_t, k_m = jax.random.split(root, 3)
    params = init_params(k_p, E, F, NUM_LAYERS, with_final_norm=True)

    tgt = jax.random.normal(k_t, (T, B, E), jnp.float32)      # (T, B, E)
    memory = jax.random.normal(k_m, (S, B, E), jnp.float32)   # (S, B, E)

    # causal tgt mask (same as nn.Transformer.generate_square_subsequent_mask)
    causal = jnp.where(jnp.arange(T)[:, None] >= jnp.arange(T)[None, :],
                       0.0, -jnp.inf).astype(jnp.float32)

    forward = jax.jit(transformer_decoder_forward, static_argnames=("nhead",))
    out, out_w, mem_w = forward(params, tgt, memory, nhead=H,
                                tgt_mask=causal, memory_mask=None)

    jax.block_until_ready((out, out_w, mem_w))
    assert out.shape == (T, B, E)
    assert out_w.shape == (B, T, T)
    assert mem_w.shape == (B, T, S)
    assert bool(jnp.all(jnp.isfinite(out)))
    assert bool(jnp.all(jnp.isfinite(out_w)))
    assert bool(jnp.all(jnp.isfinite(mem_w)))
    print("KERNEL_OK")
</pallas_src>

<mosaic_0001>
module attributes {stable_mosaic.version = 11 : i64} {
  func.func @_linear_kernel(%arg0: i32, %arg1: i32, %arg2: i32, %arg3: memref<16x32xf32, #tpu.memory_space<vmem>>, %arg4: memref<32x96xf32, #tpu.memory_space<vmem>>, %arg5: memref<1x96xf32, #tpu.memory_space<vmem>>, %arg6: memref<16x96xf32, #tpu.memory_space<vmem>>, %arg7: memref<16x96xf32, #tpu.memory_space<vmem>>) attributes {dimension_semantics = [#tpu.dimension_semantics<parallel>, #tpu.dimension_semantics<parallel>, #tpu.dimension_semantics<arbitrary>], iteration_bounds = array<i64: 1, 1, 1>, scalar_prefetch = 0 : i64, scratch_operands = 1 : i64, tpu.core_type = #tpu.core_type<tc>, window_params = [{transform_indices = @transform_0, window_bounds = array<i64: 16, 32>}, {transform_indices = @transform_1, window_bounds = array<i64: 32, 96>}, {transform_indices = @transform_2, window_bounds = array<i64: 1, 96>}, {transform_indices = @transform_3, window_bounds = array<i64: 16, 96>}]} {
    %c0_i32 = arith.constant 0 : i32
    %0 = arith.cmpi eq, %arg2, %c0_i32 : i32
    %1 = arith.extui %0 : i1 to i32
    %c0_i32_0 = arith.constant 0 : i32
    %2 = arith.cmpi ne, %1, %c0_i32_0 : i32
    scf.if %2 {
      %cst_10 = arith.constant 0.000000e+00 : f32
      %12 = vector.broadcast %cst_10 : f32 to vector<16x96xf32>
      %c0_11 = arith.constant 0 : index
      %c0_12 = arith.constant 0 : index
      %13 = vector.load %arg7[%c0_11, %c0_12] : memref<16x96xf32, #tpu.memory_space<vmem>>, vector<16x96xf32>
      tpu.vector_store %arg7[%c0_11, %c0_12], %12 {strides = array<i32>} : memref<16x96xf32, #tpu.memory_space<vmem>>, vector<16x96xf32>,
    } else {
    }
    %c0 = arith.constant 0 : index
    %c0_1 = arith.constant 0 : index
    %3 = vector.load %arg7[%c0, %c0_1] : memref<16x96xf32, #tpu.memory_space<vmem>>, vector<16x96xf32>
    %c0_2 = arith.constant 0 : index
    %c0_3 = arith.constant 0 : index
    %4 = vector.load %arg3[%c0_2, %c0_3] : memref<16x32xf32, #tpu.memory_space<vmem>>, vector<16x32xf32>
    %c0_4 = arith.constant 0 : index
    %c0_5 = arith.constant 0 : index
    %5 = vector.load %arg4[%c0_4, %c0_5] : memref<32x96xf32, #tpu.memory_space<vmem>>, vector<32x96xf32>
    %cst = arith.constant dense<0.000000e+00> : vector<16x96xf32>
    %6 = tpu.matmul %4, %5, %cst {dimension_numbers = #tpu.dot_dimension_numbers<[1], [0], [0], [1], [0, 0, 1, 1], [], []>} : vector<16x32xf32>, vector<32x96xf32>, vector<16x96xf32> -> vector<16x96xf32>
    %7 = arith.addf %3, %6 : vector<16x96xf32>
    %c0_6 = arith.constant 0 : index
    %c0_7 = arith.constant 0 : index
    %8 = vector.load %arg7[%c0_6, %c0_7] : memref<16x96xf32, #tpu.memory_space<vmem>>, vector<16x96xf32>
    tpu.vector_store %arg7[%c0_6, %c0_7], %7 {strides = array<i32>} : memref<16x96xf32, #tpu.memory_space<vmem>>, vector<16x96xf32>,
    %c0_i32_8 = arith.constant 0 : i32
    %9 = arith.cmpi eq, %arg2, %c0_i32_8 : i32
    %10 = arith.extui %9 : i1 to i32
    %c0_i32_9 = arith.constant 0 : i32
    %11 = arith.cmpi ne, %10, %c0_i32_9 : i32
    scf.if %11 {
      %c0_10 = arith.constant 0 : index
      %c0_11 = arith.constant 0 : index
      %12 = vector.load %arg7[%c0_10, %c0_11] : memref<16x96xf32, #tpu.memory_space<vmem>>, vector<16x96xf32>
      %c0_12 = arith.constant 0 : index
      %c0_13 = arith.constant 0 : index
      %13 = vector.load %arg5[%c0_12, %c0_13] : memref<1x96xf32, #tpu.memory_space<vmem>>, vector<1x96xf32>
      %14 = vector.broadcast %13 : vector<1x96xf32> to vector<16x96xf32>
      %15 = arith.addf %12, %14 : vector<16x96xf32>
      %c0_14 = arith.constant 0 : index
      %c0_15 = arith.constant 0 : index
      %16 = vector.load %arg6[%c0_14, %c0_15] : memref<16x96xf32, #tpu.memory_space<vmem>>, vector<16x96xf32>
      tpu.vector_store %arg6[%c0_14, %c0_15], %15 {strides = array<i32>} : memref<16x96xf32, #tpu.memory_space<vmem>>, vector<16x96xf32>,
    } else {
    }
    return
  }
  func.func @transform_0(%arg0: i32, %arg1: i32, %arg2: i32) -> (i32, i32) {
    %c0_i32 = arith.constant 0 : i32
    return %arg0, %arg2 : i32, i32
  }
  func.func @transform_1(%arg0: i32, %arg1: i32, %arg2: i32) -> (i32, i32) {
    %c0_i32 = arith.constant 0 : i32
    return %arg2, %arg1 : i32, i32
  }
  func.func @transform_2(%arg0: i32, %arg1: i32, %arg2: i32) -> (i32, i32) {
    %c0_i32 = arith.constant 0 : i32
    %c0_i32_0 = arith.constant 0 : i32
    return %c0_i32, %arg1 : i32, i32
  }
  func.func @transform_3(%arg0: i32, %arg1: i32, %arg2: i32) -> (i32, i32) {
    %c0_i32 = arith.constant 0 : i32
    return %arg0, %arg1 : i32, i32
  }
}

module attributes {stable_mosaic.version = 11 : i64} {
  func.func @_attn_kernel_mask(%arg0: i32, %arg1: memref<1x4x8x8xf32, #tpu.memory_space<vmem>>, %arg2: memref<1x4x8x8xf32, #tpu.memory_space<vmem>>, %arg3: memref<1x4x8x8xf32, #tpu.memory_space<vmem>>, %arg4: memref<8x8xf32, #tpu.memory_space<vmem>>, %arg5: memref<1x4x8x8xf32, #tpu.memory_space<vmem>>, %arg6: memref<1x8x8xf32, #tpu.memory_space<vmem>>) attributes {dimension_semantics = [#tpu.dimension_semantics<parallel>], iteration_bounds = array<i64: 2>, scalar_prefetch = 0 : i64, scratch_operands = 0 : i64, tpu.core_type = #tpu.core_type<tc>, window_params = [{transform_indices = @transform_0, window_bounds = array<i64: 1, 4, 8, 8>}, {transform_indices = @transform_1, window_bounds = array<i64: 1, 4, 8, 8>}, {transform_indices = @transform_2, window_bounds = array<i64: 1, 4, 8, 8>}, {pipeline_mode = #tpu.pipeline_mode<synchronous>, transform_indices = @transform_3, window_bounds = array<i64: 8, 8>}, {transform_indices = @transform_4, window_bounds = array<i64: 1, 4, 8, 8>}, {transform_indices = @transform_5, window_bounds = array<i64: 1, 8, 8>}]} {
    %c0 = arith.constant 0 : index
    %c0_0 = arith.constant 0 : index
    %c0_1 = arith.constant 0 : index
    %c0_2 = arith.constant 0 : index
    %0 = vector.load %arg1[%c0, %c0_0, %c0_1, %c0_2] : memref<1x4x8x8xf32, #tpu.memory_space<vmem>>, vector<1x4x8x8xf32>
    %1 = vector.shape_cast %0 : vector<1x4x8x8xf32> to vector<4x8x8xf32>
    %c0_3 = arith.constant 0 : index
    %c0_4 = arith.constant 0 : index
    %c0_5 = arith.constant 0 : index
    %c0_6 = arith.constant 0 : index
    %2 = vector.load %arg2[%c0_3, %c0_4, %c0_5, %c0_6] : memref<1x4x8x8xf32, #tpu.memory_space<vmem>>, vector<1x4x8x8xf32>
    %3 = vector.shape_cast %2 : vector<1x4x8x8xf32> to vector<4x8x8xf32>
    %c0_7 = arith.constant 0 : index
    %c0_8 = arith.constant 0 : index
    %c0_9 = arith.constant 0 : index
    %c0_10 = arith.constant 0 : index
    %4 = vector.load %arg3[%c0_7, %c0_8, %c0_9, %c0_10] : memref<1x4x8x8xf32, #tpu.memory_space<vmem>>, vector<1x4x8x8xf32>
    %5 = vector.shape_cast %4 : vector<1x4x8x8xf32> to vector<4x8x8xf32>
    %c0_11 = arith.constant 0 : index
    %c0_12 = arith.constant 0 : index
    %6 = vector.load %arg4[%c0_11, %c0_12] : memref<8x8xf32, #tpu.memory_space<vmem>>, vector<8x8xf32>
    %cst = arith.constant 0.353553385 : f32
    %7 = vector.broadcast %cst : f32 to vector<4x8x8xf32>
    %8 = arith.mulf %1, %7 : vector<4x8x8xf32>
    "tpu.trace_start"() <{level = 10 : i32, message = "htd,hsd->hts"}> : () -> ()
    %cst_13 = arith.constant dense<0.000000e+00> : vector<4x8x8xf32>
    %9 = tpu.matmul %8, %3, %cst_13 {dimension_numbers = #tpu.dot_dimension_numbers<[2], [2], [1], [1], [0, 0, 0, 1, 1, 1], [0], [0]>} : vector<4x8x8xf32>, vector<4x8x8xf32>, vector<4x8x8xf32> -> vector<4x8x8xf32>
    "tpu.trace_stop"() : () -> ()
    %10 = vector.shape_cast %6 : vector<8x8xf32> to vector<1x8x8xf32>
    %11 = vector.broadcast %10 : vector<1x8x8xf32> to vector<4x8x8xf32>
    %12 = arith.addf %9, %11 : vector<4x8x8xf32>
    %cst_14 = arith.constant dense<0xFF800000> : vector<4x8xf32>
    %13 = vector.multi_reduction <maximumf>, %12, %cst_14 [2] : vector<4x8x8xf32> to vector<4x8xf32>
    %14 = vector.shape_cast %13 : vector<4x8xf32> to vector<4x8x1xf32>
    %15 = vector.broadcast %14 : vector<4x8x1xf32> to vector<4x8x8xf32>
    %16 = arith.subf %12, %15 : vector<4x8x8xf32>
    %17 = math.exp %16 : vector<4x8x8xf32>
    %cst_15 = arith.constant dense<0.000000e+00> : vector<4x8xf32>
    %18 = vector.multi_reduction <add>, %17, %cst_15 [2] : vector<4x8x8xf32> to vector<4x8xf32>
    %19 = vector.shape_cast %18 : vector<4x8xf32> to vector<4x8x1xf32>
    %20 = vector.broadcast %19 : vector<4x8x1xf32> to vector<4x8x8xf32>
    %21 = arith.divf %17, %20 : vector<4x8x8xf32>
    "tpu.trace_start"() <{level = 10 : i32, message = "hts,hsd->htd"}> : () -> ()
    %cst_16 = arith.constant dense<0.000000e+00> : vector<4x8x8xf32>
    %22 = tpu.matmul %21, %5, %cst_16 {dimension_numbers = #tpu.dot_dimension_numbers<[2], [1], [1], [2], [0, 0, 0, 1, 1, 2], [0], [0]>} : vector<4x8x8xf32>, vector<4x8x8xf32>, vector<4x8x8xf32> -> vector<4x8x8xf32>
    "tpu.trace_stop"() : () -> ()
    %cst_17 = arith.constant dense<0.000000e+00> : vector<8x8xf32>
    %23 = vector.multi_reduction <add>, %21, %cst_17 [0] : vector<4x8x8xf32> to vector<8x8xf32>
    %cst_18 = arith.constant 4.000000e+00 : f32
    %24 = vector.broadcast %cst_18 : f32 to vector<8x8xf32>
    %25 = arith.divf %23, %24 : vector<8x8xf32>
    %c0_19 = arith.constant 0 : index
    %c0_20 = arith.constant 0 : index
    %c0_21 = arith.constant 0 : index
    %c0_22 = arith.constant 0 : index
    %26 = vector.load %arg5[%c0_19, %c0_20, %c0_21, %c0_22] : memref<1x4x8x8xf32, #tpu.memory_space<vmem>>, vector<1x4x8x8xf32>
    %27 = vector.shape_cast %26 : vector<1x4x8x8xf32> to vector<4x8x8xf32>
    %28 = vector.shape_cast %22 : vector<4x8x8xf32> to vector<1x4x8x8xf32>
    tpu.vector_store %arg5[%c0_19, %c0_20, %c0_21, %c0_22], %28 {strides = array<i32>} : memref<1x4x8x8xf32, #tpu.memory_space<vmem>>, vector<1x4x8x8xf32>,
    %c0_23 = arith.constant 0 : index
    %c0_24 = arith.constant 0 : index
    %c0_25 = arith.constant 0 : index
    %29 = vector.load %arg6[%c0_23, %c0_24, %c0_25] : memref<1x8x8xf32, #tpu.memory_space<vmem>>, vector<1x8x8xf32>
    %30 = vector.shape_cast %29 : vector<1x8x8xf32> to vector<8x8xf32>
    %31 = vector.shape_cast %25 : vector<8x8xf32> to vector<1x8x8xf32>
    tpu.vector_store %arg6[%c0_23, %c0_24, %c0_25], %31 {strides = array<i32>} : memref<1x8x8xf32, #tpu.memory_space<vmem>>, vector<1x8x8xf32>,
    return
  }
  func.func @transform_0(%arg0: i32) -> (i32, i32, i32, i32) {
    %c0_i32 = arith.constant 0 : i32
    %c0_i32_0 = arith.constant 0 : i32
    %c0_i32_1 = arith.constant 0 : i32
    %c0_i32_2 = arith.constant 0 : i32
    return %arg0, %c0_i32, %c0_i32_0, %c0_i32_1 : i32, i32, i32, i32
  }
  func.func @transform_1(%arg0: i32) -> (i32, i32, i32, i32) {
    %c0_i32 = arith.constant 0 : i32
    %c0_i32_0 = arith.constant 0 : i32
    %c0_i32_1 = arith.constant 0 : i32
    %c0_i32_2 = arith.constant 0 : i32
    return %arg0, %c0_i32, %c0_i32_0, %c0_i32_1 : i32, i32, i32, i32
  }
  func.func @transform_2(%arg0: i32) -> (i32, i32, i32, i32) {
    %c0_i32 = arith.constant 0 : i32
    %c0_i32_0 = arith.constant 0 : i32
    %c0_i32_1 = arith.constant 0 : i32
    %c0_i32_2 = arith.constant 0 : i32
    return %arg0, %c0_i32, %c0_i32_0, %c0_i32_1 : i32, i32, i32, i32
  }
  func.func @transform_3(%arg0: i32) -> (i32, i32) {
    %c0_i32 = arith.constant 0 : i32
    %c0_i32_0 = arith.constant 0 : i32
    %c0_i32_1 = arith.constant 0 : i32
    return %c0_i32, %c0_i32_0 : i32, i32
  }
  func.func @transform_4(%arg0: i32) -> (i32, i32, i32, i32) {
    %c0_i32 = arith.constant 0 : i32
    %c0_i32_0 = arith.constant 0 : i32
    %c0_i32_1 = arith.constant 0 : i32
    %c0_i32_2 = arith.constant 0 : i32
    return %arg0, %c0_i32, %c0_i32_0, %c0_i32_1 : i32, i32, i32, i32
  }
  func.func @transform_5(%arg0: i32) -> (i32, i32, i32) {
    %c0_i32 = arith.constant 0 : i32
    %c0_i32_0 = arith.constant 0 : i32
    %c0_i32_1 = arith.constant 0 : i32
    return %arg0, %c0_i32, %c0_i32_0 : i32, i32, i32
  }
}

module attributes {stable_mosaic.version = 11 : i64} {
  func.func @_linear_kernel(%arg0: i32, %arg1: i32, %arg2: i32, %arg3: memref<16x32xf32, #tpu.memory_space<vmem>>, %arg4: memref<32x32xf32, #tpu.memory_space<vmem>>, %arg5: memref<1x32xf32, #tpu.memory_space<vmem>>, %arg6: memref<16x32xf32, #tpu.memory_space<vmem>>, %arg7: memref<16x32xf32, #tpu.memory_space<vmem>>) attributes {dimension_semantics = [#tpu.dimension_semantics<parallel>, #tpu.dimension_semantics<parallel>, #tpu.dimension_semantics<arbitrary>], iteration_bounds = array<i64: 1, 1, 1>, scalar_prefetch = 0 : i64, scratch_operands = 1 : i64, tpu.core_type = #tpu.core_type<tc>, window_params = [{transform_indices = @transform_0, window_bounds = array<i64: 16, 32>}, {transform_indices = @transform_1, window_bounds = array<i64: 32, 32>}, {transform_indices = @transform_2, window_bounds = array<i64: 1, 32>}, {transform_indices = @transform_3, window_bounds = array<i64: 16, 32>}]} {
    %c0_i32 = arith.constant 0 : i32
    %0 = arith.cmpi eq, %arg2, %c0_i32 : i32
    %1 = arith.extui %0 : i1 to i32
    %c0_i32_0 = arith.constant 0 : i32
    %2 = arith.cmpi ne, %1, %c0_i32_0 : i32
    scf.if %2 {
      %cst_10 = arith.constant 0.000000e+00 : f32
      %12 = vector.broadcast %cst_10 : f32 to vector<16x32xf32>
      %c0_11 = arith.constant 0 : index
      %c0_12 = arith.constant 0 : index
      %13 = vector.load %arg7[%c0_11, %c0_12] : memref<16x32xf32, #tpu.memory_space<vmem>>, vector<16x32xf32>
      tpu.vector_store %arg7[%c0_11, %c0_12], %12 {strides = array<i32>} : memref<16x32xf32, #tpu.memory_space<vmem>>, vector<16x32xf32>,
    } else {
    }
    %c0 = arith.constant 0 : index
    %c0_1 = arith.constant 0 : index
    %3 = vector.load %arg7[%c0, %c0_1] : memref<16x32xf32, #tpu.memory_space<vmem>>, vector<16x32xf32>
    %c0_2 = arith.constant 0 : index
    %c0_3 = arith.constant 0 : index
    %4 = vector.load %arg3[%c0_2, %c0_3] : memref<16x32xf32, #tpu.memory_space<vmem>>, vector<16x32xf32>
    %c0_4 = arith.constant 0 : index
    %c0_5 = arith.constant 0 : index
    %5 = vector.load %arg4[%c0_4, %c0_5] : memref<32x32xf32, #tpu.memory_space<vmem>>, vector<32x32xf32>
    %cst = arith.constant dense<0.000000e+00> : vector<16x32xf32>
    %6 = tpu.matmul %4, %5, %cst {dimension_numbers = #tpu.dot_dimension_numbers<[1], [0], [0], [1], [0, 0, 1, 1], [], []>} : vector<16x32xf32>, vector<32x32xf32>, vector<16x32xf32> -> vector<16x32xf32>
    %7 = arith.addf %3, %6 : vector<16x32xf32>
    %c0_6 = arith.constant 0 : index
    %c0_7 = arith.constant 0 : index
    %8 = vector.load %arg7[%c0_6, %c0_7] : memref<16x32xf32, #tpu.memory_space<vmem>>, vector<16x32xf32>
    tpu.vector_store %arg7[%c0_6, %c0_7], %7 {strides = array<i32>} : memref<16x32xf32, #tpu.memory_space<vmem>>, vector<16x32xf32>,
    %c0_i32_8 = arith.constant 0 : i32
    %9 = arith.cmpi eq, %arg2, %c0_i32_8 : i32
    %10 = arith.extui %9 : i1 to i32
    %c0_i32_9 = arith.constant 0 : i32
    %11 = arith.cmpi ne, %10, %c0_i32_9 : i32
    scf.if %11 {
      %c0_10 = arith.constant 0 : index
      %c0_11 = arith.constant 0 : index
      %12 = vector.load %arg7[%c0_10, %c0_11] : memref<16x32xf32, #tpu.memory_space<vmem>>, vector<16x32xf32>
      %c0_12 = arith.constant 0 : index
      %c0_13 = arith.constant 0 : index
      %13 = vector.load %arg5[%c0_12, %c0_13] : memref<1x32xf32, #tpu.memory_space<vmem>>, vector<1x32xf32>
      %14 = vector.broadcast %13 : vector<1x32xf32> to vector<16x32xf32>
      %15 = arith.addf %12, %14 : vector<16x32xf32>
      %c0_14 = arith.constant 0 : index
      %c0_15 = arith.constant 0 : index
      %16 = vector.load %arg6[%c0_14, %c0_15] : memref<16x32xf32, #tpu.memory_space<vmem>>, vector<16x32xf32>
      tpu.vector_store %arg6[%c0_14, %c0_15], %15 {strides = array<i32>} : memref<16x32xf32, #tpu.memory_space<vmem>>, vector<16x32xf32>,
    } else {
    }
    return
  }
  func.func @transform_0(%arg0: i32, %arg1: i32, %arg2: i32) -> (i32, i32) {
    %c0_i32 = arith.constant 0 : i32
    return %arg0, %arg2 : i32, i32
  }
  func.func @transform_1(%arg0: i32, %arg1: i32, %arg2: i32) -> (i32, i32) {
    %c0_i32 = arith.constant 0 : i32
    return %arg2, %arg1 : i32, i32
  }
  func.func @transform_2(%arg0: i32, %arg1: i32, %arg2: i32) -> (i32, i32) {
    %c0_i32 = arith.constant 0 : i32
    %c0_i32_0 = arith.constant 0 : i32
    return %c0_i32, %arg1 : i32, i32
  }
  func.func @transform_3(%arg0: i32, %arg1: i32, %arg2: i32) -> (i32, i32) {
    %c0_i32 = arith.constant 0 : i32
    return %arg0, %arg1 : i32, i32
  }
}

module attributes {stable_mosaic.version = 11 : i64} {
  func.func @_add_ln_kernel(%arg0: i32, %arg1: memref<16x32xf32, #tpu.memory_space<vmem>>, %arg2: memref<16x32xf32, #tpu.memory_space<vmem>>, %arg3: memref<1x32xf32, #tpu.memory_space<vmem>>, %arg4: memref<1x32xf32, #tpu.memory_space<vmem>>, %arg5: memref<16x32xf32, #tpu.memory_space<vmem>>) attributes {dimension_semantics = [#tpu.dimension_semantics<parallel>], iteration_bounds = array<i64: 1>, scalar_prefetch = 0 : i64, scratch_operands = 0 : i64, tpu.core_type = #tpu.core_type<tc>, window_params = [{transform_indices = @transform_0, window_bounds = array<i64: 16, 32>}, {transform_indices = @transform_1, window_bounds = array<i64: 16, 32>}, {pipeline_mode = #tpu.pipeline_mode<synchronous>, transform_indices = @transform_2, window_bounds = array<i64: 1, 32>}, {pipeline_mode = #tpu.pipeline_mode<synchronous>, transform_indices = @transform_3, window_bounds = array<i64: 1, 32>}, {transform_indices = @transform_4, window_bounds = array<i64: 16, 32>}]} {
    %c0 = arith.constant 0 : index
    %c0_0 = arith.constant 0 : index
    %0 = vector.load %arg1[%c0, %c0_0] : memref<16x32xf32, #tpu.memory_space<vmem>>, vector<16x32xf32>
    %c0_1 = arith.constant 0 : index
    %c0_2 = arith.constant 0 : index
    %1 = vector.load %arg2[%c0_1, %c0_2] : memref<16x32xf32, #tpu.memory_space<vmem>>, vector<16x32xf32>
    %2 = arith.addf %0, %1 : vector<16x32xf32>
    %cst = arith.constant dense<0.000000e+00> : vector<16xf32>
    %3 = vector.multi_reduction <add>, %2, %cst [1] : vector<16x32xf32> to vector<16xf32>
    %4 = vector.shape_cast %3 : vector<16xf32> to vector<16x1xf32>
    %cst_3 = arith.constant 3.200000e+01 : f32
    %5 = vector.broadcast %cst_3 : f32 to vector<16x1xf32>
    %6 = arith.divf %4, %5 : vector<16x1xf32>
    %7 = vector.broadcast %6 : vector<16x1xf32> to vector<16x32xf32>
    %8 = arith.subf %2, %7 : vector<16x32xf32>
    %9 = vector.broadcast %6 : vector<16x1xf32> to vector<16x32xf32>
    %10 = arith.subf %2, %9 : vector<16x32xf32>
    %11 = arith.mulf %8, %10 : vector<16x32xf32>
    %cst_4 = arith.constant dense<0.000000e+00> : vector<16xf32>
    %12 = vector.multi_reduction <add>, %11, %cst_4 [1] : vector<16x32xf32> to vector<16xf32>
    %13 = vector.shape_cast %12 : vector<16xf32> to vector<16x1xf32>
    %cst_5 = arith.constant 3.200000e+01 : f32
    %14 = vector.broadcast %cst_5 : f32 to vector<16x1xf32>
    %15 = arith.divf %13, %14 : vector<16x1xf32>
    %16 = vector.broadcast %6 : vector<16x1xf32> to vector<16x32xf32>
    %17 = arith.subf %2, %16 : vector<16x32xf32>
    %cst_6 = arith.constant 9.99999974E-6 : f32
    %18 = vector.broadcast %cst_6 : f32 to vector<16x1xf32>
    %19 = arith.addf %15, %18 : vector<16x1xf32>
    %20 = math.rsqrt %19 : vector<16x1xf32>
    %21 = vector.broadcast %20 : vector<16x1xf32> to vector<16x32xf32>
    %22 = arith.mulf %17, %21 : vector<16x32xf32>
    %c0_7 = arith.constant 0 : index
    %c0_8 = arith.constant 0 : index
    %23 = vector.load %arg3[%c0_7, %c0_8] : memref<1x32xf32, #tpu.memory_space<vmem>>, vector<1x32xf32>
    %24 = vector.broadcast %23 : vector<1x32xf32> to vector<16x32xf32>
    %25 = arith.mulf %22, %24 : vector<16x32xf32>
    %c0_9 = arith.constant 0 : index
    %c0_10 = arith.constant 0 : index
    %26 = vector.load %arg4[%c0_9, %c0_10] : memref<1x32xf32, #tpu.memory_space<vmem>>, vector<1x32xf32>
    %27 = vector.broadcast %26 : vector<1x32xf32> to vector<16x32xf32>
    %28 = arith.addf %25, %27 : vector<16x32xf32>
    %c0_11 = arith.constant 0 : index
    %c0_12 = arith.constant 0 : index
    %29 = vector.load %arg5[%c0_11, %c0_12] : memref<16x32xf32, #tpu.memory_space<vmem>>, vector<16x32xf32>
    tpu.vector_store %arg5[%c0_11, %c0_12], %28 {strides = array<i32>} : memref<16x32xf32, #tpu.memory_space<vmem>>, vector<16x32xf32>,
    return
  }
  func.func @transform_0(%arg0: i32) -> (i32, i32) {
    %c0_i32 = arith.constant 0 : i32
    %c0_i32_0 = arith.constant 0 : i32
    return %arg0, %c0_i32 : i32, i32
  }
  func.func @transform_1(%arg0: i32) -> (i32, i32) {
    %c0_i32 = arith.constant 0 : i32
    %c0_i32_0 = arith.constant 0 : i32
    return %arg0, %c0_i32 : i32, i32
  }
  func.func @transform_2(%arg0: i32) -> (i32, i32) {
    %c0_i32 = arith.constant 0 : i32
    %c0_i32_0 = arith.constant 0 : i32
    %c0_i32_1 = arith.constant 0 : i32
    return %c0_i32, %c0_i32_0 : i32, i32
  }
  func.func @transform_3(%arg0: i32) -> (i32, i32) {
    %c0_i32 = arith.constant 0 : i32
    %c0_i32_0 = arith.constant 0 : i32
    %c0_i32_1 = arith.constant 0 : i32
    return %c0_i32, %c0_i32_0 : i32, i32
  }
  func.func @transform_4(%arg0: i32) -> (i32, i32) {
    %c0_i32 = arith.constant 0 : i32
    %c0_i32_0 = arith.constant 0 : i32
    return %arg0, %c0_i32 : i32, i32
  }
}

module attributes {stable_mosaic.version = 11 : i64} {
  func.func @_linear_kernel(%arg0: i32, %arg1: i32, %arg2: i32, %arg3: memref<20x32xf32, #tpu.memory_space<vmem>>, %arg4: memref<32x64xf32, #tpu.memory_space<vmem>>, %arg5: memref<1x64xf32, #tpu.memory_space<vmem>>, %arg6: memref<20x64xf32, #tpu.memory_space<vmem>>, %arg7: memref<20x64xf32, #tpu.memory_space<vmem>>) attributes {dimension_semantics = [#tpu.dimension_semantics<parallel>, #tpu.dimension_semantics<parallel>, #tpu.dimension_semantics<arbitrary>], iteration_bounds = array<i64: 1, 1, 1>, scalar_prefetch = 0 : i64, scratch_operands = 1 : i64, tpu.core_type = #tpu.core_type<tc>, window_params = [{transform_indices = @transform_0, window_bounds = array<i64: 20, 32>}, {transform_indices = @transform_1, window_bounds = array<i64: 32, 64>}, {transform_indices = @transform_2, window_bounds = array<i64: 1, 64>}, {transform_indices = @transform_3, window_bounds = array<i64: 20, 64>}]} {
    %c0_i32 = arith.constant 0 : i32
    %0 = arith.cmpi eq, %arg2, %c0_i32 : i32
    %1 = arith.extui %0 : i1 to i32
    %c0_i32_0 = arith.constant 0 : i32
    %2 = arith.cmpi ne, %1, %c0_i32_0 : i32
    scf.if %2 {
      %cst_10 = arith.constant 0.000000e+00 : f32
      %12 = vector.broadcast %cst_10 : f32 to vector<20x64xf32>
      %c0_11 = arith.constant 0 : index
      %c0_12 = arith.constant 0 : index
      %13 = vector.load %arg7[%c0_11, %c0_12] : memref<20x64xf32, #tpu.memory_space<vmem>>, vector<20x64xf32>
      tpu.vector_store %arg7[%c0_11, %c0_12], %12 {strides = array<i32>} : memref<20x64xf32, #tpu.memory_space<vmem>>, vector<20x64xf32>,
    } else {
    }
    %c0 = arith.constant 0 : index
    %c0_1 = arith.constant 0 : index
    %3 = vector.load %arg7[%c0, %c0_1] : memref<20x64xf32, #tpu.memory_space<vmem>>, vector<20x64xf32>
    %c0_2 = arith.constant 0 : index
    %c0_3 = arith.constant 0 : index
    %4 = vector.load %arg3[%c0_2, %c0_3] : memref<20x32xf32, #tpu.memory_space<vmem>>, vector<20x32xf32>
    %c0_4 = arith.constant 0 : index
    %c0_5 = arith.constant 0 : index
    %5 = vector.load %arg4[%c0_4, %c0_5] : memref<32x64xf32, #tpu.memory_space<vmem>>, vector<32x64xf32>
    %cst = arith.constant dense<0.000000e+00> : vector<20x64xf32>
    %6 = tpu.matmul %4, %5, %cst {dimension_numbers = #tpu.dot_dimension_numbers<[1], [0], [0], [1], [0, 0, 1, 1], [], []>} : vector<20x32xf32>, vector<32x64xf32>, vector<20x64xf32> -> vector<20x64xf32>
    %7 = arith.addf %3, %6 : vector<20x64xf32>
    %c0_6 = arith.constant 0 : index
    %c0_7 = arith.constant 0 : index
    %8 = vector.load %arg7[%c0_6, %c0_7] : memref<20x64xf32, #tpu.memory_space<vmem>>, vector<20x64xf32>
    tpu.vector_store %arg7[%c0_6, %c0_7], %7 {strides = array<i32>} : memref<20x64xf32, #tpu.memory_space<vmem>>, vector<20x64xf32>,
    %c0_i32_8 = arith.constant 0 : i32
    %9 = arith.cmpi eq, %arg2, %c0_i32_8 : i32
    %10 = arith.extui %9 : i1 to i32
    %c0_i32_9 = arith.constant 0 : i32
    %11 = arith.cmpi ne, %10, %c0_i32_9 : i32
    scf.if %11 {
      %c0_10 = arith.constant 0 : index
      %c0_11 = arith.constant 0 : index
      %12 = vector.load %arg7[%c0_10, %c0_11] : memref<20x64xf32, #tpu.memory_space<vmem>>, vector<20x64xf32>
      %c0_12 = arith.constant 0 : index
      %c0_13 = arith.constant 0 : index
      %13 = vector.load %arg5[%c0_12, %c0_13] : memref<1x64xf32, #tpu.memory_space<vmem>>, vector<1x64xf32>
      %14 = vector.broadcast %13 : vector<1x64xf32> to vector<20x64xf32>
      %15 = arith.addf %12, %14 : vector<20x64xf32>
      %c0_14 = arith.constant 0 : index
      %c0_15 = arith.constant 0 : index
      %16 = vector.load %arg6[%c0_14, %c0_15] : memref<20x64xf32, #tpu.memory_space<vmem>>, vector<20x64xf32>
      tpu.vector_store %arg6[%c0_14, %c0_15], %15 {strides = array<i32>} : memref<20x64xf32, #tpu.memory_space<vmem>>, vector<20x64xf32>,
    } else {
    }
    return
  }
  func.func @transform_0(%arg0: i32, %arg1: i32, %arg2: i32) -> (i32, i32) {
    %c0_i32 = arith.constant 0 : i32
    return %arg0, %arg2 : i32, i32
  }
  func.func @transform_1(%arg0: i32, %arg1: i32, %arg2: i32) -> (i32, i32) {
    %c0_i32 = arith.constant 0 : i32
    return %arg2, %arg1 : i32, i32
  }
  func.func @transform_2(%arg0: i32, %arg1: i32, %arg2: i32) -> (i32, i32) {
    %c0_i32 = arith.constant 0 : i32
    %c0_i32_0 = arith.constant 0 : i32
    return %c0_i32, %arg1 : i32, i32
  }
  func.func @transform_3(%arg0: i32, %arg1: i32, %arg2: i32) -> (i32, i32) {
    %c0_i32 = arith.constant 0 : i32
    return %arg0, %arg1 : i32, i32
  }
}

module attributes {stable_mosaic.version = 11 : i64} {
  func.func @_attn_kernel_nomask(%arg0: i32, %arg1: memref<1x4x8x8xf32, #tpu.memory_space<vmem>>, %arg2: memref<1x4x10x8xf32, #tpu.memory_space<vmem>>, %arg3: memref<1x4x10x8xf32, #tpu.memory_space<vmem>>, %arg4: memref<1x4x8x8xf32, #tpu.memory_space<vmem>>, %arg5: memref<1x8x10xf32, #tpu.memory_space<vmem>>) attributes {dimension_semantics = [#tpu.dimension_semantics<parallel>], iteration_bounds = array<i64: 2>, scalar_prefetch = 0 : i64, scratch_operands = 0 : i64, tpu.core_type = #tpu.core_type<tc>, window_params = [{transform_indices = @transform_0, window_bounds = array<i64: 1, 4, 8, 8>}, {transform_indices = @transform_1, window_bounds = array<i64: 1, 4, 10, 8>}, {transform_indices = @transform_2, window_bounds = array<i64: 1, 4, 10, 8>}, {transform_indices = @transform_3, window_bounds = array<i64: 1, 4, 8, 8>}, {transform_indices = @transform_4, window_bounds = array<i64: 1, 8, 10>}]} {
    %c0 = arith.constant 0 : index
    %c0_0 = arith.constant 0 : index
    %c0_1 = arith.constant 0 : index
    %c0_2 = arith.constant 0 : index
    %0 = vector.load %arg1[%c0, %c0_0, %c0_1, %c0_2] : memref<1x4x8x8xf32, #tpu.memory_space<vmem>>, vector<1x4x8x8xf32>
    %1 = vector.shape_cast %0 : vector<1x4x8x8xf32> to vector<4x8x8xf32>
    %c0_3 = arith.constant 0 : index
    %c0_4 = arith.constant 0 : index
    %c0_5 = arith.constant 0 : index
    %c0_6 = arith.constant 0 : index
    %2 = vector.load %arg2[%c0_3, %c0_4, %c0_5, %c0_6] : memref<1x4x10x8xf32, #tpu.memory_space<vmem>>, vector<1x4x10x8xf32>
    %3 = vector.shape_cast %2 : vector<1x4x10x8xf32> to vector<4x10x8xf32>
    %c0_7 = arith.constant 0 : index
    %c0_8 = arith.constant 0 : index
    %c0_9 = arith.constant 0 : index
    %c0_10 = arith.constant 0 : index
    %4 = vector.load %arg3[%c0_7, %c0_8, %c0_9, %c0_10] : memref<1x4x10x8xf32, #tpu.memory_space<vmem>>, vector<1x4x10x8xf32>
    %5 = vector.shape_cast %4 : vector<1x4x10x8xf32> to vector<4x10x8xf32>
    %cst = arith.constant 0.353553385 : f32
    %6 = vector.broadcast %cst : f32 to vector<4x8x8xf32>
    %7 = arith.mulf %1, %6 : vector<4x8x8xf32>
    "tpu.trace_start"() <{level = 10 : i32, message = "htd,hsd->hts"}> : () -> ()
    %cst_11 = arith.constant dense<0.000000e+00> : vector<4x8x10xf32>
    %8 = tpu.matmul %7, %3, %cst_11 {dimension_numbers = #tpu.dot_dimension_numbers<[2], [2], [1], [1], [0, 0, 0, 1, 1, 1], [0], [0]>} : vector<4x8x8xf32>, vector<4x10x8xf32>, vector<4x8x10xf32> -> vector<4x8x10xf32>
    "tpu.trace_stop"() : () -> ()
    %cst_12 = arith.constant dense<0xFF800000> : vector<4x8xf32>
    %9 = vector.multi_reduction <maximumf>, %8, %cst_12 [2] : vector<4x8x10xf32> to vector<4x8xf32>
    %10 = vector.shape_cast %9 : vector<4x8xf32> to vector<4x8x1xf32>
    %11 = vector.broadcast %10 : vector<4x8x1xf32> to vector<4x8x10xf32>
    %12 = arith.subf %8, %11 : vector<4x8x10xf32>
    %13 = math.exp %12 : vector<4x8x10xf32>
    %cst_13 = arith.constant dense<0.000000e+00> : vector<4x8xf32>
    %14 = vector.multi_reduction <add>, %13, %cst_13 [2] : vector<4x8x10xf32> to vector<4x8xf32>
    %15 = vector.shape_cast %14 : vector<4x8xf32> to vector<4x8x1xf32>
    %16 = vector.broadcast %15 : vector<4x8x1xf32> to vector<4x8x10xf32>
    %17 = arith.divf %13, %16 : vector<4x8x10xf32>
    "tpu.trace_start"() <{level = 10 : i32, message = "hts,hsd->htd"}> : () -> ()
    %cst_14 = arith.constant dense<0.000000e+00> : vector<4x8x8xf32>
    %18 = tpu.matmul %17, %5, %cst_14 {dimension_numbers = #tpu.dot_dimension_numbers<[2], [1], [1], [2], [0, 0, 0, 1, 1, 2], [0], [0]>} : vector<4x8x10xf32>, vector<4x10x8xf32>, vector<4x8x8xf32> -> vector<4x8x8xf32>
    "tpu.trace_stop"() : () -> ()
    %cst_15 = arith.constant dense<0.000000e+00> : vector<8x10xf32>
    %19 = vector.multi_reduction <add>, %17, %cst_15 [0] : vector<4x8x10xf32> to vector<8x10xf32>
    %cst_16 = arith.constant 4.000000e+00 : f32
    %20 = vector.broadcast %cst_16 : f32 to vector<8x10xf32>
    %21 = arith.divf %19, %20 : vector<8x10xf32>
    %c0_17 = arith.constant 0 : index
    %c0_18 = arith.constant 0 : index
    %c0_19 = arith.constant 0 : index
    %c0_20 = arith.constant 0 : index
    %22 = vector.load %arg4[%c0_17, %c0_18, %c0_19, %c0_20] : memref<1x4x8x8xf32, #tpu.memory_space<vmem>>, vector<1x4x8x8xf32>
    %23 = vector.shape_cast %22 : vector<1x4x8x8xf32> to vector<4x8x8xf32>
    %24 = vector.shape_cast %18 : vector<4x8x8xf32> to vector<1x4x8x8xf32>
    tpu.vector_store %arg4[%c0_17, %c0_18, %c0_19, %c0_20], %24 {strides = array<i32>} : memref<1x4x8x8xf32, #tpu.memory_space<vmem>>, vector<1x4x8x8xf32>,
    %c0_21 = arith.constant 0 : index
    %c0_22 = arith.constant 0 : index
    %c0_23 = arith.constant 0 : index
    %25 = vector.load %arg5[%c0_21, %c0_22, %c0_23] : memref<1x8x10xf32, #tpu.memory_space<vmem>>, vector<1x8x10xf32>
    %26 = vector.shape_cast %25 : vector<1x8x10xf32> to vector<8x10xf32>
    %27 = vector.shape_cast %21 : vector<8x10xf32> to vector<1x8x10xf32>
    tpu.vector_store %arg5[%c0_21, %c0_22, %c0_23], %27 {strides = array<i32>} : memref<1x8x10xf32, #tpu.memory_space<vmem>>, vector<1x8x10xf32>,
    return
  }
  func.func @transform_0(%arg0: i32) -> (i32, i32, i32, i32) {
    %c0_i32 = arith.constant 0 : i32
    %c0_i32_0 = arith.constant 0 : i32
    %c0_i32_1 = arith.constant 0 : i32
    %c0_i32_2 = arith.constant 0 : i32
    return %arg0, %c0_i32, %c0_i32_0, %c0_i32_1 : i32, i32, i32, i32
  }
  func.func @transform_1(%arg0: i32) -> (i32, i32, i32, i32) {
    %c0_i32 = arith.constant 0 : i32
    %c0_i32_0 = arith.constant 0 : i32
    %c0_i32_1 = arith.constant 0 : i32
    %c0_i32_2 = arith.constant 0 : i32
    return %arg0, %c0_i32, %c0_i32_0, %c0_i32_1 : i32, i32, i32, i32
  }
  func.func @transform_2(%arg0: i32) -> (i32, i32, i32, i32) {
    %c0_i32 = arith.constant 0 : i32
    %c0_i32_0 = arith.constant 0 : i32
    %c0_i32_1 = arith.constant 0 : i32
    %c0_i32_2 = arith.constant 0 : i32
    return %arg0, %c0_i32, %c0_i32_0, %c0_i32_1 : i32, i32, i32, i32
  }
  func.func @transform_3(%arg0: i32) -> (i32, i32, i32, i32) {
    %c0_i32 = arith.constant 0 : i32
    %c0_i32_0 = arith.constant 0 : i32
    %c0_i32_1 = arith.constant 0 : i32
    %c0_i32_2 = arith.constant 0 : i32
    return %arg0, %c0_i32, %c0_i32_0, %c0_i32_1 : i32, i32, i32, i32
  }
  func.func @transform_4(%arg0: i32) -> (i32, i32, i32) {
    %c0_i32 = arith.constant 0 : i32
    %c0_i32_0 = arith.constant 0 : i32
    %c0_i32_1 = arith.constant 0 : i32
    return %arg0, %c0_i32, %c0_i32_0 : i32, i32, i32
  }
}

module attributes {stable_mosaic.version = 11 : i64} {
  func.func @_ln_kernel(%arg0: i32, %arg1: memref<16x32xf32, #tpu.memory_space<vmem>>, %arg2: memref<1x32xf32, #tpu.memory_space<vmem>>, %arg3: memref<1x32xf32, #tpu.memory_space<vmem>>, %arg4: memref<16x32xf32, #tpu.memory_space<vmem>>) attributes {dimension_semantics = [#tpu.dimension_semantics<parallel>], iteration_bounds = array<i64: 1>, scalar_prefetch = 0 : i64, scratch_operands = 0 : i64, tpu.core_type = #tpu.core_type<tc>, window_params = [{transform_indices = @transform_0, window_bounds = array<i64: 16, 32>}, {pipeline_mode = #tpu.pipeline_mode<synchronous>, transform_indices = @transform_1, window_bounds = array<i64: 1, 32>}, {pipeline_mode = #tpu.pipeline_mode<synchronous>, transform_indices = @transform_2, window_bounds = array<i64: 1, 32>}, {transform_indices = @transform_3, window_bounds = array<i64: 16, 32>}]} {
    %c0 = arith.constant 0 : index
    %c0_0 = arith.constant 0 : index
    %0 = vector.load %arg1[%c0, %c0_0] : memref<16x32xf32, #tpu.memory_space<vmem>>, vector<16x32xf32>
    %cst = arith.constant dense<0.000000e+00> : vector<16xf32>
    %1 = vector.multi_reduction <add>, %0, %cst [1] : vector<16x32xf32> to vector<16xf32>
    %2 = vector.shape_cast %1 : vector<16xf32> to vector<16x1xf32>
    %cst_1 = arith.constant 3.200000e+01 : f32
    %3 = vector.broadcast %cst_1 : f32 to vector<16x1xf32>
    %4 = arith.divf %2, %3 : vector<16x1xf32>
    %5 = vector.broadcast %4 : vector<16x1xf32> to vector<16x32xf32>
    %6 = arith.subf %0, %5 : vector<16x32xf32>
    %7 = vector.broadcast %4 : vector<16x1xf32> to vector<16x32xf32>
    %8 = arith.subf %0, %7 : vector<16x32xf32>
    %9 = arith.mulf %6, %8 : vector<16x32xf32>
    %cst_2 = arith.constant dense<0.000000e+00> : vector<16xf32>
    %10 = vector.multi_reduction <add>, %9, %cst_2 [1] : vector<16x32xf32> to vector<16xf32>
    %11 = vector.shape_cast %10 : vector<16xf32> to vector<16x1xf32>
    %cst_3 = arith.constant 3.200000e+01 : f32
    %12 = vector.broadcast %cst_3 : f32 to vector<16x1xf32>
    %13 = arith.divf %11, %12 : vector<16x1xf32>
    %14 = vector.broadcast %4 : vector<16x1xf32> to vector<16x32xf32>
    %15 = arith.subf %0, %14 : vector<16x32xf32>
    %cst_4 = arith.constant 9.99999974E-6 : f32
    %16 = vector.broadcast %cst_4 : f32 to vector<16x1xf32>
    %17 = arith.addf %13, %16 : vector<16x1xf32>
    %18 = math.rsqrt %17 : vector<16x1xf32>
    %19 = vector.broadcast %18 : vector<16x1xf32> to vector<16x32xf32>
    %20 = arith.mulf %15, %19 : vector<16x32xf32>
    %c0_5 = arith.constant 0 : index
    %c0_6 = arith.constant 0 : index
    %21 = vector.load %arg2[%c0_5, %c0_6] : memref<1x32xf32, #tpu.memory_space<vmem>>, vector<1x32xf32>
    %22 = vector.broadcast %21 : vector<1x32xf32> to vector<16x32xf32>
    %23 = arith.mulf %20, %22 : vector<16x32xf32>
    %c0_7 = arith.constant 0 : index
    %c0_8 = arith.constant 0 : index
    %24 = vector.load %arg3[%c0_7, %c0_8] : memref<1x32xf32, #tpu.memory_space<vmem>>, vector<1x32xf32>
    %25 = vector.broadcast %24 : vector<1x32xf32> to vector<16x32xf32>
    %26 = arith.addf %23, %25 : vector<16x32xf32>
    %c0_9 = arith.constant 0 : index
    %c0_10 = arith.constant 0 : index
    %27 = vector.load %arg4[%c0_9, %c0_10] : memref<16x32xf32, #tpu.memory_space<vmem>>, vector<16x32xf32>
    tpu.vector_store %arg4[%c0_9, %c0_10], %26 {strides = array<i32>} : memref<16x32xf32, #tpu.memory_space<vmem>>, vector<16x32xf32>,
    return
  }
  func.func @transform_0(%arg0: i32) -> (i32, i32) {
    %c0_i32 = arith.constant 0 : i32
    %c0_i32_0 = arith.constant 0 : i32
    return %arg0, %c0_i32 : i32, i32
  }
  func.func @transform_1(%arg0: i32) -> (i32, i32) {
    %c0_i32 = arith.constant 0 : i32
    %c0_i32_0 = arith.constant 0 : i32
    %c0_i32_1 = arith.constant 0 : i32
    return %c0_i32, %c0_i32_0 : i32, i32
  }
  func.func @transform_2(%arg0: i32) -> (i32, i32) {
    %c0_i32 = arith.constant 0 : i32
    %c0_i32_0 = arith.constant 0 : i32
    %c0_i32_1 = arith.constant 0 : i32
    return %c0_i32, %c0_i32_0 : i32, i32
  }
  func.func @transform_3(%arg0: i32) -> (i32, i32) {
    %c0_i32 = arith.constant 0 : i32
    %c0_i32_0 = arith.constant 0 : i32
    return %arg0, %c0_i32 : i32, i32
  }
}

module attributes {stable_mosaic.version = 11 : i64} {
  func.func @_ffn_kernel(%arg0: i32, %arg1: memref<16x32xf32, #tpu.memory_space<vmem>>, %arg2: memref<32x64xf32, #tpu.memory_space<vmem>>, %arg3: memref<1x64xf32, #tpu.memory_space<vmem>>, %arg4: memref<64x32xf32, #tpu.memory_space<vmem>>, %arg5: memref<1x32xf32, #tpu.memory_space<vmem>>, %arg6: memref<16x32xf32, #tpu.memory_space<vmem>>) attributes {dimension_semantics = [#tpu.dimension_semantics<parallel>], iteration_bounds = array<i64: 1>, scalar_prefetch = 0 : i64, scratch_operands = 0 : i64, tpu.core_type = #tpu.core_type<tc>, window_params = [{transform_indices = @transform_0, window_bounds = array<i64: 16, 32>}, {pipeline_mode = #tpu.pipeline_mode<synchronous>, transform_indices = @transform_1, window_bounds = array<i64: 32, 64>}, {pipeline_mode = #tpu.pipeline_mode<synchronous>, transform_indices = @transform_2, window_bounds = array<i64: 1, 64>}, {pipeline_mode = #tpu.pipeline_mode<synchronous>, transform_indices = @transform_3, window_bounds = array<i64: 64, 32>}, {pipeline_mode = #tpu.pipeline_mode<synchronous>, transform_indices = @transform_4, window_bounds = array<i64: 1, 32>}, {transform_indices = @transform_5, window_bounds = array<i64: 16, 32>}]} {
    %c0 = arith.constant 0 : index
    %c0_0 = arith.constant 0 : index
    %0 = vector.load %arg1[%c0, %c0_0] : memref<16x32xf32, #tpu.memory_space<vmem>>, vector<16x32xf32>
    %c0_1 = arith.constant 0 : index
    %c0_2 = arith.constant 0 : index
    %1 = vector.load %arg2[%c0_1, %c0_2] : memref<32x64xf32, #tpu.memory_space<vmem>>, vector<32x64xf32>
    %cst = arith.constant dense<0.000000e+00> : vector<16x64xf32>
    %2 = tpu.matmul %0, %1, %cst {dimension_numbers = #tpu.dot_dimension_numbers<[1], [0], [0], [1], [0, 0, 1, 1], [], []>} : vector<16x32xf32>, vector<32x64xf32>, vector<16x64xf32> -> vector<16x64xf32>
    %c0_3 = arith.constant 0 : index
    %c0_4 = arith.constant 0 : index
    %3 = vector.load %arg3[%c0_3, %c0_4] : memref<1x64xf32, #tpu.memory_space<vmem>>, vector<1x64xf32>
    %4 = vector.broadcast %3 : vector<1x64xf32> to vector<16x64xf32>
    %5 = arith.addf %2, %4 : vector<16x64xf32>
    %cst_5 = arith.constant 0.000000e+00 : f32
    %6 = vector.broadcast %cst_5 : f32 to vector<16x64xf32>
    %7 = arith.maximumf %5, %6 : vector<16x64xf32>
    %c0_6 = arith.constant 0 : index
    %c0_7 = arith.constant 0 : index
    %8 = vector.load %arg4[%c0_6, %c0_7] : memref<64x32xf32, #tpu.memory_space<vmem>>, vector<64x32xf32>
    %cst_8 = arith.constant dense<0.000000e+00> : vector<16x32xf32>
    %9 = tpu.matmul %7, %8, %cst_8 {dimension_numbers = #tpu.dot_dimension_numbers<[1], [0], [0], [1], [0, 0, 1, 1], [], []>} : vector<16x64xf32>, vector<64x32xf32>, vector<16x32xf32> -> vector<16x32xf32>
    %c0_9 = arith.constant 0 : index
    %c0_10 = arith.constant 0 : index
    %10 = vector.load %arg5[%c0_9, %c0_10] : memref<1x32xf32, #tpu.memory_space<vmem>>, vector<1x32xf32>
    %11 = vector.broadcast %10 : vector<1x32xf32> to vector<16x32xf32>
    %12 = arith.addf %9, %11 : vector<16x32xf32>
    %c0_11 = arith.constant 0 : index
    %c0_12 = arith.constant 0 : index
    %13 = vector.load %arg6[%c0_11, %c0_12] : memref<16x32xf32, #tpu.memory_space<vmem>>, vector<16x32xf32>
    tpu.vector_store %arg6[%c0_11, %c0_12], %12 {strides = array<i32>} : memref<16x32xf32, #tpu.memory_space<vmem>>, vector<16x32xf32>,
    return
  }
  func.func @transform_0(%arg0: i32) -> (i32, i32) {
    %c0_i32 = arith.constant 0 : i32
    %c0_i32_0 = arith.constant 0 : i32
    return %arg0, %c0_i32 : i32, i32
  }
  func.func @transform_1(%arg0: i32) -> (i32, i32) {
    %c0_i32 = arith.constant 0 : i32
    %c0_i32_0 = arith.constant 0 : i32
    %c0_i32_1 = arith.constant 0 : i32
    return %c0_i32, %c0_i32_0 : i32, i32
  }
  func.func @transform_2(%arg0: i32) -> (i32, i32) {
    %c0_i32 = arith.constant 0 : i32
    %c0_i32_0 = arith.constant 0 : i32
    %c0_i32_1 = arith.constant 0 : i32
    return %c0_i32, %c0_i32_0 : i32, i32
  }
  func.func @transform_3(%arg0: i32) -> (i32, i32) {
    %c0_i32 = arith.constant 0 : i32
    %c0_i32_0 = arith.constant 0 : i32
    %c0_i32_1 = arith.constant 0 : i32
    return %c0_i32, %c0_i32_0 : i32, i32
  }
  func.func @transform_4(%arg0: i32) -> (i32, i32) {
    %c0_i32 = arith.constant 0 : i32
    %c0_i32_0 = arith.constant 0 : i32
    %c0_i32_1 = arith.constant 0 : i32
    return %c0_i32, %c0_i32_0 : i32, i32
  }
  func.func @transform_5(%arg0: i32) -> (i32, i32) {
    %c0_i32 = arith.constant 0 : i32
    %c0_i32_0 = arith.constant 0 : i32
    return %arg0, %c0_i32 : i32, i32
  }
}

</mosaic_0001>

<llo_original>
// kernel: transformer_decoder_forward.23
$region0: #{transformer_decoder_forward.23}
  #allocation0 [shape = 'u32[]', space=smem, size = 0x4, offset = 0x4, fixed_abs, tag = 'smem constant byte address 0x4 - core index']
  #allocation1 [shape = 'u32[144,128]{1,0:T(1,128)}', space=vmem, size = 0x12000, scoped, tag = 'internal scratch']
  #allocation2 [shape = 'f32[16,96]{1,0:T(8,128)}', space=vmem, size = 0x2000, scoped, tag = 'scratch operand']
  %s0 = inlined_call_operand.vmem [shape: f32[16,32], index: 0, kind: input, shape index: {}]
  %s1 = inlined_call_operand.vmem [shape: f32[32,96], index: 1, kind: input, shape index: {}]
  %s2 = inlined_call_operand.vmem [shape: f32[1,96], index: 2, kind: input, shape index: {}]
  %s3 = inlined_call_operand.vmem [shape: f32[16,96], index: 3, kind: output, shape index: {}]
  %s4 = sld [smem:[#allocation0]]
  $region30: #{transformer_decoder_forward.23} parent=0
    _
  %s6 = ssub.s32 1, %s4
  %s7 = scalar_select 0, %s6, %s4
  // Predicated region
  $region2: #{transformer_decoder_forward.23} parent=0 // pred_check
    _
  $region3: #{transformer_decoder_forward.23} parent=0 // pred_check_branch
    %9 = sbr.rel (0) target = $region5
  $region4: #{transformer_decoder_forward.23} parent=0 // pred_region
    _
  $region5: #{transformer_decoder_forward.23} parent=0 // pred_fallthru
    _
  // Predicated region
  $region6: #{transformer_decoder_forward.23} parent=0 // pred_check
    _
  $region7: #{transformer_decoder_forward.23} parent=0 // pred_check_branch
    %11 = sbr.rel (0) target = $region9
  $region8: #{transformer_decoder_forward.23} parent=0 // pred_region
    _
  $region9: #{transformer_decoder_forward.23} parent=0 // pred_fallthru
    _
  // Predicated region
  $region10: #{transformer_decoder_forward.23} parent=0 // pred_check
    _
  $region11: #{transformer_decoder_forward.23} parent=0 // pred_check_branch
    %13 = sbr.rel (0) target = $region13
  $region12: #{transformer_decoder_forward.23} parent=0 // pred_region
    _
  $region13: #{transformer_decoder_forward.23} parent=0 // pred_fallthru
    _
  %p14 = scmp.eq.s32.totalorder 0, 0
  // Predicated region
  $region14: #{transformer_decoder_forward.23} parent=0 // pred_check
    %p15 = pneg %p14
  $region15: #{transformer_decoder_forward.23} parent=0 // pred_check_branch
    %17 = sbr.rel (%p15) target = $region17
  $region16: #{transformer_decoder_forward.23} parent=0 // pred_region
    %vm18 = vcmask 785408
    %19 = vst.msk [vmem:[#allocation2] sm:$0xff] %vm18, 0.0
    %20 = vst.msk [vmem:[#allocation2 + $0x8] sm:$0xff] %vm18, 0.0
  $region17: #{transformer_decoder_forward.23} parent=0 // pred_fallthru
    _
  %v21 = vld [vmem:[#allocation2] sm:$0xff]
  %v22 = vld [vmem:[#allocation2 + $0x8] sm:$0xff]
  %v23 = vld [vmem:[%s0] sm:$0xff]
  %v24 = vld [vmem:[%s0 + $0x8] sm:$0xff]
  %v25 = vld [vmem:[%s1] sm:$0xff]
  %v26 = vld [vmem:[%s1 + $0x8] sm:$0xff]
  %v27 = vld [vmem:[%s1 + $0x10] sm:$0xff]
  %v28 = vld [vmem:[%s1 + $0x18] sm:$0xff]
  %vm29 = vcmask 261120
  %v31 = vsel %vm29, %v23, 0
  %v34 = vsel %vm29, %v24, 0
  %36 = vmatprep.subr.mxu0 0.0
  %37 = vmatpush1.msra.mxu0 %v25
  %38 = vmatprep.subr.mxu0 0.0
  %39 = vmatpush1.msra.mxu0 %v26
  %40 = vmatprep.subr.mxu0 0.0
  %41 = vmatpush1.msra.mxu0 %v27
  %42 = vmatprep.subr.mxu0 0.0
  %43 = vmatpush1.msra.mxu0 %v28
  %44 = vmatprep.subr.mxu0 0.0
  %45 = vmatpush1.msra.mxu0 0.0
  %46 = vmatprep.subr.mxu0 0.0
  %47 = vmatpush1.msra.mxu0 0.0
  %48 = vmatprep.subr.mxu0 0.0
  %49 = vmatpush1.msra.mxu0 0.0
  %50 = vmatprep.subr.mxu0 0.0
  %51 = vmatpush1.msra.mxu0 0.0
  %52 = vmatprep.subr.mxu0 0.0
  %53 = vmatpush1.msra.mxu0 0.0
  %54 = vmatprep.subr.mxu0 0.0
  %55 = vmatpush1.msra.mxu0 0.0
  %56 = vmatprep.subr.mxu0 0.0
  %57 = vmatpush1.msra.mxu0 0.0
  %58 = vmatprep.subr.mxu0 0.0
  %59 = vmatpush1.msra.mxu0 0.0
  %60 = vmatprep.subr.mxu0 0.0
  %61 = vmatpush1.msra.mxu0 0.0
  %62 = vmatprep.subr.mxu0 0.0
  %63 = vmatpush1.msra.mxu0 0.0
  %64 = vmatprep.subr.mxu0 0.0
  %65 = vmatpush1.msra.mxu0 0.0
  %66 = vmatprep.subr.mxu0 0.0
  %67 = vmatpush1.msra.mxu0 0.0
  %68 = vmatprep.subr.mxu0 0.0
  %69 = vmatpush1.msra.mxu0 0.0
  %70 = vmatprep.subr.mxu0 0.0
  %71 = vmatpush1.msra.mxu0 0.0
  %72 = vmatprep.subr.mxu0 0.0
  %73 = vmatpush1.msra.mxu0 0.0
  %74 = vmatprep.subr.mxu0 0.0
  %75 = vmatpush1.msra.mxu0 0.0
  %76 = vmatprep.subr.mxu0 0.0
  %77 = vmatpush1.msra.mxu0 0.0
  %78 = vmatprep.subr.mxu0 0.0
  %79 = vmatpush1.msra.mxu0 0.0
  %80 = vmatprep.subr.mxu0 0.0
  %81 = vmatpush1.msra.mxu0 0.0
  %82 = vmatprep.subr.mxu0 0.0
  %83 = vmatpush1.msra.mxu0 0.0
  %84 = vmatprep.subr.mxu0 0.0
  %85 = vmatpush1.msra.mxu0 0.0
  %86 = vmatprep.subr.mxu0 0.0
  %87 = vmatpush1.msra.mxu0 0.0
  %88 = vmatprep.subr.mxu0 0.0
  %89 = vmatpush1.msra.mxu0 0.0
  %90 = vmatprep.subr.mxu0 0.0
  %91 = vmatpush1.msra.mxu0 0.0
  %92 = vmatprep.subr.mxu0 0.0
  %93 = vmatpush1.msra.mxu0 0.0
  %94 = vmatprep.subr.mxu0 0.0
  %95 = vmatpush1.msra.mxu0 0.0
  %96 = vmatprep.subr.mxu0 0.0
  %97 = vmatpush1.msra.mxu0 0.0
  %98 = vmatprep.subr.mxu0 0.0
  %99 = vmatpush1.msra.mxu0 0.0
  %100 = vmatprep.mubr.f32.mxu0 0.0
  %101 = vmatmul.mubr.f32.gmra.mrb[0].mxu0 %v31
  %v102 = vpop.f32.mrb[0].mxu0
  %v103 = vadd.f32 0.0, %v102
  %v104 = vpop.f32.mrb[0].mxu0
  %105 = vmatprep.mubr.f32.mxu0 0.0
  %106 = vmatmul.mubr.f32.gmra.mrb[0].mxu0 %v34
  %v107 = vpop.f32.mrb[0].mxu0
  %v108 = vadd.f32 0.0, %v107
  %v109 = vpop.f32.mrb[0].mxu0
  %110 = vdwg.mxu0
  %v111 = vadd.f32 %v21, %v103
  %v112 = vadd.f32 %v22, %v108
  %vm113 = vcmask 785408
  %114 = vst.msk [vmem:[#allocation2] sm:$0xff] %vm113, %v111
  %115 = vst.msk [vmem:[#allocation2 + $0x8] sm:$0xff] %vm113, %v112
  // Predicated region
  $region18: #{transformer_decoder_forward.23} parent=0 // pred_check
    %p116 = pneg %p14
  $region19: #{transformer_decoder_forward.23} parent=0 // pred_check_branch
    %118 = sbr.rel (%p116) target = $region21
  $region20: #{transformer_decoder_forward.23} parent=0 // pred_region
    %v119 = vld [vmem:[#allocation2] sm:$0xff]
    %v120 = vld [vmem:[#allocation2 + $0x8] sm:$0xff]
    %v121 = vld [vmem:[%s2] sm:$0x1]
    %v123 = vlaneseq
    %v124 = vshrl.u32 %v123, 7
    %v125 = vsub.s32 0, %v124
    %v126 = vrot.slane %v121, %v125
    %v128 = vadd.f32 %v119, %v126
    %v129 = vadd.f32 %v120, %v126
    %130 = vst.msk [vmem:[%s3] sm:$0xff] %vm113, %v128
    %131 = vst.msk [vmem:[%s3 + $0x8] sm:$0xff] %vm113, %v129
  $region21: #{transformer_decoder_forward.23} parent=0 // pred_fallthru
    _
  // Predicated region
  $region22: #{transformer_decoder_forward.23} parent=0 // pred_check
    _
  $region23: #{transformer_decoder_forward.23} parent=0 // pred_check_branch
    %133 = sbr.rel (0) target = $region25
  $region24: #{transformer_decoder_forward.23} parent=0 // pred_region
    _
  $region25: #{transformer_decoder_forward.23} parent=0 // pred_fallthru
    _
  // Predicated region
  $region26: #{transformer_decoder_forward.23} parent=0 // pred_check
    _
  $region27: #{transformer_decoder_forward.23} parent=0 // pred_check_branch
    %135 = sbr.rel (0) target = $region29
  $region28: #{transformer_decoder_forward.23} parent=0 // pred_region
    _
  $region29: #{transformer_decoder_forward.23} parent=0 // pred_fallthru
    _

// kernel: transformer_decoder_forward.26
$region0: #{transformer_decoder_forward.26}
  #allocation0 [shape = 'u32[]', space=smem, size = 0x4, offset = 0x4, fixed_abs, tag = 'smem constant byte address 0x4 - core index']
  #allocation1 [shape = 'u32[144,128]{1,0:T(1,128)}', space=vmem, size = 0x12000, scoped, tag = 'internal scratch']
  %s0 = inlined_call_operand.vmem [shape: f32[16,32], index: 0, kind: input, shape index: {}]
  %s1 = inlined_call_operand.vmem [shape: f32[16,32], index: 1, kind: input, shape index: {}]
  %s2 = inlined_call_operand.vmem [shape: f32[1,32], index: 2, kind: input, shape index: {}]
  %s3 = inlined_call_operand.vmem [shape: f32[1,32], index: 3, kind: input, shape index: {}]
  %s4 = inlined_call_operand.vmem [shape: f32[16,32], index: 4, kind: output, shape index: {}]
  %s5 = sld [smem:[#allocation0]]
  $region26: #{transformer_decoder_forward.26} parent=0
    _
  %s7 = ssub.s32 1, %s5
  %s8 = scalar_select 0, %s7, %s5
  // Predicated region
  $region2: #{transformer_decoder_forward.26} parent=0 // pred_check
    _
  $region3: #{transformer_decoder_forward.26} parent=0 // pred_check_branch
    %10 = sbr.rel (0) target = $region5
  $region4: #{transformer_decoder_forward.26} parent=0 // pred_region
    _
  $region5: #{transformer_decoder_forward.26} parent=0 // pred_fallthru
    _
  // Predicated region
  $region6: #{transformer_decoder_forward.26} parent=0 // pred_check
    _
  $region7: #{transformer_decoder_forward.26} parent=0 // pred_check_branch
    %12 = sbr.rel (0) target = $region9
  $region8: #{transformer_decoder_forward.26} parent=0 // pred_region
    _
  $region9: #{transformer_decoder_forward.26} parent=0 // pred_fallthru
    _
  // Predicated region
  $region10: #{transformer_decoder_forward.26} parent=0 // pred_check
    _
  $region11: #{transformer_decoder_forward.26} parent=0 // pred_check_branch
    %14 = sbr.rel (0) target = $region13
  $region12: #{transformer_decoder_forward.26} parent=0 // pred_region
    _
  $region13: #{transformer_decoder_forward.26} parent=0 // pred_fallthru
    _
  // Predicated region
  $region14: #{transformer_decoder_forward.26} parent=0 // pred_check
    _
  $region15: #{transformer_decoder_forward.26} parent=0 // pred_check_branch
    %16 = sbr.rel (0) target = $region17
  $region16: #{transformer_decoder_forward.26} parent=0 // pred_region
    _
  $region17: #{transformer_decoder_forward.26} parent=0 // pred_fallthru
    _
  %v17 = vld [vmem:[%s0] sm:$0xff]
  %v18 = vld [vmem:[%s0 + $0x8] sm:$0xff]
  %v19 = vld [vmem:[%s1] sm:$0xff]
  %v20 = vld [vmem:[%s1 + $0x8] sm:$0xff]
  %v21 = vadd.f32 %v17, %v19
  %v22 = vadd.f32 %v18, %v20
  %vm23 = vcmask 261120
  %v24 = vsel %vm23, %v21, 0.0
  %25 = vadd.xlane.f32.xlu0 %v24
  %v26 = vpop.xlane.xlu0 %25
  %v27 = vsel %vm23, %v22, 0.0
  %28 = vadd.xlane.f32.xlu0 %v27
  %v29 = vpop.xlane.xlu0 %28
  %v30 = vrcp.pop 32.0
  %v31 = vmul.f32 %v26, %v30
  %v32 = vmul.f32 %v29, %v30
  %v33 = vsub.f32 %v21, %v31
  %v34 = vsub.f32 %v22, %v32
  %v35 = vmul.f32 %v33, %v33
  %v36 = vmul.f32 %v34, %v34
  %v37 = vsel %vm23, %v35, 0.0
  %38 = vadd.xlane.f32.xlu0 %v37
  %v39 = vpop.xlane.xlu0 %38
  %v40 = vsel %vm23, %v36, 0.0
  %41 = vadd.xlane.f32.xlu0 %v40
  %v42 = vpop.xlane.xlu0 %41
  %v43 = vmul.f32 %v39, %v30
  %v44 = vmul.f32 %v42, %v30
  %v45 = vadd.f32 %v43, 1e-05
  %v46 = vadd.f32 %v44, 1e-05
  %v47 = vrsqrt.pop %v45
  %v48 = vrsqrt.pop %v46
  %v49 = vmul.f32 %v33, %v47
  %v50 = vmul.f32 %v34, %v48
  %v51 = vld [vmem:[%s2] sm:$0x1]
  %v53 = vlaneseq
  %v54 = vshrl.u32 %v53, 7
  %v55 = vsub.s32 0, %v54
  %v56 = vrot.slane %v51, %v55
  %v58 = vmul.f32 %v49, %v56
  %v59 = vmul.f32 %v50, %v56
  %v60 = vld [vmem:[%s3] sm:$0x1]
  %v62 = vlaneseq
  %v63 = vshrl.u32 %v62, 7
  %v64 = vsub.s32 0, %v63
  %v65 = vrot.slane %v60, %v64
  %v67 = vadd.f32 %v58, %v65
  %v68 = vadd.f32 %v59, %v65
  %69 = vst.msk [vmem:[%s4] sm:$0xff] %vm23, %v67
  %70 = vst.msk [vmem:[%s4 + $0x8] sm:$0xff] %vm23, %v68
  // Predicated region
  $region18: #{transformer_decoder_forward.26} parent=0 // pred_check
    _
  $region19: #{transformer_decoder_forward.26} parent=0 // pred_check_branch
    %72 = sbr.rel (0) target = $region21
  $region20: #{transformer_decoder_forward.26} parent=0 // pred_region
    _
  $region21: #{transformer_decoder_forward.26} parent=0 // pred_fallthru
    _
  // Predicated region
  $region22: #{transformer_decoder_forward.26} parent=0 // pred_check
    _
  $region23: #{transformer_decoder_forward.26} parent=0 // pred_check_branch
    %74 = sbr.rel (0) target = $region25
  $region24: #{transformer_decoder_forward.26} parent=0 // pred_region
    _
  $region25: #{transformer_decoder_forward.26} parent=0 // pred_fallthru
    _

// kernel: transformer_decoder_forward.25
$region0: #{transformer_decoder_forward.25}
  #allocation0 [shape = 'u32[]', space=smem, size = 0x4, offset = 0x4, fixed_abs, tag = 'smem constant byte address 0x4 - core index']
  #allocation1 [shape = 'u32[144,128]{1,0:T(1,128)}', space=vmem, size = 0x12000, scoped, tag = 'internal scratch']
  #allocation2 [shape = 'f32[16,32]{1,0:T(8,128)}', space=vmem, size = 0x2000, scoped, tag = 'scratch operand']
  %s0 = inlined_call_operand.vmem [shape: f32[16,32], index: 0, kind: input, shape index: {}]
  %s1 = inlined_call_operand.vmem [shape: f32[32,32], index: 1, kind: input, shape index: {}]
  %s2 = inlined_call_operand.vmem [shape: f32[1,32], index: 2, kind: input, shape index: {}]
  %s3 = inlined_call_operand.vmem [shape: f32[16,32], index: 3, kind: output, shape index: {}]
  %s4 = sld [smem:[#allocation0]]
  $region30: #{transformer_decoder_forward.25} parent=0
    _
  %s6 = ssub.s32 1, %s4
  %s7 = scalar_select 0, %s6, %s4
  // Predicated region
  $region2: #{transformer_decoder_forward.25} parent=0 // pred_check
    _
  $region3: #{transformer_decoder_forward.25} parent=0 // pred_check_branch
    %9 = sbr.rel (0) target = $region5
  $region4: #{transformer_decoder_forward.25} parent=0 // pred_region
    _
  $region5: #{transformer_decoder_forward.25} parent=0 // pred_fallthru
    _
  // Predicated region
  $region6: #{transformer_decoder_forward.25} parent=0 // pred_check
    _
  $region7: #{transformer_decoder_forward.25} parent=0 // pred_check_branch
    %11 = sbr.rel (0) target = $region9
  $region8: #{transformer_decoder_forward.25} parent=0 // pred_region
    _
  $region9: #{transformer_decoder_forward.25} parent=0 // pred_fallthru
    _
  // Predicated region
  $region10: #{transformer_decoder_forward.25} parent=0 // pred_check
    _
  $region11: #{transformer_decoder_forward.25} parent=0 // pred_check_branch
    %13 = sbr.rel (0) target = $region13
  $region12: #{transformer_decoder_forward.25} parent=0 // pred_region
    _
  $region13: #{transformer_decoder_forward.25} parent=0 // pred_fallthru
    _
  %p14 = scmp.eq.s32.totalorder 0, 0
  // Predicated region
  $region14: #{transformer_decoder_forward.25} parent=0 // pred_check
    %p15 = pneg %p14
  $region15: #{transformer_decoder_forward.25} parent=0 // pred_check_branch
    %17 = sbr.rel (%p15) target = $region17
  $region16: #{transformer_decoder_forward.25} parent=0 // pred_region
    %vm18 = vcmask 261120
    %19 = vst.msk [vmem:[#allocation2] sm:$0xff] %vm18, 0.0
    %20 = vst.msk [vmem:[#allocation2 + $0x8] sm:$0xff] %vm18, 0.0
  $region17: #{transformer_decoder_forward.25} parent=0 // pred_fallthru
    _
  %v21 = vld [vmem:[#allocation2] sm:$0xff]
  %v22 = vld [vmem:[#allocation2 + $0x8] sm:$0xff]
  %v23 = vld [vmem:[%s0] sm:$0xff]
  %v24 = vld [vmem:[%s0 + $0x8] sm:$0xff]
  %v25 = vld [vmem:[%s1] sm:$0xff]
  %v26 = vld [vmem:[%s1 + $0x8] sm:$0xff]
  %v27 = vld [vmem:[%s1 + $0x10] sm:$0xff]
  %v28 = vld [vmem:[%s1 + $0x18] sm:$0xff]
  %vm29 = vcmask 261120
  %v31 = vsel %vm29, %v23, 0
  %v34 = vsel %vm29, %v24, 0
  %36 = vmatprep.subr.mxu0 0.0
  %37 = vmatpush1.msra.mxu0 %v25
  %38 = vmatprep.subr.mxu0 0.0
  %39 = vmatpush1.msra.mxu0 %v26
  %40 = vmatprep.subr.mxu0 0.0
  %41 = vmatpush1.msra.mxu0 %v27
  %42 = vmatprep.subr.mxu0 0.0
  %43 = vmatpush1.msra.mxu0 %v28
  %44 = vmatprep.subr.mxu0 0.0
  %45 = vmatpush1.msra.mxu0 0.0
  %46 = vmatprep.subr.mxu0 0.0
  %47 = vmatpush1.msra.mxu0 0.0
  %48 = vmatprep.subr.mxu0 0.0
  %49 = vmatpush1.msra.mxu0 0.0
  %50 = vmatprep.subr.mxu0 0.0
  %51 = vmatpush1.msra.mxu0 0.0
  %52 = vmatprep.subr.mxu0 0.0
  %53 = vmatpush1.msra.mxu0 0.0
  %54 = vmatprep.subr.mxu0 0.0
  %55 = vmatpush1.msra.mxu0 0.0
  %56 = vmatprep.subr.mxu0 0.0
  %57 = vmatpush1.msra.mxu0 0.0
  %58 = vmatprep.subr.mxu0 0.0
  %59 = vmatpush1.msra.mxu0 0.0
  %60 = vmatprep.subr.mxu0 0.0
  %61 = vmatpush1.msra.mxu0 0.0
  %62 = vmatprep.subr.mxu0 0.0
  %63 = vmatpush1.msra.mxu0 0.0
  %64 = vmatprep.subr.mxu0 0.0
  %65 = vmatpush1.msra.mxu0 0.0
  %66 = vmatprep.subr.mxu0 0.0
  %67 = vmatpush1.msra.mxu0 0.0
  %68 = vmatprep.subr.mxu0 0.0
  %69 = vmatpush1.msra.mxu0 0.0
  %70 = vmatprep.subr.mxu0 0.0
  %71 = vmatpush1.msra.mxu0 0.0
  %72 = vmatprep.subr.mxu0 0.0
  %73 = vmatpush1.msra.mxu0 0.0
  %74 = vmatprep.subr.mxu0 0.0
  %75 = vmatpush1.msra.mxu0 0.0
  %76 = vmatprep.subr.mxu0 0.0
  %77 = vmatpush1.msra.mxu0 0.0
  %78 = vmatprep.subr.mxu0 0.0
  %79 = vmatpush1.msra.mxu0 0.0
  %80 = vmatprep.subr.mxu0 0.0
  %81 = vmatpush1.msra.mxu0 0.0
  %82 = vmatprep.subr.mxu0 0.0
  %83 = vmatpush1.msra.mxu0 0.0
  %84 = vmatprep.subr.mxu0 0.0
  %85 = vmatpush1.msra.mxu0 0.0
  %86 = vmatprep.subr.mxu0 0.0
  %87 = vmatpush1.msra.mxu0 0.0
  %88 = vmatprep.subr.mxu0 0.0
  %89 = vmatpush1.msra.mxu0 0.0
  %90 = vmatprep.subr.mxu0 0.0
  %91 = vmatpush1.msra.mxu0 0.0
  %92 = vmatprep.subr.mxu0 0.0
  %93 = vmatpush1.msra.mxu0 0.0
  %94 = vmatprep.subr.mxu0 0.0
  %95 = vmatpush1.msra.mxu0 0.0
  %96 = vmatprep.subr.mxu0 0.0
  %97 = vmatpush1.msra.mxu0 0.0
  %98 = vmatprep.subr.mxu0 0.0
  %99 = vmatpush1.msra.mxu0 0.0
  %100 = vmatprep.mubr.f32.mxu0 0.0
  %101 = vmatmul.mubr.f32.gmra.mrb[0].mxu0 %v31
  %v102 = vpop.f32.mrb[0].mxu0
  %v103 = vadd.f32 0.0, %v102
  %v104 = vpop.f32.mrb[0].mxu0
  %105 = vmatprep.mubr.f32.mxu0 0.0
  %106 = vmatmul.mubr.f32.gmra.mrb[0].mxu0 %v34
  %v107 = vpop.f32.mrb[0].mxu0
  %v108 = vadd.f32 0.0, %v107
  %v109 = vpop.f32.mrb[0].mxu0
  %110 = vdwg.mxu0
  %v111 = vadd.f32 %v21, %v103
  %v112 = vadd.f32 %v22, %v108
  %113 = vst.msk [vmem:[#allocation2] sm:$0xff] %vm29, %v111
  %114 = vst.msk [vmem:[#allocation2 + $0x8] sm:$0xff] %vm29, %v112
  // Predicated region
  $region18: #{transformer_decoder_forward.25} parent=0 // pred_check
    %p115 = pneg %p14
  $region19: #{transformer_decoder_forward.25} parent=0 // pred_check_branch
    %117 = sbr.rel (%p115) target = $region21
  $region20: #{transformer_decoder_forward.25} parent=0 // pred_region
    %v118 = vld [vmem:[#allocation2] sm:$0xff]
    %v119 = vld [vmem:[#allocation2 + $0x8] sm:$0xff]
    %v120 = vld [vmem:[%s2] sm:$0x1]
    %v122 = vlaneseq
    %v123 = vshrl.u32 %v122, 7
    %v124 = vsub.s32 0, %v123
    %v125 = vrot.slane %v120, %v124
    %v127 = vadd.f32 %v118, %v125
    %v128 = vadd.f32 %v119, %v125
    %129 = vst.msk [vmem:[%s3] sm:$0xff] %vm29, %v127
    %130 = vst.msk [vmem:[%s3 + $0x8] sm:$0xff] %vm29, %v128
  $region21: #{transformer_decoder_forward.25} parent=0 // pred_fallthru
    _
  // Predicated region
  $region22: #{transformer_decoder_forward.25} parent=0 // pred_check
    _
  $region23: #{transformer_decoder_forward.25} parent=0 // pred_check_branch
    %132 = sbr.rel (0) target = $region25
  $region24: #{transformer_decoder_forward.25} parent=0 // pred_region
    _
  $region25: #{transformer_decoder_forward.25} parent=0 // pred_fallthru
    _
  // Predicated region
  $region26: #{transformer_decoder_forward.25} parent=0 // pred_check
    _
  $region27: #{transformer_decoder_forward.25} parent=0 // pred_check_branch
    %134 = sbr.rel (0) target = $region29
  $region28: #{transformer_decoder_forward.25} parent=0 // pred_region
    _
  $region29: #{transformer_decoder_forward.25} parent=0 // pred_fallthru
    _

// kernel: transformer_decoder_forward.24
$region0: #{transformer_decoder_forward.24}
  #allocation0 [shape = 'u32[]', space=smem, size = 0x4, offset = 0x4, fixed_abs, tag = 'smem constant byte address 0x4 - core index']
  #allocation1 [shape = 'u32[144,128]{1,0:T(1,128)}', space=vmem, size = 0x12000, scoped, tag = 'internal scratch']
  %s0 = inlined_call_operand.vmem [shape: f32[2,4,8,8], index: 0, kind: input, shape index: {}]
  %s1 = inlined_call_operand.vmem [shape: f32[2,4,8,8], index: 1, kind: input, shape index: {}]
  %s2 = inlined_call_operand.vmem [shape: f32[2,4,8,8], index: 2, kind: input, shape index: {}]
  %s3 = inlined_call_operand.vmem [shape: f32[8,8], index: 3, kind: input, shape index: {}]
  %s4 = inlined_call_operand.vmem [shape: f32[2,4,8,8], index: 4, kind: output, shape index: {0}]
  %s5 = inlined_call_operand.hbm [shape: f32[2,8,8], index: 5, kind: output, shape index: {1}]
  %6 = xla_tuple %s4, %s5
  %s7 = sld [smem:[#allocation0]]
  $region57: #{transformer_decoder_forward.24} parent=0
    _
  %s9 = ssub.s32 1, %s7
  %s10 = scalar_select 0, %s9, %s7
  $region1: #{transformer_decoder_forward.24} parent=0
    #allocation2 [shape = 'u8[8192]{0}', space=vmem, size = 0x2000, scoped, tag = 'output window, operand 1']
    #allocation3 [shape = 's32[2]{0}', space=sflag, size = 0x8, scoped, tag = 'scoped memory for transformer_decoder_forward.24']
    %11 = vsyncpa [#allocation3], 0
    %s12 = scalar_lea.sflag [#allocation3], 1
    %13 = vsyncpa %s12, 0
    loop: start=0, step=1, limit=4
    $region2: #{transformer_decoder_forward.24} parent=1 // loop_pre_header
      _
    $region3: #{transformer_decoder_forward.24} parent=1 // loop_header
      %s15 = sphi 0, %s19
      %p16 = scmp.ge.s32.totalorder %s15, 4
      %s25 = sphi 0, %s27
      %s28 = sphi 0, %s25
      %s29 = sphi 0, %s28
      %s45 = sphi 0, %s29
      %s51 = sphi 0, %s53
      %s54 = sphi 0, %s51
      %s55 = sphi 0, %s54
      %s71 = sphi 0, %s55
      %s77 = sphi 0, %s79
      %s80 = sphi 0, %s77
      %s81 = sphi 0, %s80
      %s97 = sphi 0, %s81
      %s101 = sphi 0, %s101
      %s103 = sphi 0, %s101
      %s104 = sphi 0, %s103
      %s118 = sphi 0, %s104
      %s124 = sphi 0, %s126
      %s127 = sphi 0, %s124
      %s128 = sphi 0, %s127
      %s144 = sphi 0, %s128
      %s150 = sphi 0, %s152
      %s153 = sphi 0, %s150
      %s154 = sphi 0, %s153
      %s170 = sphi 0, %s154
    $region4: #{transformer_decoder_forward.24} parent=1 // loop_header_branch
      %18 = sbr.rel (%p16) target = $region8
    $region5: #{transformer_decoder_forward.24} parent=1 // loop_body
      %s20 = ssub.s32 %s15, 1
      %s21 = ssub.s32 %s15, 2
      %s22 = sadd.s32 %s15, 1
      %s23 = ssub.s32 %s15, %s22
      %p24 = scmp.eq.s32.totalorder %s23, 0
      %s26 = sadd.s32 %s25, 1
      %s27 = scalar_select %p24, %s25, %s26
      %p30 = pneg %p24
      %p31 = scmp.eq.s32.totalorder %s15, 1
      %p32 = por %p30, %p31
      %p33 = scmp.ne.s32.totalorder %s25, %s28
      %p34 = scmp.eq.s32.totalorder %s15, 0
      %p35 = por %p33, %p34
      %p36 = scmp.ne.s32.totalorder %s25, %s28
      %p37 = scmp.eq.s32.totalorder %s20, 1
      %p38 = por %p36, %p37
      %p39 = scmp.ne.s32.totalorder %s28, %s29
      %p40 = scmp.eq.s32.totalorder %s20, 0
      %p41 = por %p39, %p40
      %p42 = scmp.ne.s32.totalorder %s28, %s29
      %p43 = scmp.eq.s32.totalorder %s21, 1
      %p44 = por %p42, %p43
      %p46 = scmp.ne.s32.totalorder %s29, %s45
      %p47 = scmp.eq.s32.totalorder %s21, 0
      %p48 = por %p46, %p47
      %s49 = ssub.s32 %s15, %s22
      %p50 = scmp.eq.s32.totalorder %s49, 0
      %s52 = sadd.s32 %s51, 1
      %s53 = scalar_select %p50, %s51, %s52
      %p56 = pneg %p50
      %p57 = scmp.eq.s32.totalorder %s15, 1
      %p58 = por %p56, %p57
      %p59 = scmp.ne.s32.totalorder %s51, %s54
      %p60 = scmp.eq.s32.totalorder %s15, 0
      %p61 = por %p59, %p60
      %p62 = scmp.ne.s32.totalorder %s51, %s54
      %p63 = scmp.eq.s32.totalorder %s20, 1
      %p64 = por %p62, %p63
      %p65 = scmp.ne.s32.totalorder %s54, %s55
      %p66 = scmp.eq.s32.totalorder %s20, 0
      %p67 = por %p65, %p66
      %p68 = scmp.ne.s32.totalorder %s54, %s55
      %p69 = scmp.eq.s32.totalorder %s21, 1
      %p70 = por %p68, %p69
      %p72 = scmp.ne.s32.totalorder %s55, %s71
      %p73 = scmp.eq.s32.totalorder %s21, 0
      %p74 = por %p72, %p73
      %s75 = ssub.s32 %s15, %s22
      %p76 = scmp.eq.s32.totalorder %s75, 0
      %s78 = sadd.s32 %s77, 1
      %s79 = scalar_select %p76, %s77, %s78
      %p82 = pneg %p76
      %p83 = scmp.eq.s32.totalorder %s15, 1
      %p84 = por %p82, %p83
      %p85 = scmp.ne.s32.totalorder %s77, %s80
      %p86 = scmp.eq.s32.totalorder %s15, 0
      %p87 = por %p85, %p86
      %p88 = scmp.ne.s32.totalorder %s77, %s80
      %p89 = scmp.eq.s32.totalorder %s20, 1
      %p90 = por %p88, %p89
      %p91 = scmp.ne.s32.totalorder %s80, %s81
      %p92 = scmp.eq.s32.totalorder %s20, 0
      %p93 = por %p91, %p92
      %p94 = scmp.ne.s32.totalorder %s80, %s81
      %p95 = scmp.eq.s32.totalorder %s21, 1
      %p96 = por %p94, %p95
      %p98 = scmp.ne.s32.totalorder %s81, %s97
      %p99 = scmp.eq.s32.totalorder %s21, 0
      %p100 = por %p98, %p99
      %s102 = sadd.s32 %s101, 1
      %p105 = scmp.eq.s32.totalorder %s15, 1
      %p106 = scmp.ne.s32.totalorder %s101, %s103
      %p107 = scmp.eq.s32.totalorder %s15, 0
      %p108 = por %p106, %p107
      %p109 = scmp.ne.s32.totalorder %s101, %s103
      %p110 = scmp.eq.s32.totalorder %s20, 1
      %p111 = por %p109, %p110
      %p112 = scmp.ne.s32.totalorder %s103, %s104
      %p113 = scmp.eq.s32.totalorder %s20, 0
      %p114 = por %p112, %p113
      %p115 = scmp.ne.s32.totalorder %s103, %s104
      %p116 = scmp.eq.s32.totalorder %s21, 1
      %p117 = por %p115, %p116
      %p119 = scmp.ne.s32.totalorder %s104, %s118
      %p120 = scmp.eq.s32.totalorder %s21, 0
      %p121 = por %p119, %p120
      %s122 = ssub.s32 %s15, %s22
      %p123 = scmp.eq.s32.totalorder %s122, 0
      %s125 = sadd.s32 %s124, 1
      %s126 = scalar_select %p123, %s124, %s125
      %p129 = pneg %p123
      %p130 = scmp.eq.s32.totalorder %s15, 1
      %p131 = por %p129, %p130
      %p132 = scmp.ne.s32.totalorder %s124, %s127
      %p133 = scmp.eq.s32.totalorder %s15, 0
      %p134 = por %p132, %p133
      %p135 = scmp.ne.s32.totalorder %s124, %s127
      %p136 = scmp.eq.s32.totalorder %s20, 1
      %p137 = por %p135, %p136
      %p138 = scmp.ne.s32.totalorder %s127, %s128
      %p139 = scmp.eq.s32.totalorder %s20, 0
      %p140 = por %p138, %p139
      %p141 = scmp.ne.s32.totalorder %s127, %s128
      %p142 = scmp.eq.s32.totalorder %s21, 1
      %p143 = por %p141, %p142
      %p145 = scmp.ne.s32.totalorder %s128, %s144
      %p146 = scmp.eq.s32.totalorder %s21, 0
      %p147 = por %p145, %p146
      %s148 = ssub.s32 %s15, %s22
      %p149 = scmp.eq.s32.totalorder %s148, 0
      %s151 = sadd.s32 %s150, 1
      %s152 = scalar_select %p149, %s150, %s151
      %p155 = pneg %p149
      %p156 = scmp.eq.s32.totalorder %s15, 1
      %p157 = por %p155, %p156
      %p158 = scmp.ne.s32.totalorder %s150, %s153
      %p159 = scmp.eq.s32.totalorder %s15, 0
      %p160 = por %p158, %p159
      %p161 = scmp.ne.s32.totalorder %s150, %s153
      %p162 = scmp.eq.s32.totalorder %s20, 1
      %p163 = por %p161, %p162
      %p164 = scmp.ne.s32.totalorder %s153, %s154
      %p165 = scmp.eq.s32.totalorder %s20, 0
      %p166 = por %p164, %p165
      %p167 = scmp.ne.s32.totalorder %s153, %s154
      %p168 = scmp.eq.s32.totalorder %s21, 1
      %p169 = por %p167, %p168
      %p171 = scmp.ne.s32.totalorder %s154, %s170
      %p172 = scmp.eq.s32.totalorder %s21, 0
      %p173 = por %p171, %p172
      %p174 = scmp.le.s32.totalorder 1, %s15
      %p175 = scmp.lt.s32.totalorder %s15, 3
      %p176 = pnand %p174, %p175
      %p177 = pneg %p176
      // Predicated region
      $region9: #{transformer_decoder_forward.24} parent=5 // pred_check
        _
      $region10: #{transformer_decoder_forward.24} parent=5 // pred_check_branch
        %179 = sbr.rel (%p176) target = $region12
      $region11: #{transformer_decoder_forward.24} parent=5 // pred_region
        %s180 = ssub.s32 %s15, 1
        // Predicated region
        $region13: #{transformer_decoder_forward.24} parent=11 // pred_check
          %p181 = pneg %p114
        $region14: #{transformer_decoder_forward.24} parent=11 // pred_check_branch
          %183 = sbr.rel (%p181) target = $region16
        $region15: #{transformer_decoder_forward.24} parent=11 // pred_region
          _
        $region16: #{transformer_decoder_forward.24} parent=11 // pred_fallthru
          _
      $region12: #{transformer_decoder_forward.24} parent=5 // pred_fallthru
        _
      %p184 = scmp.lt.s32.totalorder %s15, 2
      // Predicated region
      $region17: #{transformer_decoder_forward.24} parent=5 // pred_check
        %p185 = pneg %p184
      $region18: #{transformer_decoder_forward.24} parent=5 // pred_check_branch
        %187 = sbr.rel (%p185) target = $region20
      $region19: #{transformer_decoder_forward.24} parent=5 // pred_region
        // Predicated region
        $region21: #{transformer_decoder_forward.24} parent=19 // pred_check
          %p188 = pneg %p35
        $region22: #{transformer_decoder_forward.24} parent=19 // pred_check_branch
          %190 = sbr.rel (%p188) target = $region24
        $region23: #{transformer_decoder_forward.24} parent=19 // pred_region
          %p191 = scmp.lt.s32.totalorder %s15, 1
          %s192 = scalar_select %p191, %s15, 1
          %s193 = smul.addr %s192, 4
          %s194 = smul.addr %s193, 8
          %s195 = scalar_lea.vmem %s0, %s194
        $region24: #{transformer_decoder_forward.24} parent=19 // pred_fallthru
          _
        // Predicated region
        $region25: #{transformer_decoder_forward.24} parent=19 // pred_check
          %p196 = pneg %p61
        $region26: #{transformer_decoder_forward.24} parent=19 // pred_check_branch
          %198 = sbr.rel (%p196) target = $region28
        $region27: #{transformer_decoder_forward.24} parent=19 // pred_region
          %p199 = scmp.lt.s32.totalorder %s15, 1
          %s200 = scalar_select %p199, %s15, 1
          %s201 = smul.addr %s200, 4
          %s202 = smul.addr %s201, 8
          %s203 = scalar_lea.vmem %s1, %s202
        $region28: #{transformer_decoder_forward.24} parent=19 // pred_fallthru
          _
        // Predicated region
        $region29: #{transformer_decoder_forward.24} parent=19 // pred_check
          %p204 = pneg %p87
        $region30: #{transformer_decoder_forward.24} parent=19 // pred_check_branch
          %206 = sbr.rel (%p204) target = $region32
        $region31: #{transformer_decoder_forward.24} parent=19 // pred_region
          %p207 = scmp.lt.s32.totalorder %s15, 1
          %s208 = scalar_select %p207, %s15, 1
          %s209 = smul.addr %s208, 4
          %s210 = smul.addr %s209, 8
          %s211 = scalar_lea.vmem %s2, %s210
        $region32: #{transformer_decoder_forward.24} parent=19 // pred_fallthru
          _
      $region20: #{transformer_decoder_forward.24} parent=5 // pred_fallthru
        _
      %p212 = scmp.le.s32.totalorder 1, %s15
      %p213 = scmp.lt.s32.totalorder %s15, 3
      %p214 = pnand %p212, %p213
      %p215 = pneg %p214
      // Predicated region
      $region33: #{transformer_decoder_forward.24} parent=5 // pred_check
        _
      $region34: #{transformer_decoder_forward.24} parent=5 // pred_check_branch
        %217 = sbr.rel (%p214) target = $region36
      $region35: #{transformer_decoder_forward.24} parent=5 // pred_region
        %s218 = ssub.s32 %s15, 1
        %p219 = scmp.lt.s32.totalorder %s20, 1
        %s220 = scalar_select %p219, %s20, 1
        %s221 = smul.addr %s220, 4
        %s222 = smul.addr %s221, 8
        %s223 = scalar_lea.vmem %s0, %s222
        %p224 = pneg %p41
        %p225 = pneg %p38
        %p226 = scmp.lt.s32.totalorder %s20, 1
        %s227 = scalar_select %p226, %s20, 1
        %s228 = smul.addr %s227, 4
        %s229 = smul.addr %s228, 8
        %s230 = scalar_lea.vmem %s1, %s229
        %p231 = pneg %p67
        %p232 = pneg %p64
        %p233 = scmp.lt.s32.totalorder %s20, 1
        %s234 = scalar_select %p233, %s20, 1
        %s235 = smul.addr %s234, 4
        %s236 = smul.addr %s235, 8
        %s237 = scalar_lea.vmem %s2, %s236
        %p238 = pneg %p93
        %p239 = pneg %p90
        %p240 = pneg %p114
        %p241 = pneg %p111
        %p242 = pneg %p140
        %p243 = pneg %p137
        %p244 = scmp.lt.s32.totalorder %s20, 1
        %s245 = scalar_select %p244, %s20, 1
        %s246 = smul.addr %s245, 4
        %s247 = smul.addr %s246, 8
        %s248 = scalar_lea.vmem %s4, %s247
        %p249 = pneg %p166
        %p250 = pneg %p163
        %s251 = sand.u32 %s153, 1
        %s252 = scalar_lea.sflag [#allocation3], %s251
        %s253 = sand.u32 %s153, 1
        %s254 = smul.addr %s253, 8
        %s255 = scalar_lea.vmem [#allocation2], %s254
        %p256 = scmp.lt.s32.totalorder %s20, 1
        %s257 = scalar_select %p256, %s20, 1
        %s258 = smul.addr %s257, 4
        %s259 = smul.addr %s258, 8
        %s260 = scalar_lea.vmem %s0, %s259
        %p261 = scmp.lt.s32.totalorder %s20, 1
        %s262 = scalar_select %p261, %s20, 1
        %s263 = smul.addr %s262, 4
        %s264 = smul.addr %s263, 8
        %s265 = scalar_lea.vmem %s1, %s264
        %p266 = scmp.lt.s32.totalorder %s20, 1
        %s267 = scalar_select %p266, %s20, 1
        %s268 = smul.addr %s267, 4
        %s269 = smul.addr %s268, 8
        %s270 = scalar_lea.vmem %s2, %s269
        %p271 = scmp.lt.s32.totalorder %s20, 1
        %s272 = scalar_select %p271, %s20, 1
        %s273 = smul.addr %s272, 4
        %s274 = smul.addr %s273, 8
        %s275 = scalar_lea.vmem %s4, %s274
        %v276 = vld [vmem:[%s260] sm:$0xff]
        %v277 = vld [vmem:[%s260 + $0x8] sm:$0xff]
        %v278 = vld [vmem:[%s260 + $0x10] sm:$0xff]
        %v279 = vld [vmem:[%s260 + $0x18] sm:$0xff]
        %v280 = vld [vmem:[%s265] sm:$0xff]
        %v281 = vld [vmem:[%s265 + $0x8] sm:$0xff]
        %v282 = vld [vmem:[%s265 + $0x10] sm:$0xff]
        %v283 = vld [vmem:[%s265 + $0x18] sm:$0xff]
        %v284 = vld [vmem:[%s270] sm:$0xff]
        %v285 = vld [vmem:[%s270 + $0x8] sm:$0xff]
        %v286 = vld [vmem:[%s270 + $0x10] sm:$0xff]
        %v287 = vld [vmem:[%s270 + $0x18] sm:$0xff]
        %v288 = vld [vmem:[%s3] sm:$0xff]
        %v289 = vmul.f32 %v276, 0.35355338
        %v290 = vmul.f32 %v277, 0.35355338
        %v291 = vmul.f32 %v278, 0.35355338
        %v292 = vmul.f32 %v279, 0.35355338
        %vm293 = vcmask 64512
        %v295 = vsel %vm293, %v289, 0
        %v298 = vsel %vm293, %v280, 0
        %300 = vmatprep.subr.mxu0 0.0
        %301 = vmatpush1.xpose.msra.mxu0 %v298
        %302 = vmatprep.subr.mxu0 0.0
        %303 = vmatpush1.xpose.msra.mxu0 0.0
        %304 = vmatprep.subr.mxu0 0.0
        %305 = vmatpush1.xpose.msra.mxu0 0.0
        %306 = vmatprep.subr.mxu0 0.0
        %307 = vmatpush1.xpose.msra.mxu0 0.0
        %308 = vmatprep.subr.mxu0 0.0
        %309 = vmatpush1.xpose.msra.mxu0 0.0
        %310 = vmatprep.subr.mxu0 0.0
        %311 = vmatpush1.xpose.msra.mxu0 0.0
        %312 = vmatprep.subr.mxu0 0.0
        %313 = vmatpush1.xpose.msra.mxu0 0.0
        %314 = vmatprep.subr.mxu0 0.0
        %315 = vmatpush1.xpose.msra.mxu0 0.0
        %316 = vmatprep.subr.mxu0 0.0
        %317 = vmatpush1.xpose.msra.mxu0 0.0
        %318 = vmatprep.subr.mxu0 0.0
        %319 = vmatpush1.xpose.msra.mxu0 0.0
        %320 = vmatprep.subr.mxu0 0.0
        %321 = vmatpush1.xpose.msra.mxu0 0.0
        %322 = vmatprep.subr.mxu0 0.0
        %323 = vmatpush1.xpose.msra.mxu0 0.0
        %324 = vmatprep.subr.mxu0 0.0
        %325 = vmatpush1.xpose.msra.mxu0 0.0
        %326 = vmatprep.subr.mxu0 0.0
        %327 = vmatpush1.xpose.msra.mxu0 0.0
        %328 = vmatprep.subr.mxu0 0.0
        %329 = vmatpush1.xpose.msra.mxu0 0.0
        %330 = vmatprep.subr.mxu0 0.0
        %331 = vmatpush1.xpose.msra.mxu0 0.0
        %332 = vmatprep.subr.mxu0 0.0
        %333 = vmatpush1.xpose.msra.mxu0 0.0
        %334 = vmatprep.subr.mxu0 0.0
        %335 = vmatpush1.xpose.msra.mxu0 0.0
        %336 = vmatprep.subr.mxu0 0.0
        %337 = vmatpush1.xpose.msra.mxu0 0.0
        %338 = vmatprep.subr.mxu0 0.0
        %339 = vmatpush1.xpose.msra.mxu0 0.0
        %340 = vmatprep.subr.mxu0 0.0
        %341 = vmatpush1.xpose.msra.mxu0 0.0
        %342 = vmatprep.subr.mxu0 0.0
        %343 = vmatpush1.xpose.msra.mxu0 0.0
        %344 = vmatprep.subr.mxu0 0.0
        %345 = vmatpush1.xpose.msra.mxu0 0.0
        %346 = vmatprep.subr.mxu0 0.0
        %347 = vmatpush1.xpose.msra.mxu0 0.0
        %348 = vmatprep.subr.mxu0 0.0
        %349 = vmatpush1.xpose.msra.mxu0 0.0
        %350 = vmatprep.subr.mxu0 0.0
        %351 = vmatpush1.xpose.msra.mxu0 0.0
        %352 = vmatprep.subr.mxu0 0.0
        %353 = vmatpush1.xpose.msra.mxu0 0.0
        %354 = vmatprep.subr.mxu0 0.0
        %355 = vmatpush1.xpose.msra.mxu0 0.0
        %356 = vmatprep.subr.mxu0 0.0
        %357 = vmatpush1.xpose.msra.mxu0 0.0
        %358 = vmatprep.subr.mxu0 0.0
        %359 = vmatpush1.xpose.msra.mxu0 0.0
        %360 = vmatprep.subr.mxu0 0.0
        %361 = vmatpush1.xpose.msra.mxu0 0.0
        %362 = vmatprep.subr.mxu0 0.0
        %363 = vmatpush1.xpose.msra.mxu0 0.0
        %364 = vmatprep.mubr.f32.mxu0 0.0
        %365 = vmatmul.mubr.f32.gmra.mrb[0].mxu0 %v295
        %v366 = vpop.f32.mrb[0].mxu0
        %v367 = vadd.f32 %v288, %v366
        %v368 = vpop.f32.mrb[0].mxu0
        %369 = vdwg.mxu0
        %v371 = vsel %vm293, %v290, 0
        %v374 = vsel %vm293, %v281, 0
        %376 = vmatprep.subr.mxu0 0.0
        %377 = vmatpush1.xpose.msra.mxu0 %v374
        %378 = vmatprep.subr.mxu0 0.0
        %379 = vmatpush1.xpose.msra.mxu0 0.0
        %380 = vmatprep.subr.mxu0 0.0
        %381 = vmatpush1.xpose.msra.mxu0 0.0
        %382 = vmatprep.subr.mxu0 0.0
        %383 = vmatpush1.xpose.msra.mxu0 0.0
        %384 = vmatprep.subr.mxu0 0.0
        %385 = vmatpush1.xpose.msra.mxu0 0.0
        %386 = vmatprep.subr.mxu0 0.0
        %387 = vmatpush1.xpose.msra.mxu0 0.0
        %388 = vmatprep.subr.mxu0 0.0
        %389 = vmatpush1.xpose.msra.mxu0 0.0
        %390 = vmatprep.subr.mxu0 0.0
        %391 = vmatpush1.xpose.msra.mxu0 0.0
        %392 = vmatprep.subr.mxu0 0.0
        %393 = vmatpush1.xpose.msra.mxu0 0.0
        %394 = vmatprep.subr.mxu0 0.0
        %395 = vmatpush1.xpose.msra.mxu0 0.0
        %396 = vmatprep.subr.mxu0 0.0
        %397 = vmatpush1.xpose.msra.mxu0 0.0
        %398 = vmatprep.subr.mxu0 0.0
        %399 = vmatpush1.xpose.msra.mxu0 0.0
        %400 = vmatprep.subr.mxu0 0.0
        %401 = vmatpush1.xpose.msra.mxu0 0.0
        %402 = vmatprep.subr.mxu0 0.0
        %403 = vmatpush1.xpose.msra.mxu0 0.0
        %404 = vmatprep.subr.mxu0 0.0
        %405 = vmatpush1.xpose.msra.mxu0 0.0
        %406 = vmatprep.subr.mxu0 0.0
        %407 = vmatpush1.xpose.msra.mxu0 0.0
        %408 = vmatprep.subr.mxu0 0.0
        %409 = vmatpush1.xpose.msra.mxu0 0.0
        %410 = vmatprep.subr.mxu0 0.0
        %411 = vmatpush1.xpose.msra.mxu0 0.0
        %412 = vmatprep.subr.mxu0 0.0
        %413 = vmatpush1.xpose.msra.mxu0 0.0
        %414 = vmatprep.subr.mxu0 0.0
        %415 = vmatpush1.xpose.msra.mxu0 0.0
        %416 = vmatprep.subr.mxu0 0.0
        %417 = vmatpush1.xpose.msra.mxu0 0.0
        %418 = vmatprep.subr.mxu0 0.0
        %419 = vmatpush1.xpose.msra.mxu0 0.0
        %420 = vmatprep.subr.mxu0 0.0
        %421 = vmatpush1.xpose.msra.mxu0 0.0
        %422 = vmatprep.subr.mxu0 0.0
        %423 = vmatpush1.xpose.msra.mxu0 0.0
        %424 = vmatprep.subr.mxu0 0.0
        %425 = vmatpush1.xpose.msra.mxu0 0.0
        %426 = vmatprep.subr.mxu0 0.0
        %427 = vmatpush1.xpose.msra.mxu0 0.0
        %428 = vmatprep.subr.mxu0 0.0
        %429 = vmatpush1.xpose.msra.mxu0 0.0
        %430 = vmatprep.subr.mxu0 0.0
        %431 = vmatpush1.xpose.msra.mxu0 0.0
        %432 = vmatprep.subr.mxu0 0.0
        %433 = vmatpush1.xpose.msra.mxu0 0.0
        %434 = vmatprep.subr.mxu0 0.0
        %435 = vmatpush1.xpose.msra.mxu0 0.0
        %436 = vmatprep.subr.mxu0 0.0
        %437 = vmatpush1.xpose.msra.mxu0 0.0
        %438 = vmatprep.subr.mxu0 0.0
        %439 = vmatpush1.xpose.msra.mxu0 0.0
        %440 = vmatprep.mubr.f32.mxu0 0.0
        %441 = vmatmul.mubr.f32.gmra.mrb[0].mxu0 %v371
        %v442 = vpop.f32.mrb[0].mxu0
        %v443 = vadd.f32 %v288, %v442
        %v444 = vpop.f32.mrb[0].mxu0
        %445 = vdwg.mxu0
        %v447 = vsel %vm293, %v291, 0
        %v450 = vsel %vm293, %v282, 0
        %452 = vmatprep.subr.mxu0 0.0
        %453 = vmatpush1.xpose.msra.mxu0 %v450
        %454 = vmatprep.subr.mxu0 0.0
        %455 = vmatpush1.xpose.msra.mxu0 0.0
        %456 = vmatprep.subr.mxu0 0.0
        %457 = vmatpush1.xpose.msra.mxu0 0.0
        %458 = vmatprep.subr.mxu0 0.0
        %459 = vmatpush1.xpose.msra.mxu0 0.0
        %460 = vmatprep.subr.mxu0 0.0
        %461 = vmatpush1.xpose.msra.mxu0 0.0
        %462 = vmatprep.subr.mxu0 0.0
        %463 = vmatpush1.xpose.msra.mxu0 0.0
        %464 = vmatprep.subr.mxu0 0.0
        %465 = vmatpush1.xpose.msra.mxu0 0.0
        %466 = vmatprep.subr.mxu0 0.0
        %467 = vmatpush1.xpose.msra.mxu0 0.0
        %468 = vmatprep.subr.mxu0 0.0
        %469 = vmatpush1.xpose.msra.mxu0 0.0
        %470 = vmatprep.subr.mxu0 0.0
        %471 = vmatpush1.xpose.msra.mxu0 0.0
        %472 = vmatprep.subr.mxu0 0.0
        %473 = vmatpush1.xpose.msra.mxu0 0.0
        %474 = vmatprep.subr.mxu0 0.0
        %475 = vmatpush1.xpose.msra.mxu0 0.0
        %476 = vmatprep.subr.mxu0 0.0
        %477 = vmatpush1.xpose.msra.mxu0 0.0
        %478 = vmatprep.subr.mxu0 0.0
        %479 = vmatpush1.xpose.msra.mxu0 0.0
        %480 = vmatprep.subr.mxu0 0.0
        %481 = vmatpush1.xpose.msra.mxu0 0.0
        %482 = vmatprep.subr.mxu0 0.0
        %483 = vmatpush1.xpose.msra.mxu0 0.0
        %484 = vmatprep.subr.mxu0 0.0
        %485 = vmatpush1.xpose.msra.mxu0 0.0
        %486 = vmatprep.subr.mxu0 0.0
        %487 = vmatpush1.xpose.msra.mxu0 0.0
        %488 = vmatprep.subr.mxu0 0.0
        %489 = vmatpush1.xpose.msra.mxu0 0.0
        %490 = vmatprep.subr.mxu0 0.0
        %491 = vmatpush1.xpose.msra.mxu0 0.0
        %492 = vmatprep.subr.mxu0 0.0
        %493 = vmatpush1.xpose.msra.mxu0 0.0
        %494 = vmatprep.subr.mxu0 0.0
        %495 = vmatpush1.xpose.msra.mxu0 0.0
        %496 = vmatprep.subr.mxu0 0.0
        %497 = vmatpush1.xpose.msra.mxu0 0.0
        %498 = vmatprep.subr.mxu0 0.0
        %499 = vmatpush1.xpose.msra.mxu0 0.0
        %500 = vmatprep.subr.mxu0 0.0
        %501 = vmatpush1.xpose.msra.mxu0 0.0
        %502 = vmatprep.subr.mxu0 0.0
        %503 = vmatpush1.xpose.msra.mxu0 0.0
        %504 = vmatprep.subr.mxu0 0.0
        %505 = vmatpush1.xpose.msra.mxu0 0.0
        %506 = vmatprep.subr.mxu0 0.0
        %507 = vmatpush1.xpose.msra.mxu0 0.0
        %508 = vmatprep.subr.mxu0 0.0
        %509 = vmatpush1.xpose.msra.mxu0 0.0
        %510 = vmatprep.subr.mxu0 0.0
        %511 = vmatpush1.xpose.msra.mxu0 0.0
        %512 = vmatprep.subr.mxu0 0.0
        %513 = vmatpush1.xpose.msra.mxu0 0.0
        %514 = vmatprep.subr.mxu0 0.0
        %515 = vmatpush1.xpose.msra.mxu0 0.0
        %516 = vmatprep.mubr.f32.mxu0 0.0
        %517 = vmatmul.mubr.f32.gmra.mrb[0].mxu0 %v447
        %v518 = vpop.f32.mrb[0].mxu0
        %v519 = vadd.f32 %v288, %v518
        %v520 = vpop.f32.mrb[0].mxu0
        %521 = vdwg.mxu0
        %v523 = vsel %vm293, %v292, 0
        %v526 = vsel %vm293, %v283, 0
        %528 = vmatprep.subr.mxu0 0.0
        %529 = vmatpush1.xpose.msra.mxu0 %v526
        %530 = vmatprep.subr.mxu0 0.0
        %531 = vmatpush1.xpose.msra.mxu0 0.0
        %532 = vmatprep.subr.mxu0 0.0
        %533 = vmatpush1.xpose.msra.mxu0 0.0
        %534 = vmatprep.subr.mxu0 0.0
        %535 = vmatpush1.xpose.msra.mxu0 0.0
        %536 = vmatprep.subr.mxu0 0.0
        %537 = vmatpush1.xpose.msra.mxu0 0.0
        %538 = vmatprep.subr.mxu0 0.0
        %539 = vmatpush1.xpose.msra.mxu0 0.0
        %540 = vmatprep.subr.mxu0 0.0
        %541 = vmatpush1.xpose.msra.mxu0 0.0
        %542 = vmatprep.subr.mxu0 0.0
        %543 = vmatpush1.xpose.msra.mxu0 0.0
        %544 = vmatprep.subr.mxu0 0.0
        %545 = vmatpush1.xpose.msra.mxu0 0.0
        %546 = vmatprep.subr.mxu0 0.0
        %547 = vmatpush1.xpose.msra.mxu0 0.0
        %548 = vmatprep.subr.mxu0 0.0
        %549 = vmatpush1.xpose.msra.mxu0 0.0
        %550 = vmatprep.subr.mxu0 0.0
        %551 = vmatpush1.xpose.msra.mxu0 0.0
        %552 = vmatprep.subr.mxu0 0.0
        %553 = vmatpush1.xpose.msra.mxu0 0.0
        %554 = vmatprep.subr.mxu0 0.0
        %555 = vmatpush1.xpose.msra.mxu0 0.0
        %556 = vmatprep.subr.mxu0 0.0
        %557 = vmatpush1.xpose.msra.mxu0 0.0
        %558 = vmatprep.subr.mxu0 0.0
        %559 = vmatpush1.xpose.msra.mxu0 0.0
        %560 = vmatprep.subr.mxu0 0.0
        %561 = vmatpush1.xpose.msra.mxu0 0.0
        %562 = vmatprep.subr.mxu0 0.0
        %563 = vmatpush1.xpose.msra.mxu0 0.0
        %564 = vmatprep.subr.mxu0 0.0
        %565 = vmatpush1.xpose.msra.mxu0 0.0
        %566 = vmatprep.subr.mxu0 0.0
        %567 = vmatpush1.xpose.msra.mxu0 0.0
        %568 = vmatprep.subr.mxu0 0.0
        %569 = vmatpush1.xpose.msra.mxu0 0.0
        %570 = vmatprep.subr.mxu0 0.0
        %571 = vmatpush1.xpose.msra.mxu0 0.0
        %572 = vmatprep.subr.mxu0 0.0
        %573 = vmatpush1.xpose.msra.mxu0 0.0
        %574 = vmatprep.subr.mxu0 0.0
        %575 = vmatpush1.xpose.msra.mxu0 0.0
        %576 = vmatprep.subr.mxu0 0.0
        %577 = vmatpush1.xpose.msra.mxu0 0.0
        %578 = vmatprep.subr.mxu0 0.0
        %579 = vmatpush1.xpose.msra.mxu0 0.0
        %580 = vmatprep.subr.mxu0 0.0
        %581 = vmatpush1.xpose.msra.mxu0 0.0
        %582 = vmatprep.subr.mxu0 0.0
        %583 = vmatpush1.xpose.msra.mxu0 0.0
        %584 = vmatprep.subr.mxu0 0.0
        %585 = vmatpush1.xpose.msra.mxu0 0.0
        %586 = vmatprep.subr.mxu0 0.0
        %587 = vmatpush1.xpose.msra.mxu0 0.0
        %588 = vmatprep.subr.mxu0 0.0
        %589 = vmatpush1.xpose.msra.mxu0 0.0
        %590 = vmatprep.subr.mxu0 0.0
        %591 = vmatpush1.xpose.msra.mxu0 0.0
        %592 = vmatprep.mubr.f32.mxu0 0.0
        %593 = vmatmul.mubr.f32.gmra.mrb[0].mxu0 %v523
        %v594 = vpop.f32.mrb[0].mxu0
        %v595 = vadd.f32 %v288, %v594
        %v596 = vpop.f32.mrb[0].mxu0
        %597 = vdwg.mxu0
        %v598 = vsel %vm293, %v367, -inf
        %599 = vmax.xlane.f32.xlu0 %v598
        %v600 = vpop.xlane.xlu0 %599
        %v601 = vsel %vm293, %v443, -inf
        %602 = vmax.xlane.f32.xlu0 %v601
        %v603 = vpop.xlane.xlu0 %602
        %v604 = vsel %vm293, %v519, -inf
        %605 = vmax.xlane.f32.xlu0 %v604
        %v606 = vpop.xlane.xlu0 %605
        %v607 = vsel %vm293, %v595, -inf
        %608 = vmax.xlane.f32.xlu0 %v607
        %v609 = vpop.xlane.xlu0 %608
        %v610 = vsub.f32 %v367, %v600
        %v611 = vsub.f32 %v443, %v603
        %v612 = vsub.f32 %v519, %v606
        %v613 = vsub.f32 %v595, %v609
        %v614 = vmul.f32 %v610, 1.442695
        %v615 = vpow.pop %v614
        %v616 = vmul.f32 %v611, 1.442695
        %v617 = vpow.pop %v616
        %v618 = vmul.f32 %v612, 1.442695
        %v619 = vpow.pop %v618
        %v620 = vmul.f32 %v613, 1.442695
        %v621 = vpow.pop %v620
        %v622 = vsel %vm293, %v615, 0.0
        %623 = vadd.xlane.f32.xlu0 %v622
        %v624 = vpop.xlane.xlu0 %623
        %v625 = vsel %vm293, %v617, 0.0
        %626 = vadd.xlane.f32.xlu0 %v625
        %v627 = vpop.xlane.xlu0 %626
        %v628 = vsel %vm293, %v619, 0.0
        %629 = vadd.xlane.f32.xlu0 %v628
        %v630 = vpop.xlane.xlu0 %629
        %v631 = vsel %vm293, %v621, 0.0
        %632 = vadd.xlane.f32.xlu0 %v631
        %v633 = vpop.xlane.xlu0 %632
        %v634 = vrcp.pop %v624
        %v635 = vmul.f32 %v615, %v634
        %v636 = vrcp.pop %v627
        %v637 = vmul.f32 %v617, %v636
        %v638 = vrcp.pop %v630
        %v639 = vmul.f32 %v619, %v638
        %v640 = vrcp.pop %v633
        %v641 = vmul.f32 %v621, %v640
        %v643 = vsel %vm293, %v635, 0
        %645 = vmatprep.subr.mxu0 0.0
        %646 = vmatpush1.msra.mxu0 %v284
        %647 = vmatprep.subr.mxu0 0.0
        %648 = vmatpush1.msra.mxu0 0.0
        %649 = vmatprep.subr.mxu0 0.0
        %650 = vmatpush1.msra.mxu0 0.0
        %651 = vmatprep.subr.mxu0 0.0
        %652 = vmatpush1.msra.mxu0 0.0
        %653 = vmatprep.subr.mxu0 0.0
        %654 = vmatpush1.msra.mxu0 0.0
        %655 = vmatprep.subr.mxu0 0.0
        %656 = vmatpush1.msra.mxu0 0.0
        %657 = vmatprep.subr.mxu0 0.0
        %658 = vmatpush1.msra.mxu0 0.0
        %659 = vmatprep.subr.mxu0 0.0
        %660 = vmatpush1.msra.mxu0 0.0
        %661 = vmatprep.subr.mxu0 0.0
        %662 = vmatpush1.msra.mxu0 0.0
        %663 = vmatprep.subr.mxu0 0.0
        %664 = vmatpush1.msra.mxu0 0.0
        %665 = vmatprep.subr.mxu0 0.0
        %666 = vmatpush1.msra.mxu0 0.0
        %667 = vmatprep.subr.mxu0 0.0
        %668 = vmatpush1.msra.mxu0 0.0
        %669 = vmatprep.subr.mxu0 0.0
        %670 = vmatpush1.msra.mxu0 0.0
        %671 = vmatprep.subr.mxu0 0.0
        %672 = vmatpush1.msra.mxu0 0.0
        %673 = vmatprep.subr.mxu0 0.0
        %674 = vmatpush1.msra.mxu0 0.0
        %675 = vmatprep.subr.mxu0 0.0
        %676 = vmatpush1.msra.mxu0 0.0
        %677 = vmatprep.subr.mxu0 0.0
        %678 = vmatpush1.msra.mxu0 0.0
        %679 = vmatprep.subr.mxu0 0.0
        %680 = vmatpush1.msra.mxu0 0.0
        %681 = vmatprep.subr.mxu0 0.0
        %682 = vmatpush1.msra.mxu0 0.0
        %683 = vmatprep.subr.mxu0 0.0
        %684 = vmatpush1.msra.mxu0 0.0
        %685 = vmatprep.subr.mxu0 0.0
        %686 = vmatpush1.msra.mxu0 0.0
        %687 = vmatprep.subr.mxu0 0.0
        %688 = vmatpush1.msra.mxu0 0.0
        %689 = vmatprep.subr.mxu0 0.0
        %690 = vmatpush1.msra.mxu0 0.0
        %691 = vmatprep.subr.mxu0 0.0
        %692 = vmatpush1.msra.mxu0 0.0
        %693 = vmatprep.subr.mxu0 0.0
        %694 = vmatpush1.msra.mxu0 0.0
        %695 = vmatprep.subr.mxu0 0.0
        %696 = vmatpush1.msra.mxu0 0.0
        %697 = vmatprep.subr.mxu0 0.0
        %698 = vmatpush1.msra.mxu0 0.0
        %699 = vmatprep.subr.mxu0 0.0
        %700 = vmatpush1.msra.mxu0 0.0
        %701 = vmatprep.subr.mxu0 0.0
        %702 = vmatpush1.msra.mxu0 0.0
        %703 = vmatprep.subr.mxu0 0.0
        %704 = vmatpush1.msra.mxu0 0.0
        %705 = vmatprep.subr.mxu0 0.0
        %706 = vmatpush1.msra.mxu0 0.0
        %707 = vmatprep.subr.mxu0 0.0
        %708 = vmatpush1.msra.mxu0 0.0
        %709 = vmatprep.mubr.f32.mxu0 0.0
        %710 = vmatmul.mubr.f32.gmra.mrb[0].mxu0 %v643
        %v711 = vpop.f32.mrb[0].mxu0
        %v712 = vadd.f32 0.0, %v711
        %v713 = vpop.f32.mrb[0].mxu0
        %714 = vdwg.mxu0
        %v716 = vsel %vm293, %v637, 0
        %718 = vmatprep.subr.mxu0 0.0
        %719 = vmatpush1.msra.mxu0 %v285
        %720 = vmatprep.subr.mxu0 0.0
        %721 = vmatpush1.msra.mxu0 0.0
        %722 = vmatprep.subr.mxu0 0.0
        %723 = vmatpush1.msra.mxu0 0.0
        %724 = vmatprep.subr.mxu0 0.0
        %725 = vmatpush1.msra.mxu0 0.0
        %726 = vmatprep.subr.mxu0 0.0
        %727 = vmatpush1.msra.mxu0 0.0
        %728 = vmatprep.subr.mxu0 0.0
        %729 = vmatpush1.msra.mxu0 0.0
        %730 = vmatprep.subr.mxu0 0.0
        %731 = vmatpush1.msra.mxu0 0.0
        %732 = vmatprep.subr.mxu0 0.0
        %733 = vmatpush1.msra.mxu0 0.0
        %734 = vmatprep.subr.mxu0 0.0
        %735 = vmatpush1.msra.mxu0 0.0
        %736 = vmatprep.subr.mxu0 0.0
        %737 = vmatpush1.msra.mxu0 0.0
        %738 = vmatprep.subr.mxu0 0.0
        %739 = vmatpush1.msra.mxu0 0.0
        %740 = vmatprep.subr.mxu0 0.0
        %741 = vmatpush1.msra.mxu0 0.0
        %742 = vmatprep.subr.mxu0 0.0
        %743 = vmatpush1.msra.mxu0 0.0
        %744 = vmatprep.subr.mxu0 0.0
        %745 = vmatpush1.msra.mxu0 0.0
        %746 = vmatprep.subr.mxu0 0.0
        %747 = vmatpush1.msra.mxu0 0.0
        %748 = vmatprep.subr.mxu0 0.0
        %749 = vmatpush1.msra.mxu0 0.0
        %750 = vmatprep.subr.mxu0 0.0
        %751 = vmatpush1.msra.mxu0 0.0
        %752 = vmatprep.subr.mxu0 0.0
        %753 = vmatpush1.msra.mxu0 0.0
        %754 = vmatprep.subr.mxu0 0.0
        %755 = vmatpush1.msra.mxu0 0.0
        %756 = vmatprep.subr.mxu0 0.0
        %757 = vmatpush1.msra.mxu0 0.0
        %758 = vmatprep.subr.mxu0 0.0
        %759 = vmatpush1.msra.mxu0 0.0
        %760 = vmatprep.subr.mxu0 0.0
        %761 = vmatpush1.msra.mxu0 0.0
        %762 = vmatprep.subr.mxu0 0.0
        %763 = vmatpush1.msra.mxu0 0.0
        %764 = vmatprep.subr.mxu0 0.0
        %765 = vmatpush1.msra.mxu0 0.0
        %766 = vmatprep.subr.mxu0 0.0
        %767 = vmatpush1.msra.mxu0 0.0
        %768 = vmatprep.subr.mxu0 0.0
        %769 = vmatpush1.msra.mxu0 0.0
        %770 = vmatprep.subr.mxu0 0.0
        %771 = vmatpush1.msra.mxu0 0.0
        %772 = vmatprep.subr.mxu0 0.0
        %773 = vmatpush1.msra.mxu0 0.0
        %774 = vmatprep.subr.mxu0 0.0
        %775 = vmatpush1.msra.mxu0 0.0
        %776 = vmatprep.subr.mxu0 0.0
        %777 = vmatpush1.msra.mxu0 0.0
        %778 = vmatprep.subr.mxu0 0.0
        %779 = vmatpush1.msra.mxu0 0.0
        %780 = vmatprep.subr.mxu0 0.0
        %781 = vmatpush1.msra.mxu0 0.0
        %782 = vmatprep.mubr.f32.mxu0 0.0
        %783 = vmatmul.mubr.f32.gmra.mrb[0].mxu0 %v716
        %v784 = vpop.f32.mrb[0].mxu0
        %v785 = vadd.f32 0.0, %v784
        %v786 = vpop.f32.mrb[0].mxu0
        %787 = vdwg.mxu0
        %v789 = vsel %vm293, %v639, 0
        %791 = vmatprep.subr.mxu0 0.0
        %792 = vmatpush1.msra.mxu0 %v286
        %793 = vmatprep.subr.mxu0 0.0
        %794 = vmatpush1.msra.mxu0 0.0
        %795 = vmatprep.subr.mxu0 0.0
        %796 = vmatpush1.msra.mxu0 0.0
        %797 = vmatprep.subr.mxu0 0.0
        %798 = vmatpush1.msra.mxu0 0.0
        %799 = vmatprep.subr.mxu0 0.0
        %800 = vmatpush1.msra.mxu0 0.0
        %801 = vmatprep.subr.mxu0 0.0
        %802 = vmatpush1.msra.mxu0 0.0
        %803 = vmatprep.subr.mxu0 0.0
        %804 = vmatpush1.msra.mxu0 0.0
        %805 = vmatprep.subr.mxu0 0.0
        %806 = vmatpush1.msra.mxu0 0.0
        %807 = vmatprep.subr.mxu0 0.0
        %808 = vmatpush1.msra.mxu0 0.0
        %809 = vmatprep.subr.mxu0 0.0
        %810 = vmatpush1.msra.mxu0 0.0
        %811 = vmatprep.subr.mxu0 0.0
        %812 = vmatpush1.msra.mxu0 0.0
        %813 = vmatprep.subr.mxu0 0.0
        %814 = vmatpush1.msra.mxu0 0.0
        %815 = vmatprep.subr.mxu0 0.0
        %816 = vmatpush1.msra.mxu0 0.0
        %817 = vmatprep.subr.mxu0 0.0
        %818 = vmatpush1.msra.mxu0 0.0
        %819 = vmatprep.subr.mxu0 0.0
        %820 = vmatpush1.msra.mxu0 0.0
        %821 = vmatprep.subr.mxu0 0.0
        %822 = vmatpush1.msra.mxu0 0.0
        %823 = vmatprep.subr.mxu0 0.0
        %824 = vmatpush1.msra.mxu0 0.0
        %825 = vmatprep.subr.mxu0 0.0
        %826 = vmatpush1.msra.mxu0 0.0
        %827 = vmatprep.subr.mxu0 0.0
        %828 = vmatpush1.msra.mxu0 0.0
        %829 = vmatprep.subr.mxu0 0.0
        %830 = vmatpush1.msra.mxu0 0.0
        %831 = vmatprep.subr.mxu0 0.0
        %832 = vmatpush1.msra.mxu0 0.0
        %833 = vmatprep.subr.mxu0 0.0
        %834 = vmatpush1.msra.mxu0 0.0
        %835 = vmatprep.subr.mxu0 0.0
        %836 = vmatpush1.msra.mxu0 0.0
        %837 = vmatprep.subr.mxu0 0.0
        %838 = vmatpush1.msra.mxu0 0.0
        %839 = vmatprep.subr.mxu0 0.0
        %840 = vmatpush1.msra.mxu0 0.0
        %841 = vmatprep.subr.mxu0 0.0
        %842 = vmatpush1.msra.mxu0 0.0
        %843 = vmatprep.subr.mxu0 0.0
        %844 = vmatpush1.msra.mxu0 0.0
        %845 = vmatprep.subr.mxu0 0.0
        %846 = vmatpush1.msra.mxu0 0.0
        %847 = vmatprep.subr.mxu0 0.0
        %848 = vmatpush1.msra.mxu0 0.0
        %849 = vmatprep.subr.mxu0 0.0
        %850 = vmatpush1.msra.mxu0 0.0
        %851 = vmatprep.subr.mxu0 0.0
        %852 = vmatpush1.msra.mxu0 0.0
        %853 = vmatprep.subr.mxu0 0.0
        %854 = vmatpush1.msra.mxu0 0.0
        %855 = vmatprep.mubr.f32.mxu0 0.0
        %856 = vmatmul.mubr.f32.gmra.mrb[0].mxu0 %v789
        %v857 = vpop.f32.mrb[0].mxu0
        %v858 = vadd.f32 0.0, %v857
        %v859 = vpop.f32.mrb[0].mxu0
        %860 = vdwg.mxu0
        %v862 = vsel %vm293, %v641, 0
        %864 = vmatprep.subr.mxu0 0.0
        %865 = vmatpush1.msra.mxu0 %v287
        %866 = vmatprep.subr.mxu0 0.0
        %867 = vmatpush1.msra.mxu0 0.0
        %868 = vmatprep.subr.mxu0 0.0
        %869 = vmatpush1.msra.mxu0 0.0
        %870 = vmatprep.subr.mxu0 0.0
        %871 = vmatpush1.msra.mxu0 0.0
        %872 = vmatprep.subr.mxu0 0.0
        %873 = vmatpush1.msra.mxu0 0.0
        %874 = vmatprep.subr.mxu0 0.0
        %875 = vmatpush1.msra.mxu0 0.0
        %876 = vmatprep.subr.mxu0 0.0
        %877 = vmatpush1.msra.mxu0 0.0
        %878 = vmatprep.subr.mxu0 0.0
        %879 = vmatpush1.msra.mxu0 0.0
        %880 = vmatprep.subr.mxu0 0.0
        %881 = vmatpush1.msra.mxu0 0.0
        %882 = vmatprep.subr.mxu0 0.0
        %883 = vmatpush1.msra.mxu0 0.0
        %884 = vmatprep.subr.mxu0 0.0
        %885 = vmatpush1.msra.mxu0 0.0
        %886 = vmatprep.subr.mxu0 0.0
        %887 = vmatpush1.msra.mxu0 0.0
        %888 = vmatprep.subr.mxu0 0.0
        %889 = vmatpush1.msra.mxu0 0.0
        %890 = vmatprep.subr.mxu0 0.0
        %891 = vmatpush1.msra.mxu0 0.0
        %892 = vmatprep.subr.mxu0 0.0
        %893 = vmatpush1.msra.mxu0 0.0
        %894 = vmatprep.subr.mxu0 0.0
        %895 = vmatpush1.msra.mxu0 0.0
        %896 = vmatprep.subr.mxu0 0.0
        %897 = vmatpush1.msra.mxu0 0.0
        %898 = vmatprep.subr.mxu0 0.0
        %899 = vmatpush1.msra.mxu0 0.0
        %900 = vmatprep.subr.mxu0 0.0
        %901 = vmatpush1.msra.mxu0 0.0
        %902 = vmatprep.subr.mxu0 0.0
        %903 = vmatpush1.msra.mxu0 0.0
        %904 = vmatprep.subr.mxu0 0.0
        %905 = vmatpush1.msra.mxu0 0.0
        %906 = vmatprep.subr.mxu0 0.0
        %907 = vmatpush1.msra.mxu0 0.0
        %908 = vmatprep.subr.mxu0 0.0
        %909 = vmatpush1.msra.mxu0 0.0
        %910 = vmatprep.subr.mxu0 0.0
        %911 = vmatpush1.msra.mxu0 0.0
        %912 = vmatprep.subr.mxu0 0.0
        %913 = vmatpush1.msra.mxu0 0.0
        %914 = vmatprep.subr.mxu0 0.0
        %915 = vmatpush1.msra.mxu0 0.0
        %916 = vmatprep.subr.mxu0 0.0
        %917 = vmatpush1.msra.mxu0 0.0
        %918 = vmatprep.subr.mxu0 0.0
        %919 = vmatpush1.msra.mxu0 0.0
        %920 = vmatprep.subr.mxu0 0.0
        %921 = vmatpush1.msra.mxu0 0.0
        %922 = vmatprep.subr.mxu0 0.0
        %923 = vmatpush1.msra.mxu0 0.0
        %924 = vmatprep.subr.mxu0 0.0
        %925 = vmatpush1.msra.mxu0 0.0
        %926 = vmatprep.subr.mxu0 0.0
        %927 = vmatpush1.msra.mxu0 0.0
        %928 = vmatprep.mubr.f32.mxu0 0.0
        %929 = vmatmul.mubr.f32.gmra.mrb[0].mxu0 %v862
        %v930 = vpop.f32.mrb[0].mxu0
        %v931 = vadd.f32 0.0, %v930
        %v932 = vpop.f32.mrb[0].mxu0
        %933 = vdwg.mxu0
        %v934 = vsel %vm293, %v635, 0.0
        %v935 = vsel %vm293, %v637, 0.0
        %v936 = vadd.f32 %v934, %v935
        %v937 = vsel %vm293, %v639, 0.0
        %v938 = vadd.f32 %v936, %v937
        %v939 = vsel %vm293, %v641, 0.0
        %v940 = vadd.f32 %v938, %v939
        %v941 = vrcp.pop 4.0
        %v942 = vmul.f32 %v940, %v941
        %943 = vst.msk [vmem:[%s275] sm:$0xff] %vm293, %v712
        %944 = vst.msk [vmem:[%s275 + $0x8] sm:$0xff] %vm293, %v785
        %945 = vst.msk [vmem:[%s275 + $0x10] sm:$0xff] %vm293, %v858
        %946 = vst.msk [vmem:[%s275 + $0x18] sm:$0xff] %vm293, %v931
        %947 = vst.msk [vmem:[%s255] sm:$0xff] %vm293, %v942
        %p948 = scmp.lt.s32.totalorder %s20, 1
        %s949 = scalar_select %p948, %s20, 1
        %s950 = smul.addr %s949, 4
        %s951 = smul.addr %s950, 8
        %s952 = scalar_lea.vmem %s4, %s951
        %s953 = sand.u32 %s153, 1
        %s954 = scalar_lea.sflag [#allocation3], %s953
        %s955 = sand.u32 %s153, 1
        %s956 = smul.addr %s955, 8
        %s957 = scalar_lea.vmem [#allocation2], %s956
        // Predicated region
        $region37: #{transformer_decoder_forward.24} parent=35 // pred_check
          %p958 = pneg %p137
        $region38: #{transformer_decoder_forward.24} parent=35 // pred_check_branch
          %960 = sbr.rel (%p958) target = $region40
        $region39: #{transformer_decoder_forward.24} parent=35 // pred_region
          _
        $region40: #{transformer_decoder_forward.24} parent=35 // pred_fallthru
          _
        // Predicated region
        $region41: #{transformer_decoder_forward.24} parent=35 // pred_check
          %p961 = pneg %p163
        $region42: #{transformer_decoder_forward.24} parent=35 // pred_check_branch
          %963 = sbr.rel (%p961) target = $region44
        $region43: #{transformer_decoder_forward.24} parent=35 // pred_region
          %s965 = ssub.s32 128, 128
          %966 = vsyncadd %s954, %s965
          %s967 = smul.addr %s20, 128
          %s968 = scalar_lea.hbm %s5, %s967
          %s970 = sshll.u32 %s957, 4
          %s971 = int_to_ptr.vmem [resolvable:$true] %s970
          %973 = dma.vmem_to_hbm [thread:$0]  %s971, 128, %s968, %s954
        $region44: #{transformer_decoder_forward.24} parent=35 // pred_fallthru
          _
      $region36: #{transformer_decoder_forward.24} parent=5 // pred_fallthru
        _
      %p974 = scmp.le.s32.totalorder 2, %s15
      // Predicated region
      $region45: #{transformer_decoder_forward.24} parent=5 // pred_check
        %p975 = pneg %p974
      $region46: #{transformer_decoder_forward.24} parent=5 // pred_check_branch
        %977 = sbr.rel (%p975) target = $region48
      $region47: #{transformer_decoder_forward.24} parent=5 // pred_region
        %s978 = ssub.s32 %s15, 2
        // Predicated region
        $region49: #{transformer_decoder_forward.24} parent=47 // pred_check
          %p979 = pneg %p143
        $region50: #{transformer_decoder_forward.24} parent=47 // pred_check_branch
          %981 = sbr.rel (%p979) target = $region52
        $region51: #{transformer_decoder_forward.24} parent=47 // pred_region
          %p982 = scmp.lt.s32.totalorder %s21, 1
          %s983 = scalar_select %p982, %s21, 1
          %s984 = smul.addr %s983, 4
          %s985 = smul.addr %s984, 8
          %s986 = scalar_lea.vmem %s4, %s985
        $region52: #{transformer_decoder_forward.24} parent=47 // pred_fallthru
          _
        // Predicated region
        $region53: #{transformer_decoder_forward.24} parent=47 // pred_check
          %p987 = pneg %p169
        $region54: #{transformer_decoder_forward.24} parent=47 // pred_check_branch
          %989 = sbr.rel (%p987) target = $region56
        $region55: #{transformer_decoder_forward.24} parent=47 // pred_region
          %s990 = sand.u32 %s154, 1
          %s991 = scalar_lea.sflag [#allocation3], %s990
          %s992 = sand.u32 %s154, 1
          %s993 = smul.addr %s992, 8
          %s994 = scalar_lea.vmem [#allocation2], %s993
          %995 = dma.done %s991, 128
        $region56: #{transformer_decoder_forward.24} parent=47 // pred_fallthru
          _
      $region48: #{transformer_decoder_forward.24} parent=5 // pred_fallthru
        _
    $region6: #{transformer_decoder_forward.24} parent=1 // loop_footer
      %s19 = sadd.s32 1, %s15
    $region7: #{transformer_decoder_forward.24} parent=1 // loop_footer_branch
      %14 = sbr.rel target = $region3
    $region8: #{transformer_decoder_forward.24} parent=1 // loop_exit
      _
    %996 = vsyncpa [#allocation3], 1
    %s997 = scalar_lea.sflag [#allocation3], 1
    %998 = vsyncpa %s997, 1

// kernel: transformer_decoder_forward.28
$region0: #{transformer_decoder_forward.28}
  #allocation0 [shape = 'u32[]', space=smem, size = 0x4, offset = 0x4, fixed_abs, tag = 'smem constant byte address 0x4 - core index']
  #allocation1 [shape = 'u32[144,128]{1,0:T(1,128)}', space=vmem, size = 0x12000, scoped, tag = 'internal scratch']
  #allocation2 [shape = 'f32[20,64]{1,0:T(8,128)}', space=vmem, size = 0x3000, scoped, tag = 'scratch operand']
  %s0 = inlined_call_operand.vmem [shape: f32[20,32], index: 0, kind: input, shape index: {}]
  %s1 = inlined_call_operand.vmem [shape: f32[32,64], index: 1, kind: input, shape index: {}]
  %s2 = inlined_call_operand.vmem [shape: f32[1,64], index: 2, kind: input, shape index: {}]
  %s3 = inlined_call_operand.vmem [shape: f32[20,64], index: 3, kind: output, shape index: {}]
  %s4 = sld [smem:[#allocation0]]
  $region30: #{transformer_decoder_forward.28} parent=0
    _
  %s6 = ssub.s32 1, %s4
  %s7 = scalar_select 0, %s6, %s4
  // Predicated region
  $region2: #{transformer_decoder_forward.28} parent=0 // pred_check
    _
  $region3: #{transformer_decoder_forward.28} parent=0 // pred_check_branch
    %9 = sbr.rel (0) target = $region5
  $region4: #{transformer_decoder_forward.28} parent=0 // pred_region
    _
  $region5: #{transformer_decoder_forward.28} parent=0 // pred_fallthru
    _
  // Predicated region
  $region6: #{transformer_decoder_forward.28} parent=0 // pred_check
    _
  $region7: #{transformer_decoder_forward.28} parent=0 // pred_check_branch
    %11 = sbr.rel (0) target = $region9
  $region8: #{transformer_decoder_forward.28} parent=0 // pred_region
    _
  $region9: #{transformer_decoder_forward.28} parent=0 // pred_fallthru
    _
  // Predicated region
  $region10: #{transformer_decoder_forward.28} parent=0 // pred_check
    _
  $region11: #{transformer_decoder_forward.28} parent=0 // pred_check_branch
    %13 = sbr.rel (0) target = $region13
  $region12: #{transformer_decoder_forward.28} parent=0 // pred_region
    _
  $region13: #{transformer_decoder_forward.28} parent=0 // pred_fallthru
    _
  %p14 = scmp.eq.s32.totalorder 0, 0
  // Predicated region
  $region14: #{transformer_decoder_forward.28} parent=0 // pred_check
    %p15 = pneg %p14
  $region15: #{transformer_decoder_forward.28} parent=0 // pred_check_branch
    %17 = sbr.rel (%p15) target = $region17
  $region16: #{transformer_decoder_forward.28} parent=0 // pred_region
    %vm18 = vcmask 523264
    %19 = vst.msk [vmem:[#allocation2] sm:$0xff] %vm18, 0.0
    %20 = vst.msk [vmem:[#allocation2 + $0x8] sm:$0xff] %vm18, 0.0
    %vm21 = vcmask 519168
    %22 = vst.msk [vmem:[#allocation2 + $0x10] sm:$0xf] %vm21, 0.0
  $region17: #{transformer_decoder_forward.28} parent=0 // pred_fallthru
    _
  %v23 = vld [vmem:[#allocation2] sm:$0xff]
  %v24 = vld [vmem:[#allocation2 + $0x8] sm:$0xff]
  %v25 = vld [vmem:[#allocation2 + $0x10] sm:$0xf]
  %v26 = vld [vmem:[%s0] sm:$0xff]
  %v27 = vld [vmem:[%s0 + $0x8] sm:$0xff]
  %v28 = vld [vmem:[%s0 + $0x10] sm:$0xf]
  %v29 = vld [vmem:[%s1] sm:$0xff]
  %v30 = vld [vmem:[%s1 + $0x8] sm:$0xff]
  %v31 = vld [vmem:[%s1 + $0x10] sm:$0xff]
  %v32 = vld [vmem:[%s1 + $0x18] sm:$0xff]
  %vm33 = vcmask 261120
  %v35 = vsel %vm33, %v26, 0
  %v38 = vsel %vm33, %v27, 0
  %v41 = vsel %vm33, %v28, 0
  %43 = vmatprep.subr.mxu0 0.0
  %44 = vmatpush1.msra.mxu0 %v29
  %45 = vmatprep.subr.mxu0 0.0
  %46 = vmatpush1.msra.mxu0 %v30
  %47 = vmatprep.subr.mxu0 0.0
  %48 = vmatpush1.msra.mxu0 %v31
  %49 = vmatprep.subr.mxu0 0.0
  %50 = vmatpush1.msra.mxu0 %v32
  %51 = vmatprep.subr.mxu0 0.0
  %52 = vmatpush1.msra.mxu0 0.0
  %53 = vmatprep.subr.mxu0 0.0
  %54 = vmatpush1.msra.mxu0 0.0
  %55 = vmatprep.subr.mxu0 0.0
  %56 = vmatpush1.msra.mxu0 0.0
  %57 = vmatprep.subr.mxu0 0.0
  %58 = vmatpush1.msra.mxu0 0.0
  %59 = vmatprep.subr.mxu0 0.0
  %60 = vmatpush1.msra.mxu0 0.0
  %61 = vmatprep.subr.mxu0 0.0
  %62 = vmatpush1.msra.mxu0 0.0
  %63 = vmatprep.subr.mxu0 0.0
  %64 = vmatpush1.msra.mxu0 0.0
  %65 = vmatprep.subr.mxu0 0.0
  %66 = vmatpush1.msra.mxu0 0.0
  %67 = vmatprep.subr.mxu0 0.0
  %68 = vmatpush1.msra.mxu0 0.0
  %69 = vmatprep.subr.mxu0 0.0
  %70 = vmatpush1.msra.mxu0 0.0
  %71 = vmatprep.subr.mxu0 0.0
  %72 = vmatpush1.msra.mxu0 0.0
  %73 = vmatprep.subr.mxu0 0.0
  %74 = vmatpush1.msra.mxu0 0.0
  %75 = vmatprep.subr.mxu0 0.0
  %76 = vmatpush1.msra.mxu0 0.0
  %77 = vmatprep.subr.mxu0 0.0
  %78 = vmatpush1.msra.mxu0 0.0
  %79 = vmatprep.subr.mxu0 0.0
  %80 = vmatpush1.msra.mxu0 0.0
  %81 = vmatprep.subr.mxu0 0.0
  %82 = vmatpush1.msra.mxu0 0.0
  %83 = vmatprep.subr.mxu0 0.0
  %84 = vmatpush1.msra.mxu0 0.0
  %85 = vmatprep.subr.mxu0 0.0
  %86 = vmatpush1.msra.mxu0 0.0
  %87 = vmatprep.subr.mxu0 0.0
  %88 = vmatpush1.msra.mxu0 0.0
  %89 = vmatprep.subr.mxu0 0.0
  %90 = vmatpush1.msra.mxu0 0.0
  %91 = vmatprep.subr.mxu0 0.0
  %92 = vmatpush1.msra.mxu0 0.0
  %93 = vmatprep.subr.mxu0 0.0
  %94 = vmatpush1.msra.mxu0 0.0
  %95 = vmatprep.subr.mxu0 0.0
  %96 = vmatpush1.msra.mxu0 0.0
  %97 = vmatprep.subr.mxu0 0.0
  %98 = vmatpush1.msra.mxu0 0.0
  %99 = vmatprep.subr.mxu0 0.0
  %100 = vmatpush1.msra.mxu0 0.0
  %101 = vmatprep.subr.mxu0 0.0
  %102 = vmatpush1.msra.mxu0 0.0
  %103 = vmatprep.subr.mxu0 0.0
  %104 = vmatpush1.msra.mxu0 0.0
  %105 = vmatprep.subr.mxu0 0.0
  %106 = vmatpush1.msra.mxu0 0.0
  %107 = vmatprep.mubr.f32.mxu0 0.0
  %108 = vmatmul.mubr.f32.gmra.mrb[0].mxu0 %v35
  %v109 = vpop.f32.mrb[0].mxu0
  %v110 = vadd.f32 0.0, %v109
  %v111 = vpop.f32.mrb[0].mxu0
  %112 = vmatprep.mubr.f32.mxu0 0.0
  %113 = vmatmul.mubr.f32.gmra.mrb[0].mxu0 %v38
  %v114 = vpop.f32.mrb[0].mxu0
  %v115 = vadd.f32 0.0, %v114
  %v116 = vpop.f32.mrb[0].mxu0
  %117 = vmatprep.mubr.f32.mxu0 0.0
  %118 = vmatmul.mubr.f32.gmra.mrb[0].mxu0 %v41
  %v119 = vpop.f32.mrb[0].mxu0
  %v120 = vadd.f32 0.0, %v119
  %v121 = vpop.f32.mrb[0].mxu0
  %122 = vdwg.mxu0
  %v123 = vadd.f32 %v23, %v110
  %v124 = vadd.f32 %v24, %v115
  %v125 = vadd.f32 %v25, %v120
  %vm126 = vcmask 523264
  %127 = vst.msk [vmem:[#allocation2] sm:$0xff] %vm126, %v123
  %128 = vst.msk [vmem:[#allocation2 + $0x8] sm:$0xff] %vm126, %v124
  %vm129 = vcmask 519168
  %130 = vst.msk [vmem:[#allocation2 + $0x10] sm:$0xf] %vm129, %v125
  // Predicated region
  $region18: #{transformer_decoder_forward.28} parent=0 // pred_check
    %p131 = pneg %p14
  $region19: #{transformer_decoder_forward.28} parent=0 // pred_check_branch
    %133 = sbr.rel (%p131) target = $region21
  $region20: #{transformer_decoder_forward.28} parent=0 // pred_region
    %v134 = vld [vmem:[#allocation2] sm:$0xff]
    %v135 = vld [vmem:[#allocation2 + $0x8] sm:$0xff]
    %v136 = vld [vmem:[#allocation2 + $0x10] sm:$0xf]
    %v137 = vld [vmem:[%s2] sm:$0x1]
    %v139 = vlaneseq
    %v140 = vshrl.u32 %v139, 7
    %v141 = vsub.s32 0, %v140
    %v142 = vrot.slane %v137, %v141
    %v144 = vadd.f32 %v134, %v142
    %v145 = vadd.f32 %v135, %v142
    %v146 = vadd.f32 %v136, %v142
    %147 = vst.msk [vmem:[%s3] sm:$0xff] %vm126, %v144
    %148 = vst.msk [vmem:[%s3 + $0x8] sm:$0xff] %vm126, %v145
    %149 = vst.msk [vmem:[%s3 + $0x10] sm:$0xf] %vm129, %v146
  $region21: #{transformer_decoder_forward.28} parent=0 // pred_fallthru
    _
  // Predicated region
  $region22: #{transformer_decoder_forward.28} parent=0 // pred_check
    _
  $region23: #{transformer_decoder_forward.28} parent=0 // pred_check_branch
    %151 = sbr.rel (0) target = $region25
  $region24: #{transformer_decoder_forward.28} parent=0 // pred_region
    _
  $region25: #{transformer_decoder_forward.28} parent=0 // pred_fallthru
    _
  // Predicated region
  $region26: #{transformer_decoder_forward.28} parent=0 // pred_check
    _
  $region27: #{transformer_decoder_forward.28} parent=0 // pred_check_branch
    %153 = sbr.rel (0) target = $region29
  $region28: #{transformer_decoder_forward.28} parent=0 // pred_region
    _
  $region29: #{transformer_decoder_forward.28} parent=0 // pred_fallthru
    _

// kernel: transformer_decoder_forward.45
$region0: #{transformer_decoder_forward.45}
  #allocation0 [shape = 'u32[]', space=smem, size = 0x4, offset = 0x4, fixed_abs, tag = 'smem constant byte address 0x4 - core index']
  #allocation1 [shape = 'u32[144,128]{1,0:T(1,128)}', space=vmem, size = 0x12000, scoped, tag = 'internal scratch']
  %s0 = inlined_call_operand.vmem [shape: f32[16,32], index: 0, kind: input, shape index: {}]
  %s1 = inlined_call_operand.vmem [shape: f32[1,32], index: 1, kind: input, shape index: {}]
  %s2 = inlined_call_operand.vmem [shape: f32[1,32], index: 2, kind: input, shape index: {}]
  %s3 = inlined_call_operand.hbm [shape: f32[16,32], index: 3, kind: output, shape index: {}]
  %s4 = sld [smem:[#allocation0]]
  $region22: #{transformer_decoder_forward.45} parent=0
    _
  %s6 = ssub.s32 1, %s4
  %s7 = scalar_select 0, %s6, %s4
  $region1: #{transformer_decoder_forward.45} parent=0
    #allocation2 [shape = 'u8[8192]{0}', space=vmem, size = 0x2000, scoped, tag = 'output window, operand 0, single buffered']
    #allocation3 [shape = 's32[1]{0}', space=sflag, size = 0x4, scoped, tag = 'scoped memory for transformer_decoder_forward.45']
    %8 = vsyncpa [#allocation3], 0
    // Predicated region
    $region2: #{transformer_decoder_forward.45} parent=1 // pred_check
      _
    $region3: #{transformer_decoder_forward.45} parent=1 // pred_check_branch
      %10 = sbr.rel (0) target = $region5
    $region4: #{transformer_decoder_forward.45} parent=1 // pred_region
      _
    $region5: #{transformer_decoder_forward.45} parent=1 // pred_fallthru
      _
    // Predicated region
    $region6: #{transformer_decoder_forward.45} parent=1 // pred_check
      _
    $region7: #{transformer_decoder_forward.45} parent=1 // pred_check_branch
      %12 = sbr.rel (0) target = $region9
    $region8: #{transformer_decoder_forward.45} parent=1 // pred_region
      _
    $region9: #{transformer_decoder_forward.45} parent=1 // pred_fallthru
      _
    // Predicated region
    $region10: #{transformer_decoder_forward.45} parent=1 // pred_check
      _
    $region11: #{transformer_decoder_forward.45} parent=1 // pred_check_branch
      %14 = sbr.rel (0) target = $region13
    $region12: #{transformer_decoder_forward.45} parent=1 // pred_region
      _
    $region13: #{transformer_decoder_forward.45} parent=1 // pred_fallthru
      _
    %v15 = vld [vmem:[%s0] sm:$0xff]
    %v16 = vld [vmem:[%s0 + $0x8] sm:$0xff]
    %vm17 = vcmask 261120
    %v18 = vsel %vm17, %v15, 0.0
    %19 = vadd.xlane.f32.xlu0 %v18
    %v20 = vpop.xlane.xlu0 %19
    %v21 = vsel %vm17, %v16, 0.0
    %22 = vadd.xlane.f32.xlu0 %v21
    %v23 = vpop.xlane.xlu0 %22
    %v24 = vrcp.pop 32.0
    %v25 = vmul.f32 %v20, %v24
    %v26 = vmul.f32 %v23, %v24
    %v27 = vsub.f32 %v15, %v25
    %v28 = vsub.f32 %v16, %v26
    %v29 = vmul.f32 %v27, %v27
    %v30 = vmul.f32 %v28, %v28
    %v31 = vsel %vm17, %v29, 0.0
    %32 = vadd.xlane.f32.xlu0 %v31
    %v33 = vpop.xlane.xlu0 %32
    %v34 = vsel %vm17, %v30, 0.0
    %35 = vadd.xlane.f32.xlu0 %v34
    %v36 = vpop.xlane.xlu0 %35
    %v37 = vmul.f32 %v33, %v24
    %v38 = vmul.f32 %v36, %v24
    %v39 = vadd.f32 %v37, 1e-05
    %v40 = vadd.f32 %v38, 1e-05
    %v41 = vrsqrt.pop %v39
    %v42 = vrsqrt.pop %v40
    %v43 = vmul.f32 %v27, %v41
    %v44 = vmul.f32 %v28, %v42
    %v45 = vld [vmem:[%s1] sm:$0x1]
    %v47 = vlaneseq
    %v48 = vshrl.u32 %v47, 7
    %v49 = vsub.s32 0, %v48
    %v50 = vrot.slane %v45, %v49
    %v52 = vmul.f32 %v43, %v50
    %v53 = vmul.f32 %v44, %v50
    %v54 = vld [vmem:[%s2] sm:$0x1]
    %v56 = vlaneseq
    %v57 = vshrl.u32 %v56, 7
    %v58 = vsub.s32 0, %v57
    %v59 = vrot.slane %v54, %v58
    %v61 = vadd.f32 %v52, %v59
    %v62 = vadd.f32 %v53, %v59
    %63 = vst.msk [vmem:[#allocation2] sm:$0xff] %vm17, %v61
    %64 = vst.msk [vmem:[#allocation2 + $0x8] sm:$0xff] %vm17, %v62
    // Predicated region
    $region14: #{transformer_decoder_forward.45} parent=1 // pred_check
      _
    $region15: #{transformer_decoder_forward.45} parent=1 // pred_check_branch
      %66 = sbr.rel (0) target = $region17
    $region16: #{transformer_decoder_forward.45} parent=1 // pred_region
      %s68 = ssub.s32 256, 256
      %69 = vsyncadd [#allocation3], %s68
      %s70 = sshll.u32 [#allocation2], 4
      %s71 = int_to_ptr.vmem [resolvable:$true] %s70
      %76 = dma.vmem_to_hbm [thread:$0]  %s71, 256, %s3, [#allocation3], 128, 128, 8
    $region17: #{transformer_decoder_forward.45} parent=1 // pred_fallthru
      _
    // Predicated region
    $region18: #{transformer_decoder_forward.45} parent=1 // pred_check
      _
    $region19: #{transformer_decoder_forward.45} parent=1 // pred_check_branch
      %78 = sbr.rel (0) target = $region21
    $region20: #{transformer_decoder_forward.45} parent=1 // pred_region
      %79 = dma.done [#allocation3], 256
    $region21: #{transformer_decoder_forward.45} parent=1 // pred_fallthru
      _
    %80 = vsyncpa [#allocation3], 1

// kernel: transformer_decoder_forward.29
$region0: #{transformer_decoder_forward.29}
  #allocation0 [shape = 'u32[]', space=smem, size = 0x4, offset = 0x4, fixed_abs, tag = 'smem constant byte address 0x4 - core index']
  #allocation1 [shape = 'u32[144,128]{1,0:T(1,128)}', space=vmem, size = 0x12000, scoped, tag = 'internal scratch']
  %s0 = inlined_call_operand.vmem [shape: f32[2,4,8,8], index: 0, kind: input, shape index: {}]
  %s1 = inlined_call_operand.vmem [shape: f32[2,4,10,8], index: 1, kind: input, shape index: {}]
  %s2 = inlined_call_operand.vmem [shape: f32[2,4,10,8], index: 2, kind: input, shape index: {}]
  %s3 = inlined_call_operand.vmem [shape: f32[2,4,8,8], index: 3, kind: output, shape index: {0}]
  %s4 = inlined_call_operand.hbm [shape: f32[2,8,10], index: 4, kind: output, shape index: {1}]
  %5 = xla_tuple %s3, %s4
  %s6 = sld [smem:[#allocation0]]
  $region53: #{transformer_decoder_forward.29} parent=0
    _
  %s8 = ssub.s32 1, %s6
  %s9 = scalar_select 0, %s8, %s6
  $region1: #{transformer_decoder_forward.29} parent=0
    #allocation2 [shape = 'u8[8192]{0}', space=vmem, size = 0x2000, scoped, tag = 'output window, operand 1']
    #allocation3 [shape = 's32[2]{0}', space=sflag, size = 0x8, scoped, tag = 'scoped memory for transformer_decoder_forward.29']
    %10 = vsyncpa [#allocation3], 0
    %s11 = scalar_lea.sflag [#allocation3], 1
    %12 = vsyncpa %s11, 0
    loop: start=0, step=1, limit=4
    $region2: #{transformer_decoder_forward.29} parent=1 // loop_pre_header
      _
    $region3: #{transformer_decoder_forward.29} parent=1 // loop_header
      %s14 = sphi 0, %s18
      %p15 = scmp.ge.s32.totalorder %s14, 4
      %s24 = sphi 0, %s26
      %s27 = sphi 0, %s24
      %s28 = sphi 0, %s27
      %s44 = sphi 0, %s28
      %s50 = sphi 0, %s52
      %s53 = sphi 0, %s50
      %s54 = sphi 0, %s53
      %s70 = sphi 0, %s54
      %s76 = sphi 0, %s78
      %s79 = sphi 0, %s76
      %s80 = sphi 0, %s79
      %s96 = sphi 0, %s80
      %s102 = sphi 0, %s104
      %s105 = sphi 0, %s102
      %s106 = sphi 0, %s105
      %s122 = sphi 0, %s106
      %s128 = sphi 0, %s130
      %s131 = sphi 0, %s128
      %s132 = sphi 0, %s131
      %s148 = sphi 0, %s132
    $region4: #{transformer_decoder_forward.29} parent=1 // loop_header_branch
      %17 = sbr.rel (%p15) target = $region8
    $region5: #{transformer_decoder_forward.29} parent=1 // loop_body
      %s19 = ssub.s32 %s14, 1
      %s20 = ssub.s32 %s14, 2
      %s21 = sadd.s32 %s14, 1
      %s22 = ssub.s32 %s14, %s21
      %p23 = scmp.eq.s32.totalorder %s22, 0
      %s25 = sadd.s32 %s24, 1
      %s26 = scalar_select %p23, %s24, %s25
      %p29 = pneg %p23
      %p30 = scmp.eq.s32.totalorder %s14, 1
      %p31 = por %p29, %p30
      %p32 = scmp.ne.s32.totalorder %s24, %s27
      %p33 = scmp.eq.s32.totalorder %s14, 0
      %p34 = por %p32, %p33
      %p35 = scmp.ne.s32.totalorder %s24, %s27
      %p36 = scmp.eq.s32.totalorder %s19, 1
      %p37 = por %p35, %p36
      %p38 = scmp.ne.s32.totalorder %s27, %s28
      %p39 = scmp.eq.s32.totalorder %s19, 0
      %p40 = por %p38, %p39
      %p41 = scmp.ne.s32.totalorder %s27, %s28
      %p42 = scmp.eq.s32.totalorder %s20, 1
      %p43 = por %p41, %p42
      %p45 = scmp.ne.s32.totalorder %s28, %s44
      %p46 = scmp.eq.s32.totalorder %s20, 0
      %p47 = por %p45, %p46
      %s48 = ssub.s32 %s14, %s21
      %p49 = scmp.eq.s32.totalorder %s48, 0
      %s51 = sadd.s32 %s50, 1
      %s52 = scalar_select %p49, %s50, %s51
      %p55 = pneg %p49
      %p56 = scmp.eq.s32.totalorder %s14, 1
      %p57 = por %p55, %p56
      %p58 = scmp.ne.s32.totalorder %s50, %s53
      %p59 = scmp.eq.s32.totalorder %s14, 0
      %p60 = por %p58, %p59
      %p61 = scmp.ne.s32.totalorder %s50, %s53
      %p62 = scmp.eq.s32.totalorder %s19, 1
      %p63 = por %p61, %p62
      %p64 = scmp.ne.s32.totalorder %s53, %s54
      %p65 = scmp.eq.s32.totalorder %s19, 0
      %p66 = por %p64, %p65
      %p67 = scmp.ne.s32.totalorder %s53, %s54
      %p68 = scmp.eq.s32.totalorder %s20, 1
      %p69 = por %p67, %p68
      %p71 = scmp.ne.s32.totalorder %s54, %s70
      %p72 = scmp.eq.s32.totalorder %s20, 0
      %p73 = por %p71, %p72
      %s74 = ssub.s32 %s14, %s21
      %p75 = scmp.eq.s32.totalorder %s74, 0
      %s77 = sadd.s32 %s76, 1
      %s78 = scalar_select %p75, %s76, %s77
      %p81 = pneg %p75
      %p82 = scmp.eq.s32.totalorder %s14, 1
      %p83 = por %p81, %p82
      %p84 = scmp.ne.s32.totalorder %s76, %s79
      %p85 = scmp.eq.s32.totalorder %s14, 0
      %p86 = por %p84, %p85
      %p87 = scmp.ne.s32.totalorder %s76, %s79
      %p88 = scmp.eq.s32.totalorder %s19, 1
      %p89 = por %p87, %p88
      %p90 = scmp.ne.s32.totalorder %s79, %s80
      %p91 = scmp.eq.s32.totalorder %s19, 0
      %p92 = por %p90, %p91
      %p93 = scmp.ne.s32.totalorder %s79, %s80
      %p94 = scmp.eq.s32.totalorder %s20, 1
      %p95 = por %p93, %p94
      %p97 = scmp.ne.s32.totalorder %s80, %s96
      %p98 = scmp.eq.s32.totalorder %s20, 0
      %p99 = por %p97, %p98
      %s100 = ssub.s32 %s14, %s21
      %p101 = scmp.eq.s32.totalorder %s100, 0
      %s103 = sadd.s32 %s102, 1
      %s104 = scalar_select %p101, %s102, %s103
      %p107 = pneg %p101
      %p108 = scmp.eq.s32.totalorder %s14, 1
      %p109 = por %p107, %p108
      %p110 = scmp.ne.s32.totalorder %s102, %s105
      %p111 = scmp.eq.s32.totalorder %s14, 0
      %p112 = por %p110, %p111
      %p113 = scmp.ne.s32.totalorder %s102, %s105
      %p114 = scmp.eq.s32.totalorder %s19, 1
      %p115 = por %p113, %p114
      %p116 = scmp.ne.s32.totalorder %s105, %s106
      %p117 = scmp.eq.s32.totalorder %s19, 0
      %p118 = por %p116, %p117
      %p119 = scmp.ne.s32.totalorder %s105, %s106
      %p120 = scmp.eq.s32.totalorder %s20, 1
      %p121 = por %p119, %p120
      %p123 = scmp.ne.s32.totalorder %s106, %s122
      %p124 = scmp.eq.s32.totalorder %s20, 0
      %p125 = por %p123, %p124
      %s126 = ssub.s32 %s14, %s21
      %p127 = scmp.eq.s32.totalorder %s126, 0
      %s129 = sadd.s32 %s128, 1
      %s130 = scalar_select %p127, %s128, %s129
      %p133 = pneg %p127
      %p134 = scmp.eq.s32.totalorder %s14, 1
      %p135 = por %p133, %p134
      %p136 = scmp.ne.s32.totalorder %s128, %s131
      %p137 = scmp.eq.s32.totalorder %s14, 0
      %p138 = por %p136, %p137
      %p139 = scmp.ne.s32.totalorder %s128, %s131
      %p140 = scmp.eq.s32.totalorder %s19, 1
      %p141 = por %p139, %p140
      %p142 = scmp.ne.s32.totalorder %s131, %s132
      %p143 = scmp.eq.s32.totalorder %s19, 0
      %p144 = por %p142, %p143
      %p145 = scmp.ne.s32.totalorder %s131, %s132
      %p146 = scmp.eq.s32.totalorder %s20, 1
      %p147 = por %p145, %p146
      %p149 = scmp.ne.s32.totalorder %s132, %s148
      %p150 = scmp.eq.s32.totalorder %s20, 0
      %p151 = por %p149, %p150
      %p152 = scmp.le.s32.totalorder 1, %s14
      %p153 = scmp.lt.s32.totalorder %s14, 3
      %p154 = pnand %p152, %p153
      %p155 = pneg %p154
      // Predicated region
      $region9: #{transformer_decoder_forward.29} parent=5 // pred_check
        _
      $region10: #{transformer_decoder_forward.29} parent=5 // pred_check_branch
        %157 = sbr.rel (%p154) target = $region12
      $region11: #{transformer_decoder_forward.29} parent=5 // pred_region
        %s158 = ssub.s32 %s14, 1
      $region12: #{transformer_decoder_forward.29} parent=5 // pred_fallthru
        _
      %p159 = scmp.lt.s32.totalorder %s14, 2
      // Predicated region
      $region13: #{transformer_decoder_forward.29} parent=5 // pred_check
        %p160 = pneg %p159
      $region14: #{transformer_decoder_forward.29} parent=5 // pred_check_branch
        %162 = sbr.rel (%p160) target = $region16
      $region15: #{transformer_decoder_forward.29} parent=5 // pred_region
        // Predicated region
        $region17: #{transformer_decoder_forward.29} parent=15 // pred_check
          %p163 = pneg %p34
        $region18: #{transformer_decoder_forward.29} parent=15 // pred_check_branch
          %165 = sbr.rel (%p163) target = $region20
        $region19: #{transformer_decoder_forward.29} parent=15 // pred_region
          %p166 = scmp.lt.s32.totalorder %s14, 1
          %s167 = scalar_select %p166, %s14, 1
          %s168 = smul.addr %s167, 4
          %s169 = smul.addr %s168, 8
          %s170 = scalar_lea.vmem %s0, %s169
        $region20: #{transformer_decoder_forward.29} parent=15 // pred_fallthru
          _
        // Predicated region
        $region21: #{transformer_decoder_forward.29} parent=15 // pred_check
          %p171 = pneg %p60
        $region22: #{transformer_decoder_forward.29} parent=15 // pred_check_branch
          %173 = sbr.rel (%p171) target = $region24
        $region23: #{transformer_decoder_forward.29} parent=15 // pred_region
          %p174 = scmp.lt.s32.totalorder %s14, 1
          %s175 = scalar_select %p174, %s14, 1
          %s176 = smul.addr %s175, 8
          %s177 = smul.addr %s176, 8
          %s178 = scalar_lea.vmem %s1, %s177
        $region24: #{transformer_decoder_forward.29} parent=15 // pred_fallthru
          _
        // Predicated region
        $region25: #{transformer_decoder_forward.29} parent=15 // pred_check
          %p179 = pneg %p86
        $region26: #{transformer_decoder_forward.29} parent=15 // pred_check_branch
          %181 = sbr.rel (%p179) target = $region28
        $region27: #{transformer_decoder_forward.29} parent=15 // pred_region
          %p182 = scmp.lt.s32.totalorder %s14, 1
          %s183 = scalar_select %p182, %s14, 1
          %s184 = smul.addr %s183, 8
          %s185 = smul.addr %s184, 8
          %s186 = scalar_lea.vmem %s2, %s185
        $region28: #{transformer_decoder_forward.29} parent=15 // pred_fallthru
          _
      $region16: #{transformer_decoder_forward.29} parent=5 // pred_fallthru
        _
      %p187 = scmp.le.s32.totalorder 1, %s14
      %p188 = scmp.lt.s32.totalorder %s14, 3
      %p189 = pnand %p187, %p188
      %p190 = pneg %p189
      // Predicated region
      $region29: #{transformer_decoder_forward.29} parent=5 // pred_check
        _
      $region30: #{transformer_decoder_forward.29} parent=5 // pred_check_branch
        %192 = sbr.rel (%p189) target = $region32
      $region31: #{transformer_decoder_forward.29} parent=5 // pred_region
        %s193 = ssub.s32 %s14, 1
        %p194 = scmp.lt.s32.totalorder %s19, 1
        %s195 = scalar_select %p194, %s19, 1
        %s196 = smul.addr %s195, 4
        %s197 = smul.addr %s196, 8
        %s198 = scalar_lea.vmem %s0, %s197
        %p199 = pneg %p40
        %p200 = pneg %p37
        %p201 = scmp.lt.s32.totalorder %s19, 1
        %s202 = scalar_select %p201, %s19, 1
        %s203 = smul.addr %s202, 8
        %s204 = smul.addr %s203, 8
        %s205 = scalar_lea.vmem %s1, %s204
        %p206 = pneg %p66
        %p207 = pneg %p63
        %p208 = scmp.lt.s32.totalorder %s19, 1
        %s209 = scalar_select %p208, %s19, 1
        %s210 = smul.addr %s209, 8
        %s211 = smul.addr %s210, 8
        %s212 = scalar_lea.vmem %s2, %s211
        %p213 = pneg %p92
        %p214 = pneg %p89
        %p215 = pneg %p118
        %p216 = pneg %p115
        %p217 = scmp.lt.s32.totalorder %s19, 1
        %s218 = scalar_select %p217, %s19, 1
        %s219 = smul.addr %s218, 4
        %s220 = smul.addr %s219, 8
        %s221 = scalar_lea.vmem %s3, %s220
        %p222 = pneg %p144
        %p223 = pneg %p141
        %s224 = sand.u32 %s131, 1
        %s225 = scalar_lea.sflag [#allocation3], %s224
        %s226 = sand.u32 %s131, 1
        %s227 = smul.addr %s226, 8
        %s228 = scalar_lea.vmem [#allocation2], %s227
        %p229 = scmp.lt.s32.totalorder %s19, 1
        %s230 = scalar_select %p229, %s19, 1
        %s231 = smul.addr %s230, 4
        %s232 = smul.addr %s231, 8
        %s233 = scalar_lea.vmem %s0, %s232
        %p234 = scmp.lt.s32.totalorder %s19, 1
        %s235 = scalar_select %p234, %s19, 1
        %s236 = smul.addr %s235, 8
        %s237 = smul.addr %s236, 8
        %s238 = scalar_lea.vmem %s1, %s237
        %p239 = scmp.lt.s32.totalorder %s19, 1
        %s240 = scalar_select %p239, %s19, 1
        %s241 = smul.addr %s240, 8
        %s242 = smul.addr %s241, 8
        %s243 = scalar_lea.vmem %s2, %s242
        %p244 = scmp.lt.s32.totalorder %s19, 1
        %s245 = scalar_select %p244, %s19, 1
        %s246 = smul.addr %s245, 4
        %s247 = smul.addr %s246, 8
        %s248 = scalar_lea.vmem %s3, %s247
        %v249 = vld [vmem:[%s233] sm:$0xff]
        %v250 = vld [vmem:[%s233 + $0x8] sm:$0xff]
        %v251 = vld [vmem:[%s233 + $0x10] sm:$0xff]
        %v252 = vld [vmem:[%s233 + $0x18] sm:$0xff]
        %v253 = vld [vmem:[%s238] sm:$0xff]
        %v254 = vld [vmem:[%s238 + $0x8] sm:$0x3]
        %v255 = vld [vmem:[%s238 + $0x10] sm:$0xff]
        %v256 = vld [vmem:[%s238 + $0x18] sm:$0x3]
        %v257 = vld [vmem:[%s238 + $0x20] sm:$0xff]
        %v258 = vld [vmem:[%s238 + $0x28] sm:$0x3]
        %v259 = vld [vmem:[%s238 + $0x30] sm:$0xff]
        %v260 = vld [vmem:[%s238 + $0x38] sm:$0x3]
        %v261 = vld [vmem:[%s243] sm:$0xff]
        %v262 = vld [vmem:[%s243 + $0x8] sm:$0x3]
        %v263 = vld [vmem:[%s243 + $0x10] sm:$0xff]
        %v264 = vld [vmem:[%s243 + $0x18] sm:$0x3]
        %v265 = vld [vmem:[%s243 + $0x20] sm:$0xff]
        %v266 = vld [vmem:[%s243 + $0x28] sm:$0x3]
        %v267 = vld [vmem:[%s243 + $0x30] sm:$0xff]
        %v268 = vld [vmem:[%s243 + $0x38] sm:$0x3]
        %v269 = vmul.f32 %v249, 0.35355338
        %v270 = vmul.f32 %v250, 0.35355338
        %v271 = vmul.f32 %v251, 0.35355338
        %v272 = vmul.f32 %v252, 0.35355338
        %vm273 = vcmask 64512
        %v275 = vsel %vm273, %v269, 0
        %v278 = vsel %vm273, %v253, 0
        %v281 = vsel %vm273, %v254, 0
        %283 = vmatprep.subr.mxu0 0.0
        %284 = vmatpush1.xpose.msra.mxu0 %v278
        %285 = vmatprep.subr.mxu0 0.0
        %286 = vmatpush1.xpose.msra.mxu0 %v281
        %287 = vmatprep.subr.mxu0 0.0
        %288 = vmatpush1.xpose.msra.mxu0 0.0
        %289 = vmatprep.subr.mxu0 0.0
        %290 = vmatpush1.xpose.msra.mxu0 0.0
        %291 = vmatprep.subr.mxu0 0.0
        %292 = vmatpush1.xpose.msra.mxu0 0.0
        %293 = vmatprep.subr.mxu0 0.0
        %294 = vmatpush1.xpose.msra.mxu0 0.0
        %295 = vmatprep.subr.mxu0 0.0
        %296 = vmatpush1.xpose.msra.mxu0 0.0
        %297 = vmatprep.subr.mxu0 0.0
        %298 = vmatpush1.xpose.msra.mxu0 0.0
        %299 = vmatprep.subr.mxu0 0.0
        %300 = vmatpush1.xpose.msra.mxu0 0.0
        %301 = vmatprep.subr.mxu0 0.0
        %302 = vmatpush1.xpose.msra.mxu0 0.0
        %303 = vmatprep.subr.mxu0 0.0
        %304 = vmatpush1.xpose.msra.mxu0 0.0
        %305 = vmatprep.subr.mxu0 0.0
        %306 = vmatpush1.xpose.msra.mxu0 0.0
        %307 = vmatprep.subr.mxu0 0.0
        %308 = vmatpush1.xpose.msra.mxu0 0.0
        %309 = vmatprep.subr.mxu0 0.0
        %310 = vmatpush1.xpose.msra.mxu0 0.0
        %311 = vmatprep.subr.mxu0 0.0
        %312 = vmatpush1.xpose.msra.mxu0 0.0
        %313 = vmatprep.subr.mxu0 0.0
        %314 = vmatpush1.xpose.msra.mxu0 0.0
        %315 = vmatprep.subr.mxu0 0.0
        %316 = vmatpush1.xpose.msra.mxu0 0.0
        %317 = vmatprep.subr.mxu0 0.0
        %318 = vmatpush1.xpose.msra.mxu0 0.0
        %319 = vmatprep.subr.mxu0 0.0
        %320 = vmatpush1.xpose.msra.mxu0 0.0
        %321 = vmatprep.subr.mxu0 0.0
        %322 = vmatpush1.xpose.msra.mxu0 0.0
        %323 = vmatprep.subr.mxu0 0.0
        %324 = vmatpush1.xpose.msra.mxu0 0.0
        %325 = vmatprep.subr.mxu0 0.0
        %326 = vmatpush1.xpose.msra.mxu0 0.0
        %327 = vmatprep.subr.mxu0 0.0
        %328 = vmatpush1.xpose.msra.mxu0 0.0
        %329 = vmatprep.subr.mxu0 0.0
        %330 = vmatpush1.xpose.msra.mxu0 0.0
        %331 = vmatprep.subr.mxu0 0.0
        %332 = vmatpush1.xpose.msra.mxu0 0.0
        %333 = vmatprep.subr.mxu0 0.0
        %334 = vmatpush1.xpose.msra.mxu0 0.0
        %335 = vmatprep.subr.mxu0 0.0
        %336 = vmatpush1.xpose.msra.mxu0 0.0
        %337 = vmatprep.subr.mxu0 0.0
        %338 = vmatpush1.xpose.msra.mxu0 0.0
        %339 = vmatprep.subr.mxu0 0.0
        %340 = vmatpush1.xpose.msra.mxu0 0.0
        %341 = vmatprep.subr.mxu0 0.0
        %342 = vmatpush1.xpose.msra.mxu0 0.0
        %343 = vmatprep.subr.mxu0 0.0
        %344 = vmatpush1.xpose.msra.mxu0 0.0
        %345 = vmatprep.subr.mxu0 0.0
        %346 = vmatpush1.xpose.msra.mxu0 0.0
        %347 = vmatprep.mubr.f32.mxu0 0.0
        %348 = vmatmul.mubr.f32.gmra.mrb[0].mxu0 %v275
        %v349 = vpop.f32.mrb[0].mxu0
        %v350 = vadd.f32 0.0, %v349
        %v351 = vpop.f32.mrb[0].mxu0
        %352 = vdwg.mxu0
        %v354 = vsel %vm273, %v270, 0
        %v357 = vsel %vm273, %v255, 0
        %v360 = vsel %vm273, %v256, 0
        %362 = vmatprep.subr.mxu0 0.0
        %363 = vmatpush1.xpose.msra.mxu0 %v357
        %364 = vmatprep.subr.mxu0 0.0
        %365 = vmatpush1.xpose.msra.mxu0 %v360
        %366 = vmatprep.subr.mxu0 0.0
        %367 = vmatpush1.xpose.msra.mxu0 0.0
        %368 = vmatprep.subr.mxu0 0.0
        %369 = vmatpush1.xpose.msra.mxu0 0.0
        %370 = vmatprep.subr.mxu0 0.0
        %371 = vmatpush1.xpose.msra.mxu0 0.0
        %372 = vmatprep.subr.mxu0 0.0
        %373 = vmatpush1.xpose.msra.mxu0 0.0
        %374 = vmatprep.subr.mxu0 0.0
        %375 = vmatpush1.xpose.msra.mxu0 0.0
        %376 = vmatprep.subr.mxu0 0.0
        %377 = vmatpush1.xpose.msra.mxu0 0.0
        %378 = vmatprep.subr.mxu0 0.0
        %379 = vmatpush1.xpose.msra.mxu0 0.0
        %380 = vmatprep.subr.mxu0 0.0
        %381 = vmatpush1.xpose.msra.mxu0 0.0
        %382 = vmatprep.subr.mxu0 0.0
        %383 = vmatpush1.xpose.msra.mxu0 0.0
        %384 = vmatprep.subr.mxu0 0.0
        %385 = vmatpush1.xpose.msra.mxu0 0.0
        %386 = vmatprep.subr.mxu0 0.0
        %387 = vmatpush1.xpose.msra.mxu0 0.0
        %388 = vmatprep.subr.mxu0 0.0
        %389 = vmatpush1.xpose.msra.mxu0 0.0
        %390 = vmatprep.subr.mxu0 0.0
        %391 = vmatpush1.xpose.msra.mxu0 0.0
        %392 = vmatprep.subr.mxu0 0.0
        %393 = vmatpush1.xpose.msra.mxu0 0.0
        %394 = vmatprep.subr.mxu0 0.0
        %395 = vmatpush1.xpose.msra.mxu0 0.0
        %396 = vmatprep.subr.mxu0 0.0
        %397 = vmatpush1.xpose.msra.mxu0 0.0
        %398 = vmatprep.subr.mxu0 0.0
        %399 = vmatpush1.xpose.msra.mxu0 0.0
        %400 = vmatprep.subr.mxu0 0.0
        %401 = vmatpush1.xpose.msra.mxu0 0.0
        %402 = vmatprep.subr.mxu0 0.0
        %403 = vmatpush1.xpose.msra.mxu0 0.0
        %404 = vmatprep.subr.mxu0 0.0
        %405 = vmatpush1.xpose.msra.mxu0 0.0
        %406 = vmatprep.subr.mxu0 0.0
        %407 = vmatpush1.xpose.msra.mxu0 0.0
        %408 = vmatprep.subr.mxu0 0.0
        %409 = vmatpush1.xpose.msra.mxu0 0.0
        %410 = vmatprep.subr.mxu0 0.0
        %411 = vmatpush1.xpose.msra.mxu0 0.0
        %412 = vmatprep.subr.mxu0 0.0
        %413 = vmatpush1.xpose.msra.mxu0 0.0
        %414 = vmatprep.subr.mxu0 0.0
        %415 = vmatpush1.xpose.msra.mxu0 0.0
        %416 = vmatprep.subr.mxu0 0.0
        %417 = vmatpush1.xpose.msra.mxu0 0.0
        %418 = vmatprep.subr.mxu0 0.0
        %419 = vmatpush1.xpose.msra.mxu0 0.0
        %420 = vmatprep.subr.mxu0 0.0
        %421 = vmatpush1.xpose.msra.mxu0 0.0
        %422 = vmatprep.subr.mxu0 0.0
        %423 = vmatpush1.xpose.msra.mxu0 0.0
        %424 = vmatprep.subr.mxu0 0.0
        %425 = vmatpush1.xpose.msra.mxu0 0.0
        %426 = vmatprep.mubr.f32.mxu0 0.0
        %427 = vmatmul.mubr.f32.gmra.mrb[0].mxu0 %v354
        %v428 = vpop.f32.mrb[0].mxu0
        %v429 = vadd.f32 0.0, %v428
        %v430 = vpop.f32.mrb[0].mxu0
        %431 = vdwg.mxu0
        %v433 = vsel %vm273, %v271, 0
        %v436 = vsel %vm273, %v257, 0
        %v439 = vsel %vm273, %v258, 0
        %441 = vmatprep.subr.mxu0 0.0
        %442 = vmatpush1.xpose.msra.mxu0 %v436
        %443 = vmatprep.subr.mxu0 0.0
        %444 = vmatpush1.xpose.msra.mxu0 %v439
        %445 = vmatprep.subr.mxu0 0.0
        %446 = vmatpush1.xpose.msra.mxu0 0.0
        %447 = vmatprep.subr.mxu0 0.0
        %448 = vmatpush1.xpose.msra.mxu0 0.0
        %449 = vmatprep.subr.mxu0 0.0
        %450 = vmatpush1.xpose.msra.mxu0 0.0
        %451 = vmatprep.subr.mxu0 0.0
        %452 = vmatpush1.xpose.msra.mxu0 0.0
        %453 = vmatprep.subr.mxu0 0.0
        %454 = vmatpush1.xpose.msra.mxu0 0.0
        %455 = vmatprep.subr.mxu0 0.0
        %456 = vmatpush1.xpose.msra.mxu0 0.0
        %457 = vmatprep.subr.mxu0 0.0
        %458 = vmatpush1.xpose.msra.mxu0 0.0
        %459 = vmatprep.subr.mxu0 0.0
        %460 = vmatpush1.xpose.msra.mxu0 0.0
        %461 = vmatprep.subr.mxu0 0.0
        %462 = vmatpush1.xpose.msra.mxu0 0.0
        %463 = vmatprep.subr.mxu0 0.0
        %464 = vmatpush1.xpose.msra.mxu0 0.0
        %465 = vmatprep.subr.mxu0 0.0
        %466 = vmatpush1.xpose.msra.mxu0 0.0
        %467 = vmatprep.subr.mxu0 0.0
        %468 = vmatpush1.xpose.msra.mxu0 0.0
        %469 = vmatprep.subr.mxu0 0.0
        %470 = vmatpush1.xpose.msra.mxu0 0.0
        %471 = vmatprep.subr.mxu0 0.0
        %472 = vmatpush1.xpose.msra.mxu0 0.0
        %473 = vmatprep.subr.mxu0 0.0
        %474 = vmatpush1.xpose.msra.mxu0 0.0
        %475 = vmatprep.subr.mxu0 0.0
        %476 = vmatpush1.xpose.msra.mxu0 0.0
        %477 = vmatprep.subr.mxu0 0.0
        %478 = vmatpush1.xpose.msra.mxu0 0.0
        %479 = vmatprep.subr.mxu0 0.0
        %480 = vmatpush1.xpose.msra.mxu0 0.0
        %481 = vmatprep.subr.mxu0 0.0
        %482 = vmatpush1.xpose.msra.mxu0 0.0
        %483 = vmatprep.subr.mxu0 0.0
        %484 = vmatpush1.xpose.msra.mxu0 0.0
        %485 = vmatprep.subr.mxu0 0.0
        %486 = vmatpush1.xpose.msra.mxu0 0.0
        %487 = vmatprep.subr.mxu0 0.0
        %488 = vmatpush1.xpose.msra.mxu0 0.0
        %489 = vmatprep.subr.mxu0 0.0
        %490 = vmatpush1.xpose.msra.mxu0 0.0
        %491 = vmatprep.subr.mxu0 0.0
        %492 = vmatpush1.xpose.msra.mxu0 0.0
        %493 = vmatprep.subr.mxu0 0.0
        %494 = vmatpush1.xpose.msra.mxu0 0.0
        %495 = vmatprep.subr.mxu0 0.0
        %496 = vmatpush1.xpose.msra.mxu0 0.0
        %497 = vmatprep.subr.mxu0 0.0
        %498 = vmatpush1.xpose.msra.mxu0 0.0
        %499 = vmatprep.subr.mxu0 0.0
        %500 = vmatpush1.xpose.msra.mxu0 0.0
        %501 = vmatprep.subr.mxu0 0.0
        %502 = vmatpush1.xpose.msra.mxu0 0.0
        %503 = vmatprep.subr.mxu0 0.0
        %504 = vmatpush1.xpose.msra.mxu0 0.0
        %505 = vmatprep.mubr.f32.mxu0 0.0
        %506 = vmatmul.mubr.f32.gmra.mrb[0].mxu0 %v433
        %v507 = vpop.f32.mrb[0].mxu0
        %v508 = vadd.f32 0.0, %v507
        %v509 = vpop.f32.mrb[0].mxu0
        %510 = vdwg.mxu0
        %v512 = vsel %vm273, %v272, 0
        %v515 = vsel %vm273, %v259, 0
        %v518 = vsel %vm273, %v260, 0
        %520 = vmatprep.subr.mxu0 0.0
        %521 = vmatpush1.xpose.msra.mxu0 %v515
        %522 = vmatprep.subr.mxu0 0.0
        %523 = vmatpush1.xpose.msra.mxu0 %v518
        %524 = vmatprep.subr.mxu0 0.0
        %525 = vmatpush1.xpose.msra.mxu0 0.0
        %526 = vmatprep.subr.mxu0 0.0
        %527 = vmatpush1.xpose.msra.mxu0 0.0
        %528 = vmatprep.subr.mxu0 0.0
        %529 = vmatpush1.xpose.msra.mxu0 0.0
        %530 = vmatprep.subr.mxu0 0.0
        %531 = vmatpush1.xpose.msra.mxu0 0.0
        %532 = vmatprep.subr.mxu0 0.0
        %533 = vmatpush1.xpose.msra.mxu0 0.0
        %534 = vmatprep.subr.mxu0 0.0
        %535 = vmatpush1.xpose.msra.mxu0 0.0
        %536 = vmatprep.subr.mxu0 0.0
        %537 = vmatpush1.xpose.msra.mxu0 0.0
        %538 = vmatprep.subr.mxu0 0.0
        %539 = vmatpush1.xpose.msra.mxu0 0.0
        %540 = vmatprep.subr.mxu0 0.0
        %541 = vmatpush1.xpose.msra.mxu0 0.0
        %542 = vmatprep.subr.mxu0 0.0
        %543 = vmatpush1.xpose.msra.mxu0 0.0
        %544 = vmatprep.subr.mxu0 0.0
        %545 = vmatpush1.xpose.msra.mxu0 0.0
        %546 = vmatprep.subr.mxu0 0.0
        %547 = vmatpush1.xpose.msra.mxu0 0.0
        %548 = vmatprep.subr.mxu0 0.0
        %549 = vmatpush1.xpose.msra.mxu0 0.0
        %550 = vmatprep.subr.mxu0 0.0
        %551 = vmatpush1.xpose.msra.mxu0 0.0
        %552 = vmatprep.subr.mxu0 0.0
        %553 = vmatpush1.xpose.msra.mxu0 0.0
        %554 = vmatprep.subr.mxu0 0.0
        %555 = vmatpush1.xpose.msra.mxu0 0.0
        %556 = vmatprep.subr.mxu0 0.0
        %557 = vmatpush1.xpose.msra.mxu0 0.0
        %558 = vmatprep.subr.mxu0 0.0
        %559 = vmatpush1.xpose.msra.mxu0 0.0
        %560 = vmatprep.subr.mxu0 0.0
        %561 = vmatpush1.xpose.msra.mxu0 0.0
        %562 = vmatprep.subr.mxu0 0.0
        %563 = vmatpush1.xpose.msra.mxu0 0.0
        %564 = vmatprep.subr.mxu0 0.0
        %565 = vmatpush1.xpose.msra.mxu0 0.0
        %566 = vmatprep.subr.mxu0 0.0
        %567 = vmatpush1.xpose.msra.mxu0 0.0
        %568 = vmatprep.subr.mxu0 0.0
        %569 = vmatpush1.xpose.msra.mxu0 0.0
        %570 = vmatprep.subr.mxu0 0.0
        %571 = vmatpush1.xpose.msra.mxu0 0.0
        %572 = vmatprep.subr.mxu0 0.0
        %573 = vmatpush1.xpose.msra.mxu0 0.0
        %574 = vmatprep.subr.mxu0 0.0
        %575 = vmatpush1.xpose.msra.mxu0 0.0
        %576 = vmatprep.subr.mxu0 0.0
        %577 = vmatpush1.xpose.msra.mxu0 0.0
        %578 = vmatprep.subr.mxu0 0.0
        %579 = vmatpush1.xpose.msra.mxu0 0.0
        %580 = vmatprep.subr.mxu0 0.0
        %581 = vmatpush1.xpose.msra.mxu0 0.0
        %582 = vmatprep.subr.mxu0 0.0
        %583 = vmatpush1.xpose.msra.mxu0 0.0
        %584 = vmatprep.mubr.f32.mxu0 0.0
        %585 = vmatmul.mubr.f32.gmra.mrb[0].mxu0 %v512
        %v586 = vpop.f32.mrb[0].mxu0
        %v587 = vadd.f32 0.0, %v586
        %v588 = vpop.f32.mrb[0].mxu0
        %589 = vdwg.mxu0
        %vm590 = vcmask 80896
        %v591 = vsel %vm590, %v350, -inf
        %592 = vmax.xlane.f32.xlu0 %v591
        %v593 = vpop.xlane.xlu0 %592
        %v594 = vsel %vm590, %v429, -inf
        %595 = vmax.xlane.f32.xlu0 %v594
        %v596 = vpop.xlane.xlu0 %595
        %v597 = vsel %vm590, %v508, -inf
        %598 = vmax.xlane.f32.xlu0 %v597
        %v599 = vpop.xlane.xlu0 %598
        %v600 = vsel %vm590, %v587, -inf
        %601 = vmax.xlane.f32.xlu0 %v600
        %v602 = vpop.xlane.xlu0 %601
        %v603 = vsub.f32 %v350, %v593
        %v604 = vsub.f32 %v429, %v596
        %v605 = vsub.f32 %v508, %v599
        %v606 = vsub.f32 %v587, %v602
        %v607 = vmul.f32 %v603, 1.442695
        %v608 = vpow.pop %v607
        %v609 = vmul.f32 %v604, 1.442695
        %v610 = vpow.pop %v609
        %v611 = vmul.f32 %v605, 1.442695
        %v612 = vpow.pop %v611
        %v613 = vmul.f32 %v606, 1.442695
        %v614 = vpow.pop %v613
        %v615 = vsel %vm590, %v608, 0.0
        %616 = vadd.xlane.f32.xlu0 %v615
        %v617 = vpop.xlane.xlu0 %616
        %v618 = vsel %vm590, %v610, 0.0
        %619 = vadd.xlane.f32.xlu0 %v618
        %v620 = vpop.xlane.xlu0 %619
        %v621 = vsel %vm590, %v612, 0.0
        %622 = vadd.xlane.f32.xlu0 %v621
        %v623 = vpop.xlane.xlu0 %622
        %v624 = vsel %vm590, %v614, 0.0
        %625 = vadd.xlane.f32.xlu0 %v624
        %v626 = vpop.xlane.xlu0 %625
        %v627 = vrcp.pop %v617
        %v628 = vmul.f32 %v608, %v627
        %v629 = vrcp.pop %v620
        %v630 = vmul.f32 %v610, %v629
        %v631 = vrcp.pop %v623
        %v632 = vmul.f32 %v612, %v631
        %v633 = vrcp.pop %v626
        %v634 = vmul.f32 %v614, %v633
        %v636 = vsel %vm590, %v628, 0
        %vm638 = vcmask 1041408
        %v640 = vsel %vm638, %v262, 0
        %642 = vmatprep.subr.mxu0 0.0
        %643 = vmatpush1.msra.mxu0 %v261
        %644 = vmatprep.subr.mxu0 0.0
        %645 = vmatpush1.msra.mxu0 %v640
        %646 = vmatprep.subr.mxu0 0.0
        %647 = vmatpush1.msra.mxu0 0.0
        %648 = vmatprep.subr.mxu0 0.0
        %649 = vmatpush1.msra.mxu0 0.0
        %650 = vmatprep.subr.mxu0 0.0
        %651 = vmatpush1.msra.mxu0 0.0
        %652 = vmatprep.subr.mxu0 0.0
        %653 = vmatpush1.msra.mxu0 0.0
        %654 = vmatprep.subr.mxu0 0.0
        %655 = vmatpush1.msra.mxu0 0.0
        %656 = vmatprep.subr.mxu0 0.0
        %657 = vmatpush1.msra.mxu0 0.0
        %658 = vmatprep.subr.mxu0 0.0
        %659 = vmatpush1.msra.mxu0 0.0
        %660 = vmatprep.subr.mxu0 0.0
        %661 = vmatpush1.msra.mxu0 0.0
        %662 = vmatprep.subr.mxu0 0.0
        %663 = vmatpush1.msra.mxu0 0.0
        %664 = vmatprep.subr.mxu0 0.0
        %665 = vmatpush1.msra.mxu0 0.0
        %666 = vmatprep.subr.mxu0 0.0
        %667 = vmatpush1.msra.mxu0 0.0
        %668 = vmatprep.subr.mxu0 0.0
        %669 = vmatpush1.msra.mxu0 0.0
        %670 = vmatprep.subr.mxu0 0.0
        %671 = vmatpush1.msra.mxu0 0.0
        %672 = vmatprep.subr.mxu0 0.0
        %673 = vmatpush1.msra.mxu0 0.0
        %674 = vmatprep.subr.mxu0 0.0
        %675 = vmatpush1.msra.mxu0 0.0
        %676 = vmatprep.subr.mxu0 0.0
        %677 = vmatpush1.msra.mxu0 0.0
        %678 = vmatprep.subr.mxu0 0.0
        %679 = vmatpush1.msra.mxu0 0.0
        %680 = vmatprep.subr.mxu0 0.0
        %681 = vmatpush1.msra.mxu0 0.0
        %682 = vmatprep.subr.mxu0 0.0
        %683 = vmatpush1.msra.mxu0 0.0
        %684 = vmatprep.subr.mxu0 0.0
        %685 = vmatpush1.msra.mxu0 0.0
        %686 = vmatprep.subr.mxu0 0.0
        %687 = vmatpush1.msra.mxu0 0.0
        %688 = vmatprep.subr.mxu0 0.0
        %689 = vmatpush1.msra.mxu0 0.0
        %690 = vmatprep.subr.mxu0 0.0
        %691 = vmatpush1.msra.mxu0 0.0
        %692 = vmatprep.subr.mxu0 0.0
        %693 = vmatpush1.msra.mxu0 0.0
        %694 = vmatprep.subr.mxu0 0.0
        %695 = vmatpush1.msra.mxu0 0.0
        %696 = vmatprep.subr.mxu0 0.0
        %697 = vmatpush1.msra.mxu0 0.0
        %698 = vmatprep.subr.mxu0 0.0
        %699 = vmatpush1.msra.mxu0 0.0
        %700 = vmatprep.subr.mxu0 0.0
        %701 = vmatpush1.msra.mxu0 0.0
        %702 = vmatprep.subr.mxu0 0.0
        %703 = vmatpush1.msra.mxu0 0.0
        %704 = vmatprep.subr.mxu0 0.0
        %705 = vmatpush1.msra.mxu0 0.0
        %706 = vmatprep.mubr.f32.mxu0 0.0
        %707 = vmatmul.mubr.f32.gmra.mrb[0].mxu0 %v636
        %v708 = vpop.f32.mrb[0].mxu0
        %v709 = vadd.f32 0.0, %v708
        %v710 = vpop.f32.mrb[0].mxu0
        %711 = vdwg.mxu0
        %v713 = vsel %vm590, %v630, 0
        %v716 = vsel %vm638, %v264, 0
        %718 = vmatprep.subr.mxu0 0.0
        %719 = vmatpush1.msra.mxu0 %v263
        %720 = vmatprep.subr.mxu0 0.0
        %721 = vmatpush1.msra.mxu0 %v716
        %722 = vmatprep.subr.mxu0 0.0
        %723 = vmatpush1.msra.mxu0 0.0
        %724 = vmatprep.subr.mxu0 0.0
        %725 = vmatpush1.msra.mxu0 0.0
        %726 = vmatprep.subr.mxu0 0.0
        %727 = vmatpush1.msra.mxu0 0.0
        %728 = vmatprep.subr.mxu0 0.0
        %729 = vmatpush1.msra.mxu0 0.0
        %730 = vmatprep.subr.mxu0 0.0
        %731 = vmatpush1.msra.mxu0 0.0
        %732 = vmatprep.subr.mxu0 0.0
        %733 = vmatpush1.msra.mxu0 0.0
        %734 = vmatprep.subr.mxu0 0.0
        %735 = vmatpush1.msra.mxu0 0.0
        %736 = vmatprep.subr.mxu0 0.0
        %737 = vmatpush1.msra.mxu0 0.0
        %738 = vmatprep.subr.mxu0 0.0
        %739 = vmatpush1.msra.mxu0 0.0
        %740 = vmatprep.subr.mxu0 0.0
        %741 = vmatpush1.msra.mxu0 0.0
        %742 = vmatprep.subr.mxu0 0.0
        %743 = vmatpush1.msra.mxu0 0.0
        %744 = vmatprep.subr.mxu0 0.0
        %745 = vmatpush1.msra.mxu0 0.0
        %746 = vmatprep.subr.mxu0 0.0
        %747 = vmatpush1.msra.mxu0 0.0
        %748 = vmatprep.subr.mxu0 0.0
        %749 = vmatpush1.msra.mxu0 0.0
        %750 = vmatprep.subr.mxu0 0.0
        %751 = vmatpush1.msra.mxu0 0.0
        %752 = vmatprep.subr.mxu0 0.0
        %753 = vmatpush1.msra.mxu0 0.0
        %754 = vmatprep.subr.mxu0 0.0
        %755 = vmatpush1.msra.mxu0 0.0
        %756 = vmatprep.subr.mxu0 0.0
        %757 = vmatpush1.msra.mxu0 0.0
        %758 = vmatprep.subr.mxu0 0.0
        %759 = vmatpush1.msra.mxu0 0.0
        %760 = vmatprep.subr.mxu0 0.0
        %761 = vmatpush1.msra.mxu0 0.0
        %762 = vmatprep.subr.mxu0 0.0
        %763 = vmatpush1.msra.mxu0 0.0
        %764 = vmatprep.subr.mxu0 0.0
        %765 = vmatpush1.msra.mxu0 0.0
        %766 = vmatprep.subr.mxu0 0.0
        %767 = vmatpush1.msra.mxu0 0.0
        %768 = vmatprep.subr.mxu0 0.0
        %769 = vmatpush1.msra.mxu0 0.0
        %770 = vmatprep.subr.mxu0 0.0
        %771 = vmatpush1.msra.mxu0 0.0
        %772 = vmatprep.subr.mxu0 0.0
        %773 = vmatpush1.msra.mxu0 0.0
        %774 = vmatprep.subr.mxu0 0.0
        %775 = vmatpush1.msra.mxu0 0.0
        %776 = vmatprep.subr.mxu0 0.0
        %777 = vmatpush1.msra.mxu0 0.0
        %778 = vmatprep.subr.mxu0 0.0
        %779 = vmatpush1.msra.mxu0 0.0
        %780 = vmatprep.subr.mxu0 0.0
        %781 = vmatpush1.msra.mxu0 0.0
        %782 = vmatprep.mubr.f32.mxu0 0.0
        %783 = vmatmul.mubr.f32.gmra.mrb[0].mxu0 %v713
        %v784 = vpop.f32.mrb[0].mxu0
        %v785 = vadd.f32 0.0, %v784
        %v786 = vpop.f32.mrb[0].mxu0
        %787 = vdwg.mxu0
        %v789 = vsel %vm590, %v632, 0
        %v792 = vsel %vm638, %v266, 0
        %794 = vmatprep.subr.mxu0 0.0
        %795 = vmatpush1.msra.mxu0 %v265
        %796 = vmatprep.subr.mxu0 0.0
        %797 = vmatpush1.msra.mxu0 %v792
        %798 = vmatprep.subr.mxu0 0.0
        %799 = vmatpush1.msra.mxu0 0.0
        %800 = vmatprep.subr.mxu0 0.0
        %801 = vmatpush1.msra.mxu0 0.0
        %802 = vmatprep.subr.mxu0 0.0
        %803 = vmatpush1.msra.mxu0 0.0
        %804 = vmatprep.subr.mxu0 0.0
        %805 = vmatpush1.msra.mxu0 0.0
        %806 = vmatprep.subr.mxu0 0.0
        %807 = vmatpush1.msra.mxu0 0.0
        %808 = vmatprep.subr.mxu0 0.0
        %809 = vmatpush1.msra.mxu0 0.0
        %810 = vmatprep.subr.mxu0 0.0
        %811 = vmatpush1.msra.mxu0 0.0
        %812 = vmatprep.subr.mxu0 0.0
        %813 = vmatpush1.msra.mxu0 0.0
        %814 = vmatprep.subr.mxu0 0.0
        %815 = vmatpush1.msra.mxu0 0.0
        %816 = vmatprep.subr.mxu0 0.0
        %817 = vmatpush1.msra.mxu0 0.0
        %818 = vmatprep.subr.mxu0 0.0
        %819 = vmatpush1.msra.mxu0 0.0
        %820 = vmatprep.subr.mxu0 0.0
        %821 = vmatpush1.msra.mxu0 0.0
        %822 = vmatprep.subr.mxu0 0.0
        %823 = vmatpush1.msra.mxu0 0.0
        %824 = vmatprep.subr.mxu0 0.0
        %825 = vmatpush1.msra.mxu0 0.0
        %826 = vmatprep.subr.mxu0 0.0
        %827 = vmatpush1.msra.mxu0 0.0
        %828 = vmatprep.subr.mxu0 0.0
        %829 = vmatpush1.msra.mxu0 0.0
        %830 = vmatprep.subr.mxu0 0.0
        %831 = vmatpush1.msra.mxu0 0.0
        %832 = vmatprep.subr.mxu0 0.0
        %833 = vmatpush1.msra.mxu0 0.0
        %834 = vmatprep.subr.mxu0 0.0
        %835 = vmatpush1.msra.mxu0 0.0
        %836 = vmatprep.subr.mxu0 0.0
        %837 = vmatpush1.msra.mxu0 0.0
        %838 = vmatprep.subr.mxu0 0.0
        %839 = vmatpush1.msra.mxu0 0.0
        %840 = vmatprep.subr.mxu0 0.0
        %841 = vmatpush1.msra.mxu0 0.0
        %842 = vmatprep.subr.mxu0 0.0
        %843 = vmatpush1.msra.mxu0 0.0
        %844 = vmatprep.subr.mxu0 0.0
        %845 = vmatpush1.msra.mxu0 0.0
        %846 = vmatprep.subr.mxu0 0.0
        %847 = vmatpush1.msra.mxu0 0.0
        %848 = vmatprep.subr.mxu0 0.0
        %849 = vmatpush1.msra.mxu0 0.0
        %850 = vmatprep.subr.mxu0 0.0
        %851 = vmatpush1.msra.mxu0 0.0
        %852 = vmatprep.subr.mxu0 0.0
        %853 = vmatpush1.msra.mxu0 0.0
        %854 = vmatprep.subr.mxu0 0.0
        %855 = vmatpush1.msra.mxu0 0.0
        %856 = vmatprep.subr.mxu0 0.0
        %857 = vmatpush1.msra.mxu0 0.0
        %858 = vmatprep.mubr.f32.mxu0 0.0
        %859 = vmatmul.mubr.f32.gmra.mrb[0].mxu0 %v789
        %v860 = vpop.f32.mrb[0].mxu0
        %v861 = vadd.f32 0.0, %v860
        %v862 = vpop.f32.mrb[0].mxu0
        %863 = vdwg.mxu0
        %v865 = vsel %vm590, %v634, 0
        %v868 = vsel %vm638, %v268, 0
        %870 = vmatprep.subr.mxu0 0.0
        %871 = vmatpush1.msra.mxu0 %v267
        %872 = vmatprep.subr.mxu0 0.0
        %873 = vmatpush1.msra.mxu0 %v868
        %874 = vmatprep.subr.mxu0 0.0
        %875 = vmatpush1.msra.mxu0 0.0
        %876 = vmatprep.subr.mxu0 0.0
        %877 = vmatpush1.msra.mxu0 0.0
        %878 = vmatprep.subr.mxu0 0.0
        %879 = vmatpush1.msra.mxu0 0.0
        %880 = vmatprep.subr.mxu0 0.0
        %881 = vmatpush1.msra.mxu0 0.0
        %882 = vmatprep.subr.mxu0 0.0
        %883 = vmatpush1.msra.mxu0 0.0
        %884 = vmatprep.subr.mxu0 0.0
        %885 = vmatpush1.msra.mxu0 0.0
        %886 = vmatprep.subr.mxu0 0.0
        %887 = vmatpush1.msra.mxu0 0.0
        %888 = vmatprep.subr.mxu0 0.0
        %889 = vmatpush1.msra.mxu0 0.0
        %890 = vmatprep.subr.mxu0 0.0
        %891 = vmatpush1.msra.mxu0 0.0
        %892 = vmatprep.subr.mxu0 0.0
        %893 = vmatpush1.msra.mxu0 0.0
        %894 = vmatprep.subr.mxu0 0.0
        %895 = vmatpush1.msra.mxu0 0.0
        %896 = vmatprep.subr.mxu0 0.0
        %897 = vmatpush1.msra.mxu0 0.0
        %898 = vmatprep.subr.mxu0 0.0
        %899 = vmatpush1.msra.mxu0 0.0
        %900 = vmatprep.subr.mxu0 0.0
        %901 = vmatpush1.msra.mxu0 0.0
        %902 = vmatprep.subr.mxu0 0.0
        %903 = vmatpush1.msra.mxu0 0.0
        %904 = vmatprep.subr.mxu0 0.0
        %905 = vmatpush1.msra.mxu0 0.0
        %906 = vmatprep.subr.mxu0 0.0
        %907 = vmatpush1.msra.mxu0 0.0
        %908 = vmatprep.subr.mxu0 0.0
        %909 = vmatpush1.msra.mxu0 0.0
        %910 = vmatprep.subr.mxu0 0.0
        %911 = vmatpush1.msra.mxu0 0.0
        %912 = vmatprep.subr.mxu0 0.0
        %913 = vmatpush1.msra.mxu0 0.0
        %914 = vmatprep.subr.mxu0 0.0
        %915 = vmatpush1.msra.mxu0 0.0
        %916 = vmatprep.subr.mxu0 0.0
        %917 = vmatpush1.msra.mxu0 0.0
        %918 = vmatprep.subr.mxu0 0.0
        %919 = vmatpush1.msra.mxu0 0.0
        %920 = vmatprep.subr.mxu0 0.0
        %921 = vmatpush1.msra.mxu0 0.0
        %922 = vmatprep.subr.mxu0 0.0
        %923 = vmatpush1.msra.mxu0 0.0
        %924 = vmatprep.subr.mxu0 0.0
        %925 = vmatpush1.msra.mxu0 0.0
        %926 = vmatprep.subr.mxu0 0.0
        %927 = vmatpush1.msra.mxu0 0.0
        %928 = vmatprep.subr.mxu0 0.0
        %929 = vmatpush1.msra.mxu0 0.0
        %930 = vmatprep.subr.mxu0 0.0
        %931 = vmatpush1.msra.mxu0 0.0
        %932 = vmatprep.subr.mxu0 0.0
        %933 = vmatpush1.msra.mxu0 0.0
        %934 = vmatprep.mubr.f32.mxu0 0.0
        %935 = vmatmul.mubr.f32.gmra.mrb[0].mxu0 %v865
        %v936 = vpop.f32.mrb[0].mxu0
        %v937 = vadd.f32 0.0, %v936
        %v938 = vpop.f32.mrb[0].mxu0
        %939 = vdwg.mxu0
        %v940 = vsel %vm590, %v628, 0.0
        %v941 = vsel %vm590, %v630, 0.0
        %v942 = vadd.f32 %v940, %v941
        %v943 = vsel %vm590, %v632, 0.0
        %v944 = vadd.f32 %v942, %v943
        %v945 = vsel %vm590, %v634, 0.0
        %v946 = vadd.f32 %v944, %v945
        %v947 = vrcp.pop 4.0
        %v948 = vmul.f32 %v946, %v947
        %949 = vst.msk [vmem:[%s248] sm:$0xff] %vm273, %v709
        %950 = vst.msk [vmem:[%s248 + $0x8] sm:$0xff] %vm273, %v785
        %951 = vst.msk [vmem:[%s248 + $0x10] sm:$0xff] %vm273, %v861
        %952 = vst.msk [vmem:[%s248 + $0x18] sm:$0xff] %vm273, %v937
        %953 = vst.msk [vmem:[%s228] sm:$0xff] %vm590, %v948
        %p954 = scmp.lt.s32.totalorder %s19, 1
        %s955 = scalar_select %p954, %s19, 1
        %s956 = smul.addr %s955, 4
        %s957 = smul.addr %s956, 8
        %s958 = scalar_lea.vmem %s3, %s957
        %s959 = sand.u32 %s131, 1
        %s960 = scalar_lea.sflag [#allocation3], %s959
        %s961 = sand.u32 %s131, 1
        %s962 = smul.addr %s961, 8
        %s963 = scalar_lea.vmem [#allocation2], %s962
        // Predicated region
        $region33: #{transformer_decoder_forward.29} parent=31 // pred_check
          %p964 = pneg %p115
        $region34: #{transformer_decoder_forward.29} parent=31 // pred_check_branch
          %966 = sbr.rel (%p964) target = $region36
        $region35: #{transformer_decoder_forward.29} parent=31 // pred_region
          _
        $region36: #{transformer_decoder_forward.29} parent=31 // pred_fallthru
          _
        // Predicated region
        $region37: #{transformer_decoder_forward.29} parent=31 // pred_check
          %p967 = pneg %p141
        $region38: #{transformer_decoder_forward.29} parent=31 // pred_check_branch
          %969 = sbr.rel (%p967) target = $region40
        $region39: #{transformer_decoder_forward.29} parent=31 // pred_region
          %s971 = ssub.s32 128, 128
          %972 = vsyncadd %s960, %s971
          %s973 = smul.addr %s19, 128
          %s974 = scalar_lea.hbm %s4, %s973
          %s976 = sshll.u32 %s963, 4
          %s977 = int_to_ptr.vmem [resolvable:$true] %s976
          %979 = dma.vmem_to_hbm [thread:$0]  %s977, 128, %s974, %s960
        $region40: #{transformer_decoder_forward.29} parent=31 // pred_fallthru
          _
      $region32: #{transformer_decoder_forward.29} parent=5 // pred_fallthru
        _
      %p980 = scmp.le.s32.totalorder 2, %s14
      // Predicated region
      $region41: #{transformer_decoder_forward.29} parent=5 // pred_check
        %p981 = pneg %p980
      $region42: #{transformer_decoder_forward.29} parent=5 // pred_check_branch
        %983 = sbr.rel (%p981) target = $region44
      $region43: #{transformer_decoder_forward.29} parent=5 // pred_region
        %s984 = ssub.s32 %s14, 2
        // Predicated region
        $region45: #{transformer_decoder_forward.29} parent=43 // pred_check
          %p985 = pneg %p121
        $region46: #{transformer_decoder_forward.29} parent=43 // pred_check_branch
          %987 = sbr.rel (%p985) target = $region48
        $region47: #{transformer_decoder_forward.29} parent=43 // pred_region
          %p988 = scmp.lt.s32.totalorder %s20, 1
          %s989 = scalar_select %p988, %s20, 1
          %s990 = smul.addr %s989, 4
          %s991 = smul.addr %s990, 8
          %s992 = scalar_lea.vmem %s3, %s991
        $region48: #{transformer_decoder_forward.29} parent=43 // pred_fallthru
          _
        // Predicated region
        $region49: #{transformer_decoder_forward.29} parent=43 // pred_check
          %p993 = pneg %p147
        $region50: #{transformer_decoder_forward.29} parent=43 // pred_check_branch
          %995 = sbr.rel (%p993) target = $region52
        $region51: #{transformer_decoder_forward.29} parent=43 // pred_region
          %s996 = sand.u32 %s132, 1
          %s997 = scalar_lea.sflag [#allocation3], %s996
          %s998 = sand.u32 %s132, 1
          %s999 = smul.addr %s998, 8
          %s1000 = scalar_lea.vmem [#allocation2], %s999
          %1001 = dma.done %s997, 128
        $region52: #{transformer_decoder_forward.29} parent=43 // pred_fallthru
          _
      $region44: #{transformer_decoder_forward.29} parent=5 // pred_fallthru
        _
    $region6: #{transformer_decoder_forward.29} parent=1 // loop_footer
      %s18 = sadd.s32 1, %s14
    $region7: #{transformer_decoder_forward.29} parent=1 // loop_footer_branch
      %13 = sbr.rel target = $region3
    $region8: #{transformer_decoder_forward.29} parent=1 // loop_exit
      _
    %1002 = vsyncpa [#allocation3], 1
    %s1003 = scalar_lea.sflag [#allocation3], 1
    %1004 = vsyncpa %s1003, 1

// kernel: transformer_decoder_forward.32
$region0: #{transformer_decoder_forward.32}
  #allocation0 [shape = 'u32[]', space=smem, size = 0x4, offset = 0x4, fixed_abs, tag = 'smem constant byte address 0x4 - core index']
  #allocation1 [shape = 'u32[144,128]{1,0:T(1,128)}', space=vmem, size = 0x12000, scoped, tag = 'internal scratch']
  %s0 = inlined_call_operand.vmem [shape: f32[16,32], index: 0, kind: input, shape index: {}]
  %s1 = inlined_call_operand.vmem [shape: f32[32,64], index: 1, kind: input, shape index: {}]
  %s2 = inlined_call_operand.vmem [shape: f32[1,64], index: 2, kind: input, shape index: {}]
  %s3 = inlined_call_operand.vmem [shape: f32[64,32], index: 3, kind: input, shape index: {}]
  %s4 = inlined_call_operand.vmem [shape: f32[1,32], index: 4, kind: input, shape index: {}]
  %s5 = inlined_call_operand.vmem [shape: f32[16,32], index: 5, kind: output, shape index: {}]
  %s6 = sld [smem:[#allocation0]]
  $region30: #{transformer_decoder_forward.32} parent=0
    _
  %s8 = ssub.s32 1, %s6
  %s9 = scalar_select 0, %s8, %s6
  // Predicated region
  $region2: #{transformer_decoder_forward.32} parent=0 // pred_check
    _
  $region3: #{transformer_decoder_forward.32} parent=0 // pred_check_branch
    %11 = sbr.rel (0) target = $region5
  $region4: #{transformer_decoder_forward.32} parent=0 // pred_region
    _
  $region5: #{transformer_decoder_forward.32} parent=0 // pred_fallthru
    _
  // Predicated region
  $region6: #{transformer_decoder_forward.32} parent=0 // pred_check
    _
  $region7: #{transformer_decoder_forward.32} parent=0 // pred_check_branch
    %13 = sbr.rel (0) target = $region9
  $region8: #{transformer_decoder_forward.32} parent=0 // pred_region
    _
  $region9: #{transformer_decoder_forward.32} parent=0 // pred_fallthru
    _
  // Predicated region
  $region10: #{transformer_decoder_forward.32} parent=0 // pred_check
    _
  $region11: #{transformer_decoder_forward.32} parent=0 // pred_check_branch
    %15 = sbr.rel (0) target = $region13
  $region12: #{transformer_decoder_forward.32} parent=0 // pred_region
    _
  $region13: #{transformer_decoder_forward.32} parent=0 // pred_fallthru
    _
  // Predicated region
  $region14: #{transformer_decoder_forward.32} parent=0 // pred_check
    _
  $region15: #{transformer_decoder_forward.32} parent=0 // pred_check_branch
    %17 = sbr.rel (0) target = $region17
  $region16: #{transformer_decoder_forward.32} parent=0 // pred_region
    _
  $region17: #{transformer_decoder_forward.32} parent=0 // pred_fallthru
    _
  // Predicated region
  $region18: #{transformer_decoder_forward.32} parent=0 // pred_check
    _
  $region19: #{transformer_decoder_forward.32} parent=0 // pred_check_branch
    %19 = sbr.rel (0) target = $region21
  $region20: #{transformer_decoder_forward.32} parent=0 // pred_region
    _
  $region21: #{transformer_decoder_forward.32} parent=0 // pred_fallthru
    _
  %v20 = vld [vmem:[%s0] sm:$0xff]
  %v21 = vld [vmem:[%s0 + $0x8] sm:$0xff]
  %v22 = vld [vmem:[%s1] sm:$0xff]
  %v23 = vld [vmem:[%s1 + $0x8] sm:$0xff]
  %v24 = vld [vmem:[%s1 + $0x10] sm:$0xff]
  %v25 = vld [vmem:[%s1 + $0x18] sm:$0xff]
  %v26 = vld [vmem:[%s2] sm:$0x1]
  %v28 = vlaneseq
  %v29 = vshrl.u32 %v28, 7
  %v30 = vsub.s32 0, %v29
  %v31 = vrot.slane %v26, %v30
  %vm33 = vcmask 261120
  %v35 = vsel %vm33, %v20, 0
  %v38 = vsel %vm33, %v21, 0
  %40 = vmatprep.subr.mxu0 0.0
  %41 = vmatpush1.msra.mxu0 %v22
  %42 = vmatprep.subr.mxu0 0.0
  %43 = vmatpush1.msra.mxu0 %v23
  %44 = vmatprep.subr.mxu0 0.0
  %45 = vmatpush1.msra.mxu0 %v24
  %46 = vmatprep.subr.mxu0 0.0
  %47 = vmatpush1.msra.mxu0 %v25
  %48 = vmatprep.subr.mxu0 0.0
  %49 = vmatpush1.msra.mxu0 0.0
  %50 = vmatprep.subr.mxu0 0.0
  %51 = vmatpush1.msra.mxu0 0.0
  %52 = vmatprep.subr.mxu0 0.0
  %53 = vmatpush1.msra.mxu0 0.0
  %54 = vmatprep.subr.mxu0 0.0
  %55 = vmatpush1.msra.mxu0 0.0
  %56 = vmatprep.subr.mxu0 0.0
  %57 = vmatpush1.msra.mxu0 0.0
  %58 = vmatprep.subr.mxu0 0.0
  %59 = vmatpush1.msra.mxu0 0.0
  %60 = vmatprep.subr.mxu0 0.0
  %61 = vmatpush1.msra.mxu0 0.0
  %62 = vmatprep.subr.mxu0 0.0
  %63 = vmatpush1.msra.mxu0 0.0
  %64 = vmatprep.subr.mxu0 0.0
  %65 = vmatpush1.msra.mxu0 0.0
  %66 = vmatprep.subr.mxu0 0.0
  %67 = vmatpush1.msra.mxu0 0.0
  %68 = vmatprep.subr.mxu0 0.0
  %69 = vmatpush1.msra.mxu0 0.0
  %70 = vmatprep.subr.mxu0 0.0
  %71 = vmatpush1.msra.mxu0 0.0
  %72 = vmatprep.subr.mxu0 0.0
  %73 = vmatpush1.msra.mxu0 0.0
  %74 = vmatprep.subr.mxu0 0.0
  %75 = vmatpush1.msra.mxu0 0.0
  %76 = vmatprep.subr.mxu0 0.0
  %77 = vmatpush1.msra.mxu0 0.0
  %78 = vmatprep.subr.mxu0 0.0
  %79 = vmatpush1.msra.mxu0 0.0
  %80 = vmatprep.subr.mxu0 0.0
  %81 = vmatpush1.msra.mxu0 0.0
  %82 = vmatprep.subr.mxu0 0.0
  %83 = vmatpush1.msra.mxu0 0.0
  %84 = vmatprep.subr.mxu0 0.0
  %85 = vmatpush1.msra.mxu0 0.0
  %86 = vmatprep.subr.mxu0 0.0
  %87 = vmatpush1.msra.mxu0 0.0
  %88 = vmatprep.subr.mxu0 0.0
  %89 = vmatpush1.msra.mxu0 0.0
  %90 = vmatprep.subr.mxu0 0.0
  %91 = vmatpush1.msra.mxu0 0.0
  %92 = vmatprep.subr.mxu0 0.0
  %93 = vmatpush1.msra.mxu0 0.0
  %94 = vmatprep.subr.mxu0 0.0
  %95 = vmatpush1.msra.mxu0 0.0
  %96 = vmatprep.subr.mxu0 0.0
  %97 = vmatpush1.msra.mxu0 0.0
  %98 = vmatprep.subr.mxu0 0.0
  %99 = vmatpush1.msra.mxu0 0.0
  %100 = vmatprep.subr.mxu0 0.0
  %101 = vmatpush1.msra.mxu0 0.0
  %102 = vmatprep.subr.mxu0 0.0
  %103 = vmatpush1.msra.mxu0 0.0
  %104 = vmatprep.mubr.f32.mxu0 0.0
  %105 = vmatmul.mubr.f32.gmra.mrb[0].mxu0 %v35
  %v106 = vpop.f32.mrb[0].mxu0
  %v107 = vadd.f32 %v31, %v106
  %v108 = vpop.f32.mrb[0].mxu0
  %109 = vmatprep.mubr.f32.mxu0 0.0
  %110 = vmatmul.mubr.f32.gmra.mrb[0].mxu0 %v38
  %v111 = vpop.f32.mrb[0].mxu0
  %v112 = vadd.f32 %v31, %v111
  %v113 = vpop.f32.mrb[0].mxu0
  %114 = vdwg.mxu0
  %v115 = vmax.f32 %v107, 0.0
  %v116 = vmax.f32 %v112, 0.0
  %v117 = vld [vmem:[%s3] sm:$0xff]
  %v118 = vld [vmem:[%s3 + $0x8] sm:$0xff]
  %v119 = vld [vmem:[%s3 + $0x10] sm:$0xff]
  %v120 = vld [vmem:[%s3 + $0x18] sm:$0xff]
  %v121 = vld [vmem:[%s3 + $0x20] sm:$0xff]
  %v122 = vld [vmem:[%s3 + $0x28] sm:$0xff]
  %v123 = vld [vmem:[%s3 + $0x30] sm:$0xff]
  %v124 = vld [vmem:[%s3 + $0x38] sm:$0xff]
  %v125 = vld [vmem:[%s4] sm:$0x1]
  %v127 = vlaneseq
  %v128 = vshrl.u32 %v127, 7
  %v129 = vsub.s32 0, %v128
  %v130 = vrot.slane %v125, %v129
  %vm132 = vcmask 523264
  %v134 = vsel %vm132, %v115, 0
  %v137 = vsel %vm132, %v116, 0
  %139 = vmatprep.subr.mxu0 0.0
  %140 = vmatpush1.msra.mxu0 %v117
  %141 = vmatprep.subr.mxu0 0.0
  %142 = vmatpush1.msra.mxu0 %v118
  %143 = vmatprep.subr.mxu0 0.0
  %144 = vmatpush1.msra.mxu0 %v119
  %145 = vmatprep.subr.mxu0 0.0
  %146 = vmatpush1.msra.mxu0 %v120
  %147 = vmatprep.subr.mxu0 0.0
  %148 = vmatpush1.msra.mxu0 %v121
  %149 = vmatprep.subr.mxu0 0.0
  %150 = vmatpush1.msra.mxu0 %v122
  %151 = vmatprep.subr.mxu0 0.0
  %152 = vmatpush1.msra.mxu0 %v123
  %153 = vmatprep.subr.mxu0 0.0
  %154 = vmatpush1.msra.mxu0 %v124
  %155 = vmatprep.subr.mxu0 0.0
  %156 = vmatpush1.msra.mxu0 0.0
  %157 = vmatprep.subr.mxu0 0.0
  %158 = vmatpush1.msra.mxu0 0.0
  %159 = vmatprep.subr.mxu0 0.0
  %160 = vmatpush1.msra.mxu0 0.0
  %161 = vmatprep.subr.mxu0 0.0
  %162 = vmatpush1.msra.mxu0 0.0
  %163 = vmatprep.subr.mxu0 0.0
  %164 = vmatpush1.msra.mxu0 0.0
  %165 = vmatprep.subr.mxu0 0.0
  %166 = vmatpush1.msra.mxu0 0.0
  %167 = vmatprep.subr.mxu0 0.0
  %168 = vmatpush1.msra.mxu0 0.0
  %169 = vmatprep.subr.mxu0 0.0
  %170 = vmatpush1.msra.mxu0 0.0
  %171 = vmatprep.subr.mxu0 0.0
  %172 = vmatpush1.msra.mxu0 0.0
  %173 = vmatprep.subr.mxu0 0.0
  %174 = vmatpush1.msra.mxu0 0.0
  %175 = vmatprep.subr.mxu0 0.0
  %176 = vmatpush1.msra.mxu0 0.0
  %177 = vmatprep.subr.mxu0 0.0
  %178 = vmatpush1.msra.mxu0 0.0
  %179 = vmatprep.subr.mxu0 0.0
  %180 = vmatpush1.msra.mxu0 0.0
  %181 = vmatprep.subr.mxu0 0.0
  %182 = vmatpush1.msra.mxu0 0.0
  %183 = vmatprep.subr.mxu0 0.0
  %184 = vmatpush1.msra.mxu0 0.0
  %185 = vmatprep.subr.mxu0 0.0
  %186 = vmatpush1.msra.mxu0 0.0
  %187 = vmatprep.subr.mxu0 0.0
  %188 = vmatpush1.msra.mxu0 0.0
  %189 = vmatprep.subr.mxu0 0.0
  %190 = vmatpush1.msra.mxu0 0.0
  %191 = vmatprep.subr.mxu0 0.0
  %192 = vmatpush1.msra.mxu0 0.0
  %193 = vmatprep.subr.mxu0 0.0
  %194 = vmatpush1.msra.mxu0 0.0
  %195 = vmatprep.subr.mxu0 0.0
  %196 = vmatpush1.msra.mxu0 0.0
  %197 = vmatprep.subr.mxu0 0.0
  %198 = vmatpush1.msra.mxu0 0.0
  %199 = vmatprep.subr.mxu0 0.0
  %200 = vmatpush1.msra.mxu0 0.0
  %201 = vmatprep.subr.mxu0 0.0
  %202 = vmatpush1.msra.mxu0 0.0
  %203 = vmatprep.mubr.f32.mxu0 0.0
  %204 = vmatmul.mubr.f32.gmra.mrb[0].mxu0 %v134
  %v205 = vpop.f32.mrb[0].mxu0
  %v206 = vadd.f32 %v130, %v205
  %v207 = vpop.f32.mrb[0].mxu0
  %208 = vmatprep.mubr.f32.mxu0 0.0
  %209 = vmatmul.mubr.f32.gmra.mrb[0].mxu0 %v137
  %v210 = vpop.f32.mrb[0].mxu0
  %v211 = vadd.f32 %v130, %v210
  %v212 = vpop.f32.mrb[0].mxu0
  %213 = vdwg.mxu0
  %214 = vst.msk [vmem:[%s5] sm:$0xff] %vm33, %v206
  %215 = vst.msk [vmem:[%s5 + $0x8] sm:$0xff] %vm33, %v211
  // Predicated region
  $region22: #{transformer_decoder_forward.32} parent=0 // pred_check
    _
  $region23: #{transformer_decoder_forward.32} parent=0 // pred_check_branch
    %217 = sbr.rel (0) target = $region25
  $region24: #{transformer_decoder_forward.32} parent=0 // pred_region
    _
  $region25: #{transformer_decoder_forward.32} parent=0 // pred_fallthru
    _
  // Predicated region
  $region26: #{transformer_decoder_forward.32} parent=0 // pred_check
    _
  $region27: #{transformer_decoder_forward.32} parent=0 // pred_check_branch
    %219 = sbr.rel (0) target = $region29
  $region28: #{transformer_decoder_forward.32} parent=0 // pred_region
    _
  $region29: #{transformer_decoder_forward.32} parent=0 // pred_fallthru
    _

</llo_original>
